<compile_context>
chip_gen: v5e
topology: v5e:2x2
jax: 0.10.0
libtpu: 0.0.40
codegen_flags: <defaults>
</compile_context>

<pallas_src>
import jax
import jax.numpy as jnp
from jax import lax
from jax.experimental import pallas as pl
from jax.experimental.pallas import tpu as pltpu


def _round_up(n, m):
    return ((n + m - 1) // m) * m


# ---------------------------------------------------------------------------
# Fused SPPF Pallas kernel
# ---------------------------------------------------------------------------

def _sppf_fused_kernel(x_ref, w1_ref, b1_ref, w2_ref, b2_ref, o_ref, pad_ref):
    """One batch element: cv1 -> 3 chained 5x5/s1/p2 max pools -> cv2.

    x_ref : (1, H, W, Cin)         activations (compute dtype)
    w1_ref: (Cin, Chid)            folded conv1+BN weight (compute dtype)
    b1_ref: (1, Chid)   f32        folded conv1+BN bias
    w2_ref: (4, Chid, Cout)        folded conv2+BN weight, per concat block
    b2_ref: (1, Cout)   f32        folded conv2+BN bias
    o_ref : (1, H, W, Cout)        output (compute dtype)
    pad_ref: (H+4, Wp, Chid)       pool scratch; valid cols [0, W), -inf border:
                                   rows [0,2) & [2+H,4+H), cols [W, Wp).
    """
    _, H, W, Cin = x_ref.shape
    Chid = w1_ref.shape[1]
    wp = pad_ref.shape[1]                      # padded width, multiple of 8, >= W+4
    mxu_dtype = x_ref.dtype
    pool_dtype = pad_ref.dtype
    neg = jnp.asarray(-jnp.inf, pool_dtype)

    # ---- -inf border strips only (every grid step; scratch is per-core) ----
    pad_ref[0:2, :, :] = jnp.full((2, wp, Chid), -jnp.inf, pool_dtype)
    pad_ref[2 + H:4 + H, :, :] = jnp.full((2, wp, Chid), -jnp.inf, pool_dtype)
    pad_ref[2:2 + H, W:wp, :] = jnp.full((H, wp - W, Chid), -jnp.inf, pool_dtype)

    # ---- cv1: (H*W, Cin) @ (Cin, Chid) + b1, SiLU in f32 ----
    x2 = x_ref[0].reshape(H * W, Cin)          # layout-free when W % 8 == 0
    y = jnp.dot(x2, w1_ref[...], preferred_element_type=jnp.float32)
    y = y + b1_ref[...]
    z1 = (y * jax.nn.sigmoid(y)).astype(pool_dtype).reshape(H, W, Chid)

    # First (and only) width-W interior store; all later stores are full width.
    pad_ref[2:2 + H, 0:W, :] = z1

    # Column validity mask (hoisted; reused by all three pools).
    col = lax.broadcasted_iota(jnp.int32, (1, wp, 1), 1)
    valid = col < W

    def pool_from_pad():
        """MaxPool2d(5, s=1, p=2) of the current pad_ref interior, separable.

        Returns (H, wp, Chid) with the right-pad columns forced back to -inf so
        it can be stored full-width (aligned) for the next pool.
        """
        p = pad_ref[...]                       # (H+4, wp, Chid)
        m = p
        # W-direction 5-tap max on the XLU.  The -inf pad columns [W, wp)
        # supply both boundaries: shift +/-2 wraps only -inf into valid cols.
        for s in (1, 2, wp - 1, wp - 2):       # == shifts +1,+2,-1,-2 (mod wp)
            m = jnp.maximum(m, pltpu.roll(p, s, axis=1))
        # H-direction 5-tap running max via cheap leading-dim slices.
        out = m[0:H]
        for d in range(1, 5):
            out = jnp.maximum(out, m[d:d + H])
        return jnp.where(valid, out, neg)

    def block_dot(z_full, k):
        # wp % 8 == 0 -> this reshape is layout-free.  -inf pad columns only
        # produce garbage in output columns [W, wp), which are sliced off.
        z2 = z_full.reshape(H * wp, Chid).astype(mxu_dtype)
        return jnp.dot(z2, w2_ref[k], preferred_element_type=jnp.float32)

    # ---- cv2 accumulated incrementally; no materialized concat ----
    z1_full = pad_ref[2:2 + H, :, :]           # full-width view of z1 (+ -inf pad)
    acc = block_dot(z1_full, 0)

    z2_full = pool_from_pad()
    acc = acc + block_dot(z2_full, 1)
    pad_ref[2:2 + H, :, :] = z2_full           # aligned full-width store

    z3_full = pool_from_pad()
    acc = acc + block_dot(z3_full, 2)
    pad_ref[2:2 + H, :, :] = z3_full

    z4_full = pool_from_pad()
    acc = acc + block_dot(z4_full, 3)          # last pool: no write-back needed

    out = acc + b2_ref[...]
    out = out * jax.nn.sigmoid(out)            # SiLU in f32
    out = out.reshape(H, wp, -1)[:, 0:W, :]    # drop pad columns
    o_ref[0] = out.astype(o_ref.dtype)


def sppf_pallas(x_nhwc, w1, b1, w2_blocks, b2, *, pool_dtype=jnp.float32):
    """Fused SPPF on NHWC input.

    x_nhwc    : (B, H, W, Cin)   compute dtype (bf16 recommended in production)
    w1        : (Cin, Chid)      compute dtype
    b1        : (1, Chid)        f32
    w2_blocks : (4, Chid, Cout)  compute dtype
    b2        : (1, Cout)        f32
    pool_dtype: dtype of the pooling scratch / maxima.  f32 is safe on all
                generations; bf16 halves the scratch on v6e/v7x (max is exact).
    """
    B, H, W, Cin = x_nhwc.shape
    Chid = w1.shape[1]
    Cout = w2_blocks.shape[2]
    wp = _round_up(W + 4, 8)
    cdtype = x_nhwc.dtype
    act_isz = int(jnp.dtype(cdtype).itemsize)
    w_isz = int(jnp.dtype(w1.dtype).itemsize)

    flops = int(B * H * W * (2 * Cin * Chid          # cv1
                             + 2 * 4 * Chid * Cout   # cv2 (4 blocks)
                             + 3 * 10 * Chid))       # 3 separable 5x5 pools
    transcendentals = int(B * H * W * (Chid + Cout))  # sigmoid in SiLU
    bytes_accessed = int(
        B * H * W * (Cin + Cout) * act_isz
        + (w1.size + w2_blocks.size) * w_isz
        + (b1.size + b2.size) * 4)

    return pl.pallas_call(
        _sppf_fused_kernel,
        out_shape=jax.ShapeDtypeStruct((B, H, W, Cout), cdtype),
        grid_spec=pltpu.PrefetchScalarGridSpec(
            num_scalar_prefetch=0,
            grid=(B,),
            in_specs=[
                pl.BlockSpec((1, H, W, Cin), lambda b: (b, 0, 0, 0)),
                pl.BlockSpec((Cin, Chid), lambda b: (0, 0)),
                pl.BlockSpec((1, Chid), lambda b: (0, 0)),
                pl.BlockSpec((4, Chid, Cout), lambda b: (0, 0, 0)),
                pl.BlockSpec((1, Cout), lambda b: (0, 0)),
            ],
            out_specs=pl.BlockSpec((1, H, W, Cout), lambda b: (b, 0, 0, 0)),
            scratch_shapes=[pltpu.VMEM((H + 4, wp, Chid), pool_dtype)],
        ),
        compiler_params=pltpu.CompilerParams(
            dimension_semantics=("parallel",),   # megacore: shard batch
            vmem_limit_bytes=48 * 1024 * 1024,
        ),
        cost_estimate=pl.CostEstimate(
            flops=flops,
            transcendentals=transcendentals,
            bytes_accessed=bytes_accessed,
        ),
    )(x_nhwc, w1, b1, w2_blocks, b2)


# ---------------------------------------------------------------------------
# Parameter construction (deterministic, synthetic) + forward wrappers
# ---------------------------------------------------------------------------

def make_sppf_params(key, ch_in, ch_out):
    """SPPF params with BN (eval mode, running stats) folded into the 1x1 convs."""
    ch_hidden = ch_in // 2
    eps = 1e-5
    keys = jax.random.split(key, 10)

    def conv_bn(kw, kg, kb, km, kv, cin, cout):
        w = jax.random.normal(kw, (cout, cin), jnp.float32) * 0.1       # conv weight
        gamma = jax.random.uniform(kg, (cout,), jnp.float32, 0.5, 1.5)  # BN weight
        beta = jax.random.normal(kb, (cout,), jnp.float32) * 0.1        # BN bias
        mean = jax.random.normal(km, (cout,), jnp.float32) * 0.1        # running_mean
        var = jax.random.uniform(kv, (cout,), jnp.float32, 0.5, 1.5)    # running_var
        scale = gamma / jnp.sqrt(var + eps)
        w_eff = (w * scale[:, None]).T            # (cin, cout)
        b_eff = (beta - mean * scale)[None, :]    # (1, cout)
        return w_eff, b_eff

    w1, b1 = conv_bn(*keys[0:5], ch_in, ch_hidden)
    w2, b2 = conv_bn(*keys[5:10], 4 * ch_hidden, ch_out)
    return dict(w1=w1, b1=b1, w2=w2, b2=b2)


def sppf_forward(x_nhwc, p, *, compute_dtype=None, pool_dtype=jnp.float32):
    """SPPF forward, NHWC in / NHWC out (no boundary transposes).

    compute_dtype: dtype fed to the MXU (bf16 recommended on all generations);
                   accumulation and SiLU stay f32.  Defaults to x's dtype.
    """
    cdtype = compute_dtype if compute_dtype is not None else x_nhwc.dtype
    ch_hidden = p["w1"].shape[1]
    ch_out = p["w2"].shape[1]
    w2_blocks = p["w2"].reshape(4, ch_hidden, ch_out)   # concat-free cv2
    return sppf_pallas(
        x_nhwc.astype(cdtype),
        p["w1"].astype(cdtype), p["b1"].astype(jnp.float32),
        w2_blocks.astype(cdtype), p["b2"].astype(jnp.float32),
        pool_dtype=pool_dtype)


def sppf_forward_nchw(x_nchw, p, **kw):
    """Drop-in NCHW adapter matching the PyTorch module's layout.

    Note: each transpose is a full extra HBM pass; prefer sppf_forward (NHWC)
    inside an NHWC model.
    """
    out = sppf_forward(jnp.transpose(x_nchw, (0, 2, 3, 1)), p, **kw)
    return jnp.transpose(out, (0, 3, 1, 2))


# ---------------------------------------------------------------------------
# Pure-JAX reference (same math as the PyTorch module, NHWC)
# ---------------------------------------------------------------------------

def sppf_reference(x_nhwc, p):
    def pw(z, w, b):
        y = jnp.einsum("bhwc,cd->bhwd", z, w) + b.reshape(1, 1, 1, -1)
        return y * jax.nn.sigmoid(y)

    def mp(z):
        return lax.reduce_window(z, -jnp.inf, lax.max, (1, 5, 5, 1),
                                 (1, 1, 1, 1),
                                 [(0, 0), (2, 2), (2, 2), (0, 0)])

    y1 = pw(x_nhwc, p["w1"], p["b1"])
    y2 = mp(y1)
    y3 = mp(y2)
    y4 = mp(y3)
    return pw(jnp.concatenate([y1, y2, y3, y4], -1), p["w2"], p["b2"])


# ---------------------------------------------------------------------------
# Main
# ---------------------------------------------------------------------------

if __name__ == "__main__":
    key = jax.random.PRNGKey(0)
    k_x, k_p = jax.random.split(key)

    B, H, W, C_IN, C_OUT = 2, 16, 16, 4, 8

    x = jax.random.normal(k_x, (B, H, W, C_IN), jnp.float32)     # NHWC
    params = make_sppf_params(k_p, C_IN, C_OUT)

    ref = jax.block_until_ready(sppf_reference(x, params))

    # f32 end-to-end (tight check).
    out_f32 = jax.block_until_ready(
        sppf_forward(x, params, compute_dtype=jnp.float32))
    assert out_f32.shape == (B, H, W, C_OUT), out_f32.shape
    assert jnp.allclose(out_f32, ref, atol=2e-3, rtol=2e-3), "f32 mismatch vs ref"

    # bf16-fed MXU (production path), f32 pools/accumulators (loose check).
    out_bf16 = jax.block_until_ready(
        sppf_forward(x, params, compute_dtype=jnp.bfloat16))
    assert out_bf16.shape == (B, H, W, C_OUT), out_bf16.shape
    assert jnp.allclose(out_bf16.astype(jnp.float32), ref,
                        atol=5e-2, rtol=5e-2), "bf16 mismatch vs ref"

    print("KERNEL_OK")
</pallas_src>

<mosaic_0001>
module attributes {stable_mosaic.version = 11 : i64} {
  func.func @_sppf_fused_kernel(%arg0: i32, %arg1: memref<1x16x16x4xf32, #tpu.memory_space<vmem>>, %arg2: memref<4x2xf32, #tpu.memory_space<vmem>>, %arg3: memref<1x2xf32, #tpu.memory_space<vmem>>, %arg4: memref<4x2x8xf32, #tpu.memory_space<vmem>>, %arg5: memref<1x8xf32, #tpu.memory_space<vmem>>, %arg6: memref<1x16x16x8xf32, #tpu.memory_space<vmem>>, %arg7: memref<20x24x2xf32, #tpu.memory_space<vmem>>) attributes {dimension_semantics = [#tpu.dimension_semantics<parallel>], iteration_bounds = array<i64: 2>, scalar_prefetch = 0 : i64, scratch_operands = 1 : i64, tpu.core_type = #tpu.core_type<tc>, window_params = [{transform_indices = @transform_0, window_bounds = array<i64: 1, 16, 16, 4>}, {pipeline_mode = #tpu.pipeline_mode<synchronous>, transform_indices = @transform_1, window_bounds = array<i64: 4, 2>}, {pipeline_mode = #tpu.pipeline_mode<synchronous>, transform_indices = @transform_2, window_bounds = array<i64: 1, 2>}, {pipeline_mode = #tpu.pipeline_mode<synchronous>, transform_indices = @transform_3, window_bounds = array<i64: 4, 2, 8>}, {pipeline_mode = #tpu.pipeline_mode<synchronous>, transform_indices = @transform_4, window_bounds = array<i64: 1, 8>}, {transform_indices = @transform_5, window_bounds = array<i64: 1, 16, 16, 8>}]} {
    %cst = arith.constant 0xFF800000 : f32
    %0 = vector.broadcast %cst : f32 to vector<2x24x2xf32>
    %c0 = arith.constant 0 : index
    %c0_0 = arith.constant 0 : index
    %c0_1 = arith.constant 0 : index
    %1 = vector.load %arg7[%c0, %c0_0, %c0_1] : memref<20x24x2xf32, #tpu.memory_space<vmem>>, vector<2x24x2xf32>
    tpu.vector_store %arg7[%c0, %c0_0, %c0_1], %0 {strides = array<i32>} : memref<20x24x2xf32, #tpu.memory_space<vmem>>, vector<2x24x2xf32>,
    %cst_2 = arith.constant 0xFF800000 : f32
    %2 = vector.broadcast %cst_2 : f32 to vector<2x24x2xf32>
    %c18 = arith.constant 18 : index
    %c0_3 = arith.constant 0 : index
    %c0_4 = arith.constant 0 : index
    %3 = vector.load %arg7[%c18, %c0_3, %c0_4] : memref<20x24x2xf32, #tpu.memory_space<vmem>>, vector<2x24x2xf32>
    tpu.vector_store %arg7[%c18, %c0_3, %c0_4], %2 {strides = array<i32>} : memref<20x24x2xf32, #tpu.memory_space<vmem>>, vector<2x24x2xf32>,
    %cst_5 = arith.constant 0xFF800000 : f32
    %4 = vector.broadcast %cst_5 : f32 to vector<16x8x2xf32>
    %c2 = arith.constant 2 : index
    %c16 = arith.constant 16 : index
    %c0_6 = arith.constant 0 : index
    %5 = vector.load %arg7[%c2, %c16, %c0_6] : memref<20x24x2xf32, #tpu.memory_space<vmem>>, vector<16x8x2xf32>
    tpu.vector_store %arg7[%c2, %c16, %c0_6], %4 {strides = array<i32>} : memref<20x24x2xf32, #tpu.memory_space<vmem>>, vector<16x8x2xf32>,
    %c0_7 = arith.constant 0 : index
    %c0_8 = arith.constant 0 : index
    %c0_9 = arith.constant 0 : index
    %c0_10 = arith.constant 0 : index
    %6 = vector.load %arg1[%c0_7, %c0_8, %c0_9, %c0_10] : memref<1x16x16x4xf32, #tpu.memory_space<vmem>>, vector<1x16x16x4xf32>
    %7 = vector.shape_cast %6 : vector<1x16x16x4xf32> to vector<16x16x4xf32>
    %8 = vector.shape_cast %7 : vector<16x16x4xf32> to vector<256x4xf32>
    %c0_11 = arith.constant 0 : index
    %c0_12 = arith.constant 0 : index
    %9 = vector.load %arg2[%c0_11, %c0_12] : memref<4x2xf32, #tpu.memory_space<vmem>>, vector<4x2xf32>
    %cst_13 = arith.constant dense<0.000000e+00> : vector<256x2xf32>
    %10 = tpu.matmul %8, %9, %cst_13 {dimension_numbers = #tpu.dot_dimension_numbers<[1], [0], [0], [1], [0, 0, 1, 1], [], []>} : vector<256x4xf32>, vector<4x2xf32>, vector<256x2xf32> -> vector<256x2xf32>
    %c0_14 = arith.constant 0 : index
    %c0_15 = arith.constant 0 : index
    %11 = vector.load %arg3[%c0_14, %c0_15] : memref<1x2xf32, #tpu.memory_space<vmem>>, vector<1x2xf32>
    %12 = vector.broadcast %11 : vector<1x2xf32> to vector<256x2xf32>
    %13 = arith.addf %10, %12 : vector<256x2xf32>
    %14 = arith.negf %13 : vector<256x2xf32>
    %15 = math.exp %14 : vector<256x2xf32>
    %cst_16 = arith.constant 1.000000e+00 : f32
    %16 = vector.broadcast %cst_16 : f32 to vector<256x2xf32>
    %17 = arith.addf %16, %15 : vector<256x2xf32>
    %18 = arith.divf %16, %17 : vector<256x2xf32>
    %19 = arith.mulf %13, %18 : vector<256x2xf32>
    %20 = vector.shape_cast %19 : vector<256x2xf32> to vector<16x16x2xf32>
    %c2_17 = arith.constant 2 : index
    %c0_18 = arith.constant 0 : index
    %c0_19 = arith.constant 0 : index
    %21 = vector.load %arg7[%c2_17, %c0_18, %c0_19] : memref<20x24x2xf32, #tpu.memory_space<vmem>>, vector<16x16x2xf32>
    tpu.vector_store %arg7[%c2_17, %c0_18, %c0_19], %20 {strides = array<i32>} : memref<20x24x2xf32, #tpu.memory_space<vmem>>, vector<16x16x2xf32>,
    %22 = tpu.iota {dimensions = array<i32: 1>} : vector<1x24x1xi32>
    %c16_i32 = arith.constant 16 : i32
    %23 = vector.broadcast %c16_i32 : i32 to vector<1x24x1xi32>
    %24 = arith.cmpi slt, %22, %23 : vector<1x24x1xi32>
    %c2_20 = arith.constant 2 : index
    %c0_21 = arith.constant 0 : index
    %c0_22 = arith.constant 0 : index
    %25 = vector.load %arg7[%c2_20, %c0_21, %c0_22] : memref<20x24x2xf32, #tpu.memory_space<vmem>>, vector<16x24x2xf32>
    %26 = vector.shape_cast %25 : vector<16x24x2xf32> to vector<384x2xf32>
    %c0_23 = arith.constant 0 : index
    %c0_24 = arith.constant 0 : index
    %c0_25 = arith.constant 0 : index
    %27 = vector.load %arg4[%c0_23, %c0_24, %c0_25] : memref<4x2x8xf32, #tpu.memory_space<vmem>>, vector<1x2x8xf32>
    %28 = vector.shape_cast %27 : vector<1x2x8xf32> to vector<2x8xf32>
    %cst_26 = arith.constant dense<0.000000e+00> : vector<384x8xf32>
    %29 = tpu.matmul %26, %28, %cst_26 {dimension_numbers = #tpu.dot_dimension_numbers<[1], [0], [0], [1], [0, 0, 1, 1], [], []>} : vector<384x2xf32>, vector<2x8xf32>, vector<384x8xf32> -> vector<384x8xf32>
    %c0_27 = arith.constant 0 : index
    %c0_28 = arith.constant 0 : index
    %c0_29 = arith.constant 0 : index
    %30 = vector.load %arg7[%c0_27, %c0_28, %c0_29] : memref<20x24x2xf32, #tpu.memory_space<vmem>>, vector<20x24x2xf32>
    %c1_i32 = arith.constant 1 : i32
    %31 = tpu.dynamic_rotate %30 by %c1_i32 dim 1 : vector<20x24x2xf32>, i32 -> vector<20x24x2xf32>
    %32 = arith.maximumf %30, %31 : vector<20x24x2xf32>
    %c2_i32 = arith.constant 2 : i32
    %33 = tpu.dynamic_rotate %30 by %c2_i32 dim 1 : vector<20x24x2xf32>, i32 -> vector<20x24x2xf32>
    %34 = arith.maximumf %32, %33 : vector<20x24x2xf32>
    %c23_i32 = arith.constant 23 : i32
    %35 = tpu.dynamic_rotate %30 by %c23_i32 dim 1 : vector<20x24x2xf32>, i32 -> vector<20x24x2xf32>
    %36 = arith.maximumf %34, %35 : vector<20x24x2xf32>
    %c22_i32 = arith.constant 22 : i32
    %37 = tpu.dynamic_rotate %30 by %c22_i32 dim 1 : vector<20x24x2xf32>, i32 -> vector<20x24x2xf32>
    %38 = arith.maximumf %36, %37 : vector<20x24x2xf32>
    %39 = vector.extract_strided_slice %38 {offsets = [0, 0, 0], sizes = [16, 24, 2], strides = [1, 1, 1]} : vector<20x24x2xf32> to vector<16x24x2xf32>
    %40 = vector.extract_strided_slice %38 {offsets = [1, 0, 0], sizes = [16, 24, 2], strides = [1, 1, 1]} : vector<20x24x2xf32> to vector<16x24x2xf32>
    %41 = arith.maximumf %39, %40 : vector<16x24x2xf32>
    %42 = vector.extract_strided_slice %38 {offsets = [2, 0, 0], sizes = [16, 24, 2], strides = [1, 1, 1]} : vector<20x24x2xf32> to vector<16x24x2xf32>
    %43 = arith.maximumf %41, %42 : vector<16x24x2xf32>
    %44 = vector.extract_strided_slice %38 {offsets = [3, 0, 0], sizes = [16, 24, 2], strides = [1, 1, 1]} : vector<20x24x2xf32> to vector<16x24x2xf32>
    %45 = arith.maximumf %43, %44 : vector<16x24x2xf32>
    %46 = vector.extract_strided_slice %38 {offsets = [4, 0, 0], sizes = [16, 24, 2], strides = [1, 1, 1]} : vector<20x24x2xf32> to vector<16x24x2xf32>
    %47 = arith.maximumf %45, %46 : vector<16x24x2xf32>
    %cst_30 = arith.constant 0xFF800000 : f32
    %48 = vector.shape_cast %24 : vector<1x24x1xi1> to vector<1x24x1xi1>
    %49 = vector.broadcast %48 : vector<1x24x1xi1> to vector<16x24x2xi1>
    %50 = vector.broadcast %cst_30 : f32 to vector<16x24x2xf32>
    %51 = arith.select %49, %47, %50 : vector<16x24x2xi1>, vector<16x24x2xf32>
    %52 = vector.shape_cast %51 : vector<16x24x2xf32> to vector<384x2xf32>
    %c1 = arith.constant 1 : index
    %c0_31 = arith.constant 0 : index
    %c0_32 = arith.constant 0 : index
    %53 = vector.load %arg4[%c1, %c0_31, %c0_32] : memref<4x2x8xf32, #tpu.memory_space<vmem>>, vector<1x2x8xf32>
    %54 = vector.shape_cast %53 : vector<1x2x8xf32> to vector<2x8xf32>
    %cst_33 = arith.constant dense<0.000000e+00> : vector<384x8xf32>
    %55 = tpu.matmul %52, %54, %cst_33 {dimension_numbers = #tpu.dot_dimension_numbers<[1], [0], [0], [1], [0, 0, 1, 1], [], []>} : vector<384x2xf32>, vector<2x8xf32>, vector<384x8xf32> -> vector<384x8xf32>
    %56 = arith.addf %29, %55 : vector<384x8xf32>
    %c2_34 = arith.constant 2 : index
    %c0_35 = arith.constant 0 : index
    %c0_36 = arith.constant 0 : index
    %57 = vector.load %arg7[%c2_34, %c0_35, %c0_36] : memref<20x24x2xf32, #tpu.memory_space<vmem>>, vector<16x24x2xf32>
    tpu.vector_store %arg7[%c2_34, %c0_35, %c0_36], %51 {strides = array<i32>} : memref<20x24x2xf32, #tpu.memory_space<vmem>>, vector<16x24x2xf32>,
    %c0_37 = arith.constant 0 : index
    %c0_38 = arith.constant 0 : index
    %c0_39 = arith.constant 0 : index
    %58 = vector.load %arg7[%c0_37, %c0_38, %c0_39] : memref<20x24x2xf32, #tpu.memory_space<vmem>>, vector<20x24x2xf32>
    %c1_i32_40 = arith.constant 1 : i32
    %59 = tpu.dynamic_rotate %58 by %c1_i32_40 dim 1 : vector<20x24x2xf32>, i32 -> vector<20x24x2xf32>
    %60 = arith.maximumf %58, %59 : vector<20x24x2xf32>
    %c2_i32_41 = arith.constant 2 : i32
    %61 = tpu.dynamic_rotate %58 by %c2_i32_41 dim 1 : vector<20x24x2xf32>, i32 -> vector<20x24x2xf32>
    %62 = arith.maximumf %60, %61 : vector<20x24x2xf32>
    %c23_i32_42 = arith.constant 23 : i32
    %63 = tpu.dynamic_rotate %58 by %c23_i32_42 dim 1 : vector<20x24x2xf32>, i32 -> vector<20x24x2xf32>
    %64 = arith.maximumf %62, %63 : vector<20x24x2xf32>
    %c22_i32_43 = arith.constant 22 : i32
    %65 = tpu.dynamic_rotate %58 by %c22_i32_43 dim 1 : vector<20x24x2xf32>, i32 -> vector<20x24x2xf32>
    %66 = arith.maximumf %64, %65 : vector<20x24x2xf32>
    %67 = vector.extract_strided_slice %66 {offsets = [0, 0, 0], sizes = [16, 24, 2], strides = [1, 1, 1]} : vector<20x24x2xf32> to vector<16x24x2xf32>
    %68 = vector.extract_strided_slice %66 {offsets = [1, 0, 0], sizes = [16, 24, 2], strides = [1, 1, 1]} : vector<20x24x2xf32> to vector<16x24x2xf32>
    %69 = arith.maximumf %67, %68 : vector<16x24x2xf32>
    %70 = vector.extract_strided_slice %66 {offsets = [2, 0, 0], sizes = [16, 24, 2], strides = [1, 1, 1]} : vector<20x24x2xf32> to vector<16x24x2xf32>
    %71 = arith.maximumf %69, %70 : vector<16x24x2xf32>
    %72 = vector.extract_strided_slice %66 {offsets = [3, 0, 0], sizes = [16, 24, 2], strides = [1, 1, 1]} : vector<20x24x2xf32> to vector<16x24x2xf32>
    %73 = arith.maximumf %71, %72 : vector<16x24x2xf32>
    %74 = vector.extract_strided_slice %66 {offsets = [4, 0, 0], sizes = [16, 24, 2], strides = [1, 1, 1]} : vector<20x24x2xf32> to vector<16x24x2xf32>
    %75 = arith.maximumf %73, %74 : vector<16x24x2xf32>
    %cst_44 = arith.constant 0xFF800000 : f32
    %76 = vector.shape_cast %24 : vector<1x24x1xi1> to vector<1x24x1xi1>
    %77 = vector.broadcast %76 : vector<1x24x1xi1> to vector<16x24x2xi1>
    %78 = vector.broadcast %cst_44 : f32 to vector<16x24x2xf32>
    %79 = arith.select %77, %75, %78 : vector<16x24x2xi1>, vector<16x24x2xf32>
    %80 = vector.shape_cast %79 : vector<16x24x2xf32> to vector<384x2xf32>
    %c2_45 = arith.constant 2 : index
    %c0_46 = arith.constant 0 : index
    %c0_47 = arith.constant 0 : index
    %81 = vector.load %arg4[%c2_45, %c0_46, %c0_47] : memref<4x2x8xf32, #tpu.memory_space<vmem>>, vector<1x2x8xf32>
    %82 = vector.shape_cast %81 : vector<1x2x8xf32> to vector<2x8xf32>
    %cst_48 = arith.constant dense<0.000000e+00> : vector<384x8xf32>
    %83 = tpu.matmul %80, %82, %cst_48 {dimension_numbers = #tpu.dot_dimension_numbers<[1], [0], [0], [1], [0, 0, 1, 1], [], []>} : vector<384x2xf32>, vector<2x8xf32>, vector<384x8xf32> -> vector<384x8xf32>
    %84 = arith.addf %56, %83 : vector<384x8xf32>
    %c2_49 = arith.constant 2 : index
    %c0_50 = arith.constant 0 : index
    %c0_51 = arith.constant 0 : index
    %85 = vector.load %arg7[%c2_49, %c0_50, %c0_51] : memref<20x24x2xf32, #tpu.memory_space<vmem>>, vector<16x24x2xf32>
    tpu.vector_store %arg7[%c2_49, %c0_50, %c0_51], %79 {strides = array<i32>} : memref<20x24x2xf32, #tpu.memory_space<vmem>>, vector<16x24x2xf32>,
    %c0_52 = arith.constant 0 : index
    %c0_53 = arith.constant 0 : index
    %c0_54 = arith.constant 0 : index
    %86 = vector.load %arg7[%c0_52, %c0_53, %c0_54] : memref<20x24x2xf32, #tpu.memory_space<vmem>>, vector<20x24x2xf32>
    %c1_i32_55 = arith.constant 1 : i32
    %87 = tpu.dynamic_rotate %86 by %c1_i32_55 dim 1 : vector<20x24x2xf32>, i32 -> vector<20x24x2xf32>
    %88 = arith.maximumf %86, %87 : vector<20x24x2xf32>
    %c2_i32_56 = arith.constant 2 : i32
    %89 = tpu.dynamic_rotate %86 by %c2_i32_56 dim 1 : vector<20x24x2xf32>, i32 -> vector<20x24x2xf32>
    %90 = arith.maximumf %88, %89 : vector<20x24x2xf32>
    %c23_i32_57 = arith.constant 23 : i32
    %91 = tpu.dynamic_rotate %86 by %c23_i32_57 dim 1 : vector<20x24x2xf32>, i32 -> vector<20x24x2xf32>
    %92 = arith.maximumf %90, %91 : vector<20x24x2xf32>
    %c22_i32_58 = arith.constant 22 : i32
    %93 = tpu.dynamic_rotate %86 by %c22_i32_58 dim 1 : vector<20x24x2xf32>, i32 -> vector<20x24x2xf32>
    %94 = arith.maximumf %92, %93 : vector<20x24x2xf32>
    %95 = vector.extract_strided_slice %94 {offsets = [0, 0, 0], sizes = [16, 24, 2], strides = [1, 1, 1]} : vector<20x24x2xf32> to vector<16x24x2xf32>
    %96 = vector.extract_strided_slice %94 {offsets = [1, 0, 0], sizes = [16, 24, 2], strides = [1, 1, 1]} : vector<20x24x2xf32> to vector<16x24x2xf32>
    %97 = arith.maximumf %95, %96 : vector<16x24x2xf32>
    %98 = vector.extract_strided_slice %94 {offsets = [2, 0, 0], sizes = [16, 24, 2], strides = [1, 1, 1]} : vector<20x24x2xf32> to vector<16x24x2xf32>
    %99 = arith.maximumf %97, %98 : vector<16x24x2xf32>
    %100 = vector.extract_strided_slice %94 {offsets = [3, 0, 0], sizes = [16, 24, 2], strides = [1, 1, 1]} : vector<20x24x2xf32> to vector<16x24x2xf32>
    %101 = arith.maximumf %99, %100 : vector<16x24x2xf32>
    %102 = vector.extract_strided_slice %94 {offsets = [4, 0, 0], sizes = [16, 24, 2], strides = [1, 1, 1]} : vector<20x24x2xf32> to vector<16x24x2xf32>
    %103 = arith.maximumf %101, %102 : vector<16x24x2xf32>
    %cst_59 = arith.constant 0xFF800000 : f32
    %104 = vector.shape_cast %24 : vector<1x24x1xi1> to vector<1x24x1xi1>
    %105 = vector.broadcast %104 : vector<1x24x1xi1> to vector<16x24x2xi1>
    %106 = vector.broadcast %cst_59 : f32 to vector<16x24x2xf32>
    %107 = arith.select %105, %103, %106 : vector<16x24x2xi1>, vector<16x24x2xf32>
    %108 = vector.shape_cast %107 : vector<16x24x2xf32> to vector<384x2xf32>
    %c3 = arith.constant 3 : index
    %c0_60 = arith.constant 0 : index
    %c0_61 = arith.constant 0 : index
    %109 = vector.load %arg4[%c3, %c0_60, %c0_61] : memref<4x2x8xf32, #tpu.memory_space<vmem>>, vector<1x2x8xf32>
    %110 = vector.shape_cast %109 : vector<1x2x8xf32> to vector<2x8xf32>
    %cst_62 = arith.constant dense<0.000000e+00> : vector<384x8xf32>
    %111 = tpu.matmul %108, %110, %cst_62 {dimension_numbers = #tpu.dot_dimension_numbers<[1], [0], [0], [1], [0, 0, 1, 1], [], []>} : vector<384x2xf32>, vector<2x8xf32>, vector<384x8xf32> -> vector<384x8xf32>
    %112 = arith.addf %84, %111 : vector<384x8xf32>
    %c0_63 = arith.constant 0 : index
    %c0_64 = arith.constant 0 : index
    %113 = vector.load %arg5[%c0_63, %c0_64] : memref<1x8xf32, #tpu.memory_space<vmem>>, vector<1x8xf32>
    %114 = vector.broadcast %113 : vector<1x8xf32> to vector<384x8xf32>
    %115 = arith.addf %112, %114 : vector<384x8xf32>
    %116 = arith.negf %115 : vector<384x8xf32>
    %117 = math.exp %116 : vector<384x8xf32>
    %cst_65 = arith.constant 1.000000e+00 : f32
    %118 = vector.broadcast %cst_65 : f32 to vector<384x8xf32>
    %119 = arith.addf %118, %117 : vector<384x8xf32>
    %120 = arith.divf %118, %119 : vector<384x8xf32>
    %121 = arith.mulf %115, %120 : vector<384x8xf32>
    %122 = vector.shape_cast %121 : vector<384x8xf32> to vector<16x24x8xf32>
    %123 = vector.extract_strided_slice %122 {offsets = [0, 0, 0], sizes = [16, 16, 8], strides = [1, 1, 1]} : vector<16x24x8xf32> to vector<16x16x8xf32>
    %c0_66 = arith.constant 0 : index
    %c0_67 = arith.constant 0 : index
    %c0_68 = arith.constant 0 : index
    %c0_69 = arith.constant 0 : index
    %124 = vector.load %arg6[%c0_66, %c0_67, %c0_68, %c0_69] : memref<1x16x16x8xf32, #tpu.memory_space<vmem>>, vector<1x16x16x8xf32>
    %125 = vector.shape_cast %124 : vector<1x16x16x8xf32> to vector<16x16x8xf32>
    %126 = vector.shape_cast %123 : vector<16x16x8xf32> to vector<1x16x16x8xf32>
    tpu.vector_store %arg6[%c0_66, %c0_67, %c0_68, %c0_69], %126 {strides = array<i32>} : memref<1x16x16x8xf32, #tpu.memory_space<vmem>>, vector<1x16x16x8xf32>,
    return
  }
  func.func @transform_0(%arg0: i32) -> (i32, i32, i32, i32) {
    %c0_i32 = arith.constant 0 : i32
    %c0_i32_0 = arith.constant 0 : i32
    %c0_i32_1 = arith.constant 0 : i32
    %c0_i32_2 = arith.constant 0 : i32
    return %arg0, %c0_i32, %c0_i32_0, %c0_i32_1 : i32, i32, i32, i32
  }
  func.func @transform_1(%arg0: i32) -> (i32, i32) {
    %c0_i32 = arith.constant 0 : i32
    %c0_i32_0 = arith.constant 0 : i32
    %c0_i32_1 = arith.constant 0 : i32
    return %c0_i32, %c0_i32_0 : i32, i32
  }
  func.func @transform_2(%arg0: i32) -> (i32, i32) {
    %c0_i32 = arith.constant 0 : i32
    %c0_i32_0 = arith.constant 0 : i32
    %c0_i32_1 = arith.constant 0 : i32
    return %c0_i32, %c0_i32_0 : i32, i32
  }
  func.func @transform_3(%arg0: i32) -> (i32, i32, i32) {
    %c0_i32 = arith.constant 0 : i32
    %c0_i32_0 = arith.constant 0 : i32
    %c0_i32_1 = arith.constant 0 : i32
    %c0_i32_2 = arith.constant 0 : i32
    return %c0_i32, %c0_i32_0, %c0_i32_1 : i32, i32, i32
  }
  func.func @transform_4(%arg0: i32) -> (i32, i32) {
    %c0_i32 = arith.constant 0 : i32
    %c0_i32_0 = arith.constant 0 : i32
    %c0_i32_1 = arith.constant 0 : i32
    return %c0_i32, %c0_i32_0 : i32, i32
  }
  func.func @transform_5(%arg0: i32) -> (i32, i32, i32, i32) {
    %c0_i32 = arith.constant 0 : i32
    %c0_i32_0 = arith.constant 0 : i32
    %c0_i32_1 = arith.constant 0 : i32
    %c0_i32_2 = arith.constant 0 : i32
    return %arg0, %c0_i32, %c0_i32_0, %c0_i32_1 : i32, i32, i32, i32
  }
}

</mosaic_0001>

<llo_original>
// kernel: tpu_custom_call.1
$region0: #{tpu_custom_call.1}
  #allocation0 [shape = 'u32[]', space=smem, size = 0x4, offset = 0x4, fixed_abs, tag = 'smem constant byte address 0x4 - core index']
  #allocation1 [shape = 'u32[72,128]{1,0:T(1,128)}', space=vmem, size = 0x9000, scoped, tag = 'internal scratch']
  #allocation2 [shape = 'f32[20,24,2]{2,1,0:T(8,128)}', space=vmem, size = 0x3c000, scoped, tag = 'scratch operand']
  %s0 = inlined_call_operand.vmem [shape: f32[2,16,16,4], index: 0, kind: input, shape index: {}]
  %s1 = inlined_call_operand.vmem [shape: f32[4,2], index: 1, kind: input, shape index: {}]
  %s2 = inlined_call_operand.vmem [shape: f32[1,2], index: 2, kind: input, shape index: {}]
  %s3 = inlined_call_operand.vmem [shape: f32[4,2,8], index: 3, kind: input, shape index: {}]
  %s4 = inlined_call_operand.vmem [shape: f32[1,8], index: 4, kind: input, shape index: {}]
  %s5 = inlined_call_operand.vmem [shape: f32[2,16,16,8], index: 5, kind: output, shape index: {}]
  %s6 = sld [smem:[#allocation0]]
  $region53: #{tpu_custom_call.1} parent=0
    _
  %s8 = ssub.s32 1, %s6
  %s9 = scalar_select 0, %s8, %s6
  loop: start=0, step=1, limit=4
  $region2: #{tpu_custom_call.1} parent=0 // loop_pre_header
    _
  $region3: #{tpu_custom_call.1} parent=0 // loop_header
    %s11 = sphi 0, %s15
    %p12 = scmp.ge.s32.totalorder %s11, 4
    %s21 = sphi 0, %s23
    %s24 = sphi 0, %s21
    %s25 = sphi 0, %s24
    %s41 = sphi 0, %s25
    %s45 = sphi 0, %s45
    %s47 = sphi 0, %s45
    %s48 = sphi 0, %s47
    %s62 = sphi 0, %s48
    %s66 = sphi 0, %s66
    %s68 = sphi 0, %s66
    %s69 = sphi 0, %s68
    %s83 = sphi 0, %s69
    %s87 = sphi 0, %s87
    %s89 = sphi 0, %s87
    %s90 = sphi 0, %s89
    %s104 = sphi 0, %s90
    %s108 = sphi 0, %s108
    %s110 = sphi 0, %s108
    %s111 = sphi 0, %s110
    %s125 = sphi 0, %s111
    %s131 = sphi 0, %s133
    %s134 = sphi 0, %s131
    %s135 = sphi 0, %s134
    %s151 = sphi 0, %s135
  $region4: #{tpu_custom_call.1} parent=0 // loop_header_branch
    %14 = sbr.rel (%p12) target = $region8
  $region5: #{tpu_custom_call.1} parent=0 // loop_body
    %s16 = ssub.s32 %s11, 1
    %s17 = ssub.s32 %s11, 2
    %s18 = sadd.s32 %s11, 1
    %s19 = ssub.s32 %s11, %s18
    %p20 = scmp.eq.s32.totalorder %s19, 0
    %s22 = sadd.s32 %s21, 1
    %s23 = scalar_select %p20, %s21, %s22
    %p26 = pneg %p20
    %p27 = scmp.eq.s32.totalorder %s11, 1
    %p28 = por %p26, %p27
    %p29 = scmp.ne.s32.totalorder %s21, %s24
    %p30 = scmp.eq.s32.totalorder %s11, 0
    %p31 = por %p29, %p30
    %p32 = scmp.ne.s32.totalorder %s21, %s24
    %p33 = scmp.eq.s32.totalorder %s16, 1
    %p34 = por %p32, %p33
    %p35 = scmp.ne.s32.totalorder %s24, %s25
    %p36 = scmp.eq.s32.totalorder %s16, 0
    %p37 = por %p35, %p36
    %p38 = scmp.ne.s32.totalorder %s24, %s25
    %p39 = scmp.eq.s32.totalorder %s17, 1
    %p40 = por %p38, %p39
    %p42 = scmp.ne.s32.totalorder %s25, %s41
    %p43 = scmp.eq.s32.totalorder %s17, 0
    %p44 = por %p42, %p43
    %s46 = sadd.s32 %s45, 1
    %p49 = scmp.eq.s32.totalorder %s11, 1
    %p50 = scmp.ne.s32.totalorder %s45, %s47
    %p51 = scmp.eq.s32.totalorder %s11, 0
    %p52 = por %p50, %p51
    %p53 = scmp.ne.s32.totalorder %s45, %s47
    %p54 = scmp.eq.s32.totalorder %s16, 1
    %p55 = por %p53, %p54
    %p56 = scmp.ne.s32.totalorder %s47, %s48
    %p57 = scmp.eq.s32.totalorder %s16, 0
    %p58 = por %p56, %p57
    %p59 = scmp.ne.s32.totalorder %s47, %s48
    %p60 = scmp.eq.s32.totalorder %s17, 1
    %p61 = por %p59, %p60
    %p63 = scmp.ne.s32.totalorder %s48, %s62
    %p64 = scmp.eq.s32.totalorder %s17, 0
    %p65 = por %p63, %p64
    %s67 = sadd.s32 %s66, 1
    %p70 = scmp.eq.s32.totalorder %s11, 1
    %p71 = scmp.ne.s32.totalorder %s66, %s68
    %p72 = scmp.eq.s32.totalorder %s11, 0
    %p73 = por %p71, %p72
    %p74 = scmp.ne.s32.totalorder %s66, %s68
    %p75 = scmp.eq.s32.totalorder %s16, 1
    %p76 = por %p74, %p75
    %p77 = scmp.ne.s32.totalorder %s68, %s69
    %p78 = scmp.eq.s32.totalorder %s16, 0
    %p79 = por %p77, %p78
    %p80 = scmp.ne.s32.totalorder %s68, %s69
    %p81 = scmp.eq.s32.totalorder %s17, 1
    %p82 = por %p80, %p81
    %p84 = scmp.ne.s32.totalorder %s69, %s83
    %p85 = scmp.eq.s32.totalorder %s17, 0
    %p86 = por %p84, %p85
    %s88 = sadd.s32 %s87, 1
    %p91 = scmp.eq.s32.totalorder %s11, 1
    %p92 = scmp.ne.s32.totalorder %s87, %s89
    %p93 = scmp.eq.s32.totalorder %s11, 0
    %p94 = por %p92, %p93
    %p95 = scmp.ne.s32.totalorder %s87, %s89
    %p96 = scmp.eq.s32.totalorder %s16, 1
    %p97 = por %p95, %p96
    %p98 = scmp.ne.s32.totalorder %s89, %s90
    %p99 = scmp.eq.s32.totalorder %s16, 0
    %p100 = por %p98, %p99
    %p101 = scmp.ne.s32.totalorder %s89, %s90
    %p102 = scmp.eq.s32.totalorder %s17, 1
    %p103 = por %p101, %p102
    %p105 = scmp.ne.s32.totalorder %s90, %s104
    %p106 = scmp.eq.s32.totalorder %s17, 0
    %p107 = por %p105, %p106
    %s109 = sadd.s32 %s108, 1
    %p112 = scmp.eq.s32.totalorder %s11, 1
    %p113 = scmp.ne.s32.totalorder %s108, %s110
    %p114 = scmp.eq.s32.totalorder %s11, 0
    %p115 = por %p113, %p114
    %p116 = scmp.ne.s32.totalorder %s108, %s110
    %p117 = scmp.eq.s32.totalorder %s16, 1
    %p118 = por %p116, %p117
    %p119 = scmp.ne.s32.totalorder %s110, %s111
    %p120 = scmp.eq.s32.totalorder %s16, 0
    %p121 = por %p119, %p120
    %p122 = scmp.ne.s32.totalorder %s110, %s111
    %p123 = scmp.eq.s32.totalorder %s17, 1
    %p124 = por %p122, %p123
    %p126 = scmp.ne.s32.totalorder %s111, %s125
    %p127 = scmp.eq.s32.totalorder %s17, 0
    %p128 = por %p126, %p127
    %s129 = ssub.s32 %s11, %s18
    %p130 = scmp.eq.s32.totalorder %s129, 0
    %s132 = sadd.s32 %s131, 1
    %s133 = scalar_select %p130, %s131, %s132
    %p136 = pneg %p130
    %p137 = scmp.eq.s32.totalorder %s11, 1
    %p138 = por %p136, %p137
    %p139 = scmp.ne.s32.totalorder %s131, %s134
    %p140 = scmp.eq.s32.totalorder %s11, 0
    %p141 = por %p139, %p140
    %p142 = scmp.ne.s32.totalorder %s131, %s134
    %p143 = scmp.eq.s32.totalorder %s16, 1
    %p144 = por %p142, %p143
    %p145 = scmp.ne.s32.totalorder %s134, %s135
    %p146 = scmp.eq.s32.totalorder %s16, 0
    %p147 = por %p145, %p146
    %p148 = scmp.ne.s32.totalorder %s134, %s135
    %p149 = scmp.eq.s32.totalorder %s17, 1
    %p150 = por %p148, %p149
    %p152 = scmp.ne.s32.totalorder %s135, %s151
    %p153 = scmp.eq.s32.totalorder %s17, 0
    %p154 = por %p152, %p153
    %p155 = scmp.le.s32.totalorder 1, %s11
    %p156 = scmp.lt.s32.totalorder %s11, 3
    %p157 = pnand %p155, %p156
    %p158 = pneg %p157
    // Predicated region
    $region9: #{tpu_custom_call.1} parent=5 // pred_check
      _
    $region10: #{tpu_custom_call.1} parent=5 // pred_check_branch
      %160 = sbr.rel (%p157) target = $region12
    $region11: #{tpu_custom_call.1} parent=5 // pred_region
      %s161 = ssub.s32 %s11, 1
      // Predicated region
      $region13: #{tpu_custom_call.1} parent=11 // pred_check
        %p162 = pneg %p58
      $region14: #{tpu_custom_call.1} parent=11 // pred_check_branch
        %164 = sbr.rel (%p162) target = $region16
      $region15: #{tpu_custom_call.1} parent=11 // pred_region
        _
      $region16: #{tpu_custom_call.1} parent=11 // pred_fallthru
        _
      // Predicated region
      $region17: #{tpu_custom_call.1} parent=11 // pred_check
        %p165 = pneg %p79
      $region18: #{tpu_custom_call.1} parent=11 // pred_check_branch
        %167 = sbr.rel (%p165) target = $region20
      $region19: #{tpu_custom_call.1} parent=11 // pred_region
        _
      $region20: #{tpu_custom_call.1} parent=11 // pred_fallthru
        _
      // Predicated region
      $region21: #{tpu_custom_call.1} parent=11 // pred_check
        %p168 = pneg %p100
      $region22: #{tpu_custom_call.1} parent=11 // pred_check_branch
        %170 = sbr.rel (%p168) target = $region24
      $region23: #{tpu_custom_call.1} parent=11 // pred_region
        _
      $region24: #{tpu_custom_call.1} parent=11 // pred_fallthru
        _
      // Predicated region
      $region25: #{tpu_custom_call.1} parent=11 // pred_check
        %p171 = pneg %p121
      $region26: #{tpu_custom_call.1} parent=11 // pred_check_branch
        %173 = sbr.rel (%p171) target = $region28
      $region27: #{tpu_custom_call.1} parent=11 // pred_region
        _
      $region28: #{tpu_custom_call.1} parent=11 // pred_fallthru
        _
    $region12: #{tpu_custom_call.1} parent=5 // pred_fallthru
      _
    %p174 = scmp.lt.s32.totalorder %s11, 2
    // Predicated region
    $region29: #{tpu_custom_call.1} parent=5 // pred_check
      %p175 = pneg %p174
    $region30: #{tpu_custom_call.1} parent=5 // pred_check_branch
      %177 = sbr.rel (%p175) target = $region32
    $region31: #{tpu_custom_call.1} parent=5 // pred_region
      // Predicated region
      $region33: #{tpu_custom_call.1} parent=31 // pred_check
        %p178 = pneg %p31
      $region34: #{tpu_custom_call.1} parent=31 // pred_check_branch
        %180 = sbr.rel (%p178) target = $region36
      $region35: #{tpu_custom_call.1} parent=31 // pred_region
        %p181 = scmp.lt.s32.totalorder %s11, 1
        %s182 = scalar_select %p181, %s11, 1
        %s183 = smul.addr %s182, 32
        %s184 = smul.addr %s183, 8
        %s185 = scalar_lea.vmem %s0, %s184
      $region36: #{tpu_custom_call.1} parent=31 // pred_fallthru
        _
    $region32: #{tpu_custom_call.1} parent=5 // pred_fallthru
      _
    %p186 = scmp.le.s32.totalorder 1, %s11
    %p187 = scmp.lt.s32.totalorder %s11, 3
    %p188 = pnand %p186, %p187
    %p189 = pneg %p188
    // Predicated region
    $region37: #{tpu_custom_call.1} parent=5 // pred_check
      _
    $region38: #{tpu_custom_call.1} parent=5 // pred_check_branch
      %191 = sbr.rel (%p188) target = $region40
    $region39: #{tpu_custom_call.1} parent=5 // pred_region
      %s192 = ssub.s32 %s11, 1
      %p193 = scmp.lt.s32.totalorder %s16, 1
      %s194 = scalar_select %p193, %s16, 1
      %s195 = smul.addr %s194, 32
      %s196 = smul.addr %s195, 8
      %s197 = scalar_lea.vmem %s0, %s196
      %p198 = pneg %p37
      %p199 = pneg %p34
      %p200 = pneg %p58
      %p201 = pneg %p55
      %p202 = pneg %p79
      %p203 = pneg %p76
      %p204 = pneg %p100
      %p205 = pneg %p97
      %p206 = pneg %p121
      %p207 = pneg %p118
      %p208 = pneg %p147
      %p209 = pneg %p144
      %p210 = scmp.lt.s32.totalorder %s16, 1
      %s211 = scalar_select %p210, %s16, 1
      %s212 = smul.addr %s211, 32
      %s213 = smul.addr %s212, 8
      %s214 = scalar_lea.vmem %s5, %s213
      %p215 = scmp.lt.s32.totalorder %s16, 1
      %s216 = scalar_select %p215, %s16, 1
      %s217 = smul.addr %s216, 32
      %s218 = smul.addr %s217, 8
      %s219 = scalar_lea.vmem %s0, %s218
      %p220 = scmp.lt.s32.totalorder %s16, 1
      %s221 = scalar_select %p220, %s16, 1
      %s222 = smul.addr %s221, 32
      %s223 = smul.addr %s222, 8
      %s224 = scalar_lea.vmem %s5, %s223
      %vm225 = vcmask 15360
      %226 = vst.msk [vmem:[#allocation2] sm:$0xff] %vm225, -inf
      %227 = vst.msk [vmem:[#allocation2 + $0x8] sm:$0xff] %vm225, -inf
      %228 = vst.msk [vmem:[#allocation2 + $0x10] sm:$0xff] %vm225, -inf
      %229 = vst.msk [vmem:[#allocation2 + $0x18] sm:$0xff] %vm225, -inf
      %230 = vst.msk [vmem:[#allocation2 + $0x20] sm:$0xff] %vm225, -inf
      %231 = vst.msk [vmem:[#allocation2 + $0x28] sm:$0xff] %vm225, -inf
      %s232 = scalar_lea.vmem [#allocation2], 432
      %233 = vst.msk [vmem:[%s232] sm:$0xff] %vm225, -inf
      %234 = vst.msk [vmem:[%s232 + $0x8] sm:$0xff] %vm225, -inf
      %235 = vst.msk [vmem:[%s232 + $0x10] sm:$0xff] %vm225, -inf
      %236 = vst.msk [vmem:[%s232 + $0x18] sm:$0xff] %vm225, -inf
      %237 = vst.msk [vmem:[%s232 + $0x20] sm:$0xff] %vm225, -inf
      %238 = vst.msk [vmem:[%s232 + $0x28] sm:$0xff] %vm225, -inf
      %s239 = scalar_lea.vmem [#allocation2], 48
      %240 = vst.msk [vmem:[%s239 + $0x10] sm:$0xff] %vm225, -inf
      %241 = vst.msk [vmem:[%s239 + $0x28] sm:$0xff] %vm225, -inf
      %242 = vst.msk [vmem:[%s239 + $0x40] sm:$0xff] %vm225, -inf
      %243 = vst.msk [vmem:[%s239 + $0x58] sm:$0xff] %vm225, -inf
      %244 = vst.msk [vmem:[%s239 + $0x70] sm:$0xff] %vm225, -inf
      %245 = vst.msk [vmem:[%s239 + $0x88] sm:$0xff] %vm225, -inf
      %246 = vst.msk [vmem:[%s239 + $0xa0] sm:$0xff] %vm225, -inf
      %247 = vst.msk [vmem:[%s239 + $0xb8] sm:$0xff] %vm225, -inf
      %248 = vst.msk [vmem:[%s239 + $0xd0] sm:$0xff] %vm225, -inf
      %249 = vst.msk [vmem:[%s239 + $0xe8] sm:$0xff] %vm225, -inf
      %250 = vst.msk [vmem:[%s239 + $0x100] sm:$0xff] %vm225, -inf
      %251 = vst.msk [vmem:[%s239 + $0x118] sm:$0xff] %vm225, -inf
      %252 = vst.msk [vmem:[%s239 + $0x130] sm:$0xff] %vm225, -inf
      %253 = vst.msk [vmem:[%s239 + $0x148] sm:$0xff] %vm225, -inf
      %254 = vst.msk [vmem:[%s239 + $0x160] sm:$0xff] %vm225, -inf
      %255 = vst.msk [vmem:[%s239 + $0x178] sm:$0xff] %vm225, -inf
      %v256 = vld [vmem:[%s219] sm:$0xff]
      %v257 = vld [vmem:[%s219 + $0x8] sm:$0xff]
      %v258 = vld [vmem:[%s219 + $0x10] sm:$0xff]
      %v259 = vld [vmem:[%s219 + $0x18] sm:$0xff]
      %v260 = vld [vmem:[%s219 + $0x20] sm:$0xff]
      %v261 = vld [vmem:[%s219 + $0x28] sm:$0xff]
      %v262 = vld [vmem:[%s219 + $0x30] sm:$0xff]
      %v263 = vld [vmem:[%s219 + $0x38] sm:$0xff]
      %v264 = vld [vmem:[%s219 + $0x40] sm:$0xff]
      %v265 = vld [vmem:[%s219 + $0x48] sm:$0xff]
      %v266 = vld [vmem:[%s219 + $0x50] sm:$0xff]
      %v267 = vld [vmem:[%s219 + $0x58] sm:$0xff]
      %v268 = vld [vmem:[%s219 + $0x60] sm:$0xff]
      %v269 = vld [vmem:[%s219 + $0x68] sm:$0xff]
      %v270 = vld [vmem:[%s219 + $0x70] sm:$0xff]
      %v271 = vld [vmem:[%s219 + $0x78] sm:$0xff]
      %v272 = vld [vmem:[%s219 + $0x80] sm:$0xff]
      %v273 = vld [vmem:[%s219 + $0x88] sm:$0xff]
      %v274 = vld [vmem:[%s219 + $0x90] sm:$0xff]
      %v275 = vld [vmem:[%s219 + $0x98] sm:$0xff]
      %v276 = vld [vmem:[%s219 + $0xa0] sm:$0xff]
      %v277 = vld [vmem:[%s219 + $0xa8] sm:$0xff]
      %v278 = vld [vmem:[%s219 + $0xb0] sm:$0xff]
      %v279 = vld [vmem:[%s219 + $0xb8] sm:$0xff]
      %v280 = vld [vmem:[%s219 + $0xc0] sm:$0xff]
      %v281 = vld [vmem:[%s219 + $0xc8] sm:$0xff]
      %v282 = vld [vmem:[%s219 + $0xd0] sm:$0xff]
      %v283 = vld [vmem:[%s219 + $0xd8] sm:$0xff]
      %v284 = vld [vmem:[%s219 + $0xe0] sm:$0xff]
      %v285 = vld [vmem:[%s219 + $0xe8] sm:$0xff]
      %v286 = vld [vmem:[%s219 + $0xf0] sm:$0xff]
      %v287 = vld [vmem:[%s219 + $0xf8] sm:$0xff]
      %v288 = vld [vmem:[%s1] sm:$0xf]
      %v289 = vld [vmem:[%s2] sm:$0x1]
      %v291 = vperm.slane %v289, 0
      %vm293 = vcmask 31744
      %v295 = vsel %vm293, %v256, 0
      %v298 = vsel %vm293, %v257, 0
      %v301 = vsel %vm293, %v258, 0
      %v304 = vsel %vm293, %v259, 0
      %v307 = vsel %vm293, %v260, 0
      %v310 = vsel %vm293, %v261, 0
      %v313 = vsel %vm293, %v262, 0
      %v316 = vsel %vm293, %v263, 0
      %v319 = vsel %vm293, %v264, 0
      %v322 = vsel %vm293, %v265, 0
      %v325 = vsel %vm293, %v266, 0
      %v328 = vsel %vm293, %v267, 0
      %v331 = vsel %vm293, %v268, 0
      %v334 = vsel %vm293, %v269, 0
      %v337 = vsel %vm293, %v270, 0
      %v340 = vsel %vm293, %v271, 0
      %v343 = vsel %vm293, %v272, 0
      %v346 = vsel %vm293, %v273, 0
      %v349 = vsel %vm293, %v274, 0
      %v352 = vsel %vm293, %v275, 0
      %v355 = vsel %vm293, %v276, 0
      %v358 = vsel %vm293, %v277, 0
      %v361 = vsel %vm293, %v278, 0
      %v364 = vsel %vm293, %v279, 0
      %v367 = vsel %vm293, %v280, 0
      %v370 = vsel %vm293, %v281, 0
      %v373 = vsel %vm293, %v282, 0
      %v376 = vsel %vm293, %v283, 0
      %v379 = vsel %vm293, %v284, 0
      %v382 = vsel %vm293, %v285, 0
      %v385 = vsel %vm293, %v286, 0
      %v388 = vsel %vm293, %v287, 0
      %vm390 = vcmask 1043456
      %v392 = vsel %vm390, %v288, 0
      %394 = vmatpush.msra.mxu0 0.0
      %395 = vmatpush.msra.mxu0 0.0
      %396 = vmatpush.msra.mxu0 0.0
      %397 = vmatpush.msra.mxu0 0.0
      %398 = vmatpush.msra.mxu0 0.0
      %399 = vmatpush.msra.mxu0 0.0
      %400 = vmatpush.msra.mxu0 0.0
      %401 = vmatpush.msra.mxu0 0.0
      %402 = vmatpush.msra.mxu0 0.0
      %403 = vmatpush.msra.mxu0 0.0
      %404 = vmatpush.msra.mxu0 0.0
      %405 = vmatpush.msra.mxu0 0.0
      %406 = vmatpush.msra.mxu0 0.0
      %407 = vmatpush.msra.mxu0 0.0
      %408 = vmatpush.msra.mxu0 0.0
      %409 = vmatpush.msra.mxu0 %v392
      %410 = vmatmul.f32.gmra.mxu0 %v295
      %v411 = vpop.f32.mrf.mxu0
      %v412 = vadd.f32 %v291, %v411
      %413 = vmatmul.f32.gmra.mxu0 %v298
      %v414 = vpop.f32.mrf.mxu0
      %v415 = vadd.f32 %v291, %v414
      %416 = vmatmul.f32.gmra.mxu0 %v301
      %v417 = vpop.f32.mrf.mxu0
      %v418 = vadd.f32 %v291, %v417
      %419 = vmatmul.f32.gmra.mxu0 %v304
      %v420 = vpop.f32.mrf.mxu0
      %v421 = vadd.f32 %v291, %v420
      %422 = vmatmul.f32.gmra.mxu0 %v307
      %v423 = vpop.f32.mrf.mxu0
      %v424 = vadd.f32 %v291, %v423
      %425 = vmatmul.f32.gmra.mxu0 %v310
      %v426 = vpop.f32.mrf.mxu0
      %v427 = vadd.f32 %v291, %v426
      %428 = vmatmul.f32.gmra.mxu0 %v313
      %v429 = vpop.f32.mrf.mxu0
      %v430 = vadd.f32 %v291, %v429
      %431 = vmatmul.f32.gmra.mxu0 %v316
      %v432 = vpop.f32.mrf.mxu0
      %v433 = vadd.f32 %v291, %v432
      %434 = vmatmul.f32.gmra.mxu0 %v319
      %v435 = vpop.f32.mrf.mxu0
      %v436 = vadd.f32 %v291, %v435
      %437 = vmatmul.f32.gmra.mxu0 %v322
      %v438 = vpop.f32.mrf.mxu0
      %v439 = vadd.f32 %v291, %v438
      %440 = vmatmul.f32.gmra.mxu0 %v325
      %v441 = vpop.f32.mrf.mxu0
      %v442 = vadd.f32 %v291, %v441
      %443 = vmatmul.f32.gmra.mxu0 %v328
      %v444 = vpop.f32.mrf.mxu0
      %v445 = vadd.f32 %v291, %v444
      %446 = vmatmul.f32.gmra.mxu0 %v331
      %v447 = vpop.f32.mrf.mxu0
      %v448 = vadd.f32 %v291, %v447
      %449 = vmatmul.f32.gmra.mxu0 %v334
      %v450 = vpop.f32.mrf.mxu0
      %v451 = vadd.f32 %v291, %v450
      %452 = vmatmul.f32.gmra.mxu0 %v337
      %v453 = vpop.f32.mrf.mxu0
      %v454 = vadd.f32 %v291, %v453
      %455 = vmatmul.f32.gmra.mxu0 %v340
      %v456 = vpop.f32.mrf.mxu0
      %v457 = vadd.f32 %v291, %v456
      %458 = vmatmul.f32.gmra.mxu0 %v343
      %v459 = vpop.f32.mrf.mxu0
      %v460 = vadd.f32 %v291, %v459
      %461 = vmatmul.f32.gmra.mxu0 %v346
      %v462 = vpop.f32.mrf.mxu0
      %v463 = vadd.f32 %v291, %v462
      %464 = vmatmul.f32.gmra.mxu0 %v349
      %v465 = vpop.f32.mrf.mxu0
      %v466 = vadd.f32 %v291, %v465
      %467 = vmatmul.f32.gmra.mxu0 %v352
      %v468 = vpop.f32.mrf.mxu0
      %v469 = vadd.f32 %v291, %v468
      %470 = vmatmul.f32.gmra.mxu0 %v355
      %v471 = vpop.f32.mrf.mxu0
      %v472 = vadd.f32 %v291, %v471
      %473 = vmatmul.f32.gmra.mxu0 %v358
      %v474 = vpop.f32.mrf.mxu0
      %v475 = vadd.f32 %v291, %v474
      %476 = vmatmul.f32.gmra.mxu0 %v361
      %v477 = vpop.f32.mrf.mxu0
      %v478 = vadd.f32 %v291, %v477
      %479 = vmatmul.f32.gmra.mxu0 %v364
      %v480 = vpop.f32.mrf.mxu0
      %v481 = vadd.f32 %v291, %v480
      %482 = vmatmul.f32.gmra.mxu0 %v367
      %v483 = vpop.f32.mrf.mxu0
      %v484 = vadd.f32 %v291, %v483
      %485 = vmatmul.f32.gmra.mxu0 %v370
      %v486 = vpop.f32.mrf.mxu0
      %v487 = vadd.f32 %v291, %v486
      %488 = vmatmul.f32.gmra.mxu0 %v373
      %v489 = vpop.f32.mrf.mxu0
      %v490 = vadd.f32 %v291, %v489
      %491 = vmatmul.f32.gmra.mxu0 %v376
      %v492 = vpop.f32.mrf.mxu0
      %v493 = vadd.f32 %v291, %v492
      %494 = vmatmul.f32.gmra.mxu0 %v379
      %v495 = vpop.f32.mrf.mxu0
      %v496 = vadd.f32 %v291, %v495
      %497 = vmatmul.f32.gmra.mxu0 %v382
      %v498 = vpop.f32.mrf.mxu0
      %v499 = vadd.f32 %v291, %v498
      %500 = vmatmul.f32.gmra.mxu0 %v385
      %v501 = vpop.f32.mrf.mxu0
      %v502 = vadd.f32 %v291, %v501
      %503 = vmatmul.f32.gmra.mxu0 %v388
      %v504 = vpop.f32.mrf.mxu0
      %v505 = vadd.f32 %v291, %v504
      %506 = vdwg.mxu0
      %v507 = vxor.u32 %v412, 2147483648
      %v508 = vxor.u32 %v415, 2147483648
      %v509 = vxor.u32 %v418, 2147483648
      %v510 = vxor.u32 %v421, 2147483648
      %v511 = vxor.u32 %v424, 2147483648
      %v512 = vxor.u32 %v427, 2147483648
      %v513 = vxor.u32 %v430, 2147483648
      %v514 = vxor.u32 %v433, 2147483648
      %v515 = vxor.u32 %v436, 2147483648
      %v516 = vxor.u32 %v439, 2147483648
      %v517 = vxor.u32 %v442, 2147483648
      %v518 = vxor.u32 %v445, 2147483648
      %v519 = vxor.u32 %v448, 2147483648
      %v520 = vxor.u32 %v451, 2147483648
      %v521 = vxor.u32 %v454, 2147483648
      %v522 = vxor.u32 %v457, 2147483648
      %v523 = vxor.u32 %v460, 2147483648
      %v524 = vxor.u32 %v463, 2147483648
      %v525 = vxor.u32 %v466, 2147483648
      %v526 = vxor.u32 %v469, 2147483648
      %v527 = vxor.u32 %v472, 2147483648
      %v528 = vxor.u32 %v475, 2147483648
      %v529 = vxor.u32 %v478, 2147483648
      %v530 = vxor.u32 %v481, 2147483648
      %v531 = vxor.u32 %v484, 2147483648
      %v532 = vxor.u32 %v487, 2147483648
      %v533 = vxor.u32 %v490, 2147483648
      %v534 = vxor.u32 %v493, 2147483648
      %v535 = vxor.u32 %v496, 2147483648
      %v536 = vxor.u32 %v499, 2147483648
      %v537 = vxor.u32 %v502, 2147483648
      %v538 = vxor.u32 %v505, 2147483648
      %v539 = vmul.f32 %v507, 1.442695
      %v540 = vpow.pop %v539
      %v541 = vmul.f32 %v508, 1.442695
      %v542 = vpow.pop %v541
      %v543 = vmul.f32 %v509, 1.442695
      %v544 = vpow.pop %v543
      %v545 = vmul.f32 %v510, 1.442695
      %v546 = vpow.pop %v545
      %v547 = vmul.f32 %v511, 1.442695
      %v548 = vpow.pop %v547
      %v549 = vmul.f32 %v512, 1.442695
      %v550 = vpow.pop %v549
      %v551 = vmul.f32 %v513, 1.442695
      %v552 = vpow.pop %v551
      %v553 = vmul.f32 %v514, 1.442695
      %v554 = vpow.pop %v553
      %v555 = vmul.f32 %v515, 1.442695
      %v556 = vpow.pop %v555
      %v557 = vmul.f32 %v516, 1.442695
      %v558 = vpow.pop %v557
      %v559 = vmul.f32 %v517, 1.442695
      %v560 = vpow.pop %v559
      %v561 = vmul.f32 %v518, 1.442695
      %v562 = vpow.pop %v561
      %v563 = vmul.f32 %v519, 1.442695
      %v564 = vpow.pop %v563
      %v565 = vmul.f32 %v520, 1.442695
      %v566 = vpow.pop %v565
      %v567 = vmul.f32 %v521, 1.442695
      %v568 = vpow.pop %v567
      %v569 = vmul.f32 %v522, 1.442695
      %v570 = vpow.pop %v569
      %v571 = vmul.f32 %v523, 1.442695
      %v572 = vpow.pop %v571
      %v573 = vmul.f32 %v524, 1.442695
      %v574 = vpow.pop %v573
      %v575 = vmul.f32 %v525, 1.442695
      %v576 = vpow.pop %v575
      %v577 = vmul.f32 %v526, 1.442695
      %v578 = vpow.pop %v577
      %v579 = vmul.f32 %v527, 1.442695
      %v580 = vpow.pop %v579
      %v581 = vmul.f32 %v528, 1.442695
      %v582 = vpow.pop %v581
      %v583 = vmul.f32 %v529, 1.442695
      %v584 = vpow.pop %v583
      %v585 = vmul.f32 %v530, 1.442695
      %v586 = vpow.pop %v585
      %v587 = vmul.f32 %v531, 1.442695
      %v588 = vpow.pop %v587
      %v589 = vmul.f32 %v532, 1.442695
      %v590 = vpow.pop %v589
      %v591 = vmul.f32 %v533, 1.442695
      %v592 = vpow.pop %v591
      %v593 = vmul.f32 %v534, 1.442695
      %v594 = vpow.pop %v593
      %v595 = vmul.f32 %v535, 1.442695
      %v596 = vpow.pop %v595
      %v597 = vmul.f32 %v536, 1.442695
      %v598 = vpow.pop %v597
      %v599 = vmul.f32 %v537, 1.442695
      %v600 = vpow.pop %v599
      %v601 = vmul.f32 %v538, 1.442695
      %v602 = vpow.pop %v601
      %v603 = vadd.f32 %v540, 1.0
      %v604 = vadd.f32 %v542, 1.0
      %v605 = vadd.f32 %v544, 1.0
      %v606 = vadd.f32 %v546, 1.0
      %v607 = vadd.f32 %v548, 1.0
      %v608 = vadd.f32 %v550, 1.0
      %v609 = vadd.f32 %v552, 1.0
      %v610 = vadd.f32 %v554, 1.0
      %v611 = vadd.f32 %v556, 1.0
      %v612 = vadd.f32 %v558, 1.0
      %v613 = vadd.f32 %v560, 1.0
      %v614 = vadd.f32 %v562, 1.0
      %v615 = vadd.f32 %v564, 1.0
      %v616 = vadd.f32 %v566, 1.0
      %v617 = vadd.f32 %v568, 1.0
      %v618 = vadd.f32 %v570, 1.0
      %v619 = vadd.f32 %v572, 1.0
      %v620 = vadd.f32 %v574, 1.0
      %v621 = vadd.f32 %v576, 1.0
      %v622 = vadd.f32 %v578, 1.0
      %v623 = vadd.f32 %v580, 1.0
      %v624 = vadd.f32 %v582, 1.0
      %v625 = vadd.f32 %v584, 1.0
      %v626 = vadd.f32 %v586, 1.0
      %v627 = vadd.f32 %v588, 1.0
      %v628 = vadd.f32 %v590, 1.0
      %v629 = vadd.f32 %v592, 1.0
      %v630 = vadd.f32 %v594, 1.0
      %v631 = vadd.f32 %v596, 1.0
      %v632 = vadd.f32 %v598, 1.0
      %v633 = vadd.f32 %v600, 1.0
      %v634 = vadd.f32 %v602, 1.0
      %v635 = vrcp.pop %v603
      %v636 = vmul.f32 %v603, %v635
      %v637 = vsub.f32 1.0, %v636
      %v638 = vmul.f32 %v635, %v637
      %v639 = vadd.f32 %v635, %v638
      %vm640 = vweird.f32 %v603
      %vm641 = vweird.f32 %v635
      %vm642 = vmor %vm640, %vm641
      %v643 = vsel %vm642, %v635, %v639
      %v644 = vand.u32 2147483647, %v603
      %vm645 = vcmp.eq.f32.partialorder %v644, 8.507059e+37
      %v646 = vand.u32 %v603, 2147483648
      %v647 = vor.u32 1.1754944e-38, %v646
      %v648 = vsel %vm645, %v647, %v643
      %v649 = vmul.f32 1.0, %v648
      %v650 = vrcp.pop %v604
      %v651 = vmul.f32 %v604, %v650
      %v652 = vsub.f32 1.0, %v651
      %v653 = vmul.f32 %v650, %v652
      %v654 = vadd.f32 %v650, %v653
      %vm655 = vweird.f32 %v604
      %vm656 = vweird.f32 %v650
      %vm657 = vmor %vm655, %vm656
      %v658 = vsel %vm657, %v650, %v654
      %v659 = vand.u32 2147483647, %v604
      %vm660 = vcmp.eq.f32.partialorder %v659, 8.507059e+37
      %v661 = vand.u32 %v604, 2147483648
      %v662 = vor.u32 1.1754944e-38, %v661
      %v663 = vsel %vm660, %v662, %v658
      %v664 = vmul.f32 1.0, %v663
      %v665 = vrcp.pop %v605
      %v666 = vmul.f32 %v605, %v665
      %v667 = vsub.f32 1.0, %v666
      %v668 = vmul.f32 %v665, %v667
      %v669 = vadd.f32 %v665, %v668
      %vm670 = vweird.f32 %v605
      %vm671 = vweird.f32 %v665
      %vm672 = vmor %vm670, %vm671
      %v673 = vsel %vm672, %v665, %v669
      %v674 = vand.u32 2147483647, %v605
      %vm675 = vcmp.eq.f32.partialorder %v674, 8.507059e+37
      %v676 = vand.u32 %v605, 2147483648
      %v677 = vor.u32 1.1754944e-38, %v676
      %v678 = vsel %vm675, %v677, %v673
      %v679 = vmul.f32 1.0, %v678
      %v680 = vrcp.pop %v606
      %v681 = vmul.f32 %v606, %v680
      %v682 = vsub.f32 1.0, %v681
      %v683 = vmul.f32 %v680, %v682
      %v684 = vadd.f32 %v680, %v683
      %vm685 = vweird.f32 %v606
      %vm686 = vweird.f32 %v680
      %vm687 = vmor %vm685, %vm686
      %v688 = vsel %vm687, %v680, %v684
      %v689 = vand.u32 2147483647, %v606
      %vm690 = vcmp.eq.f32.partialorder %v689, 8.507059e+37
      %v691 = vand.u32 %v606, 2147483648
      %v692 = vor.u32 1.1754944e-38, %v691
      %v693 = vsel %vm690, %v692, %v688
      %v694 = vmul.f32 1.0, %v693
      %v695 = vrcp.pop %v607
      %v696 = vmul.f32 %v607, %v695
      %v697 = vsub.f32 1.0, %v696
      %v698 = vmul.f32 %v695, %v697
      %v699 = vadd.f32 %v695, %v698
      %vm700 = vweird.f32 %v607
      %vm701 = vweird.f32 %v695
      %vm702 = vmor %vm700, %vm701
      %v703 = vsel %vm702, %v695, %v699
      %v704 = vand.u32 2147483647, %v607
      %vm705 = vcmp.eq.f32.partialorder %v704, 8.507059e+37
      %v706 = vand.u32 %v607, 2147483648
      %v707 = vor.u32 1.1754944e-38, %v706
      %v708 = vsel %vm705, %v707, %v703
      %v709 = vmul.f32 1.0, %v708
      %v710 = vrcp.pop %v608
      %v711 = vmul.f32 %v608, %v710
      %v712 = vsub.f32 1.0, %v711
      %v713 = vmul.f32 %v710, %v712
      %v714 = vadd.f32 %v710, %v713
      %vm715 = vweird.f32 %v608
      %vm716 = vweird.f32 %v710
      %vm717 = vmor %vm715, %vm716
      %v718 = vsel %vm717, %v710, %v714
      %v719 = vand.u32 2147483647, %v608
      %vm720 = vcmp.eq.f32.partialorder %v719, 8.507059e+37
      %v721 = vand.u32 %v608, 2147483648
      %v722 = vor.u32 1.1754944e-38, %v721
      %v723 = vsel %vm720, %v722, %v718
      %v724 = vmul.f32 1.0, %v723
      %v725 = vrcp.pop %v609
      %v726 = vmul.f32 %v609, %v725
      %v727 = vsub.f32 1.0, %v726
      %v728 = vmul.f32 %v725, %v727
      %v729 = vadd.f32 %v725, %v728
      %vm730 = vweird.f32 %v609
      %vm731 = vweird.f32 %v725
      %vm732 = vmor %vm730, %vm731
      %v733 = vsel %vm732, %v725, %v729
      %v734 = vand.u32 2147483647, %v609
      %vm735 = vcmp.eq.f32.partialorder %v734, 8.507059e+37
      %v736 = vand.u32 %v609, 2147483648
      %v737 = vor.u32 1.1754944e-38, %v736
      %v738 = vsel %vm735, %v737, %v733
      %v739 = vmul.f32 1.0, %v738
      %v740 = vrcp.pop %v610
      %v741 = vmul.f32 %v610, %v740
      %v742 = vsub.f32 1.0, %v741
      %v743 = vmul.f32 %v740, %v742
      %v744 = vadd.f32 %v740, %v743
      %vm745 = vweird.f32 %v610
      %vm746 = vweird.f32 %v740
      %vm747 = vmor %vm745, %vm746
      %v748 = vsel %vm747, %v740, %v744
      %v749 = vand.u32 2147483647, %v610
      %vm750 = vcmp.eq.f32.partialorder %v749, 8.507059e+37
      %v751 = vand.u32 %v610, 2147483648
      %v752 = vor.u32 1.1754944e-38, %v751
      %v753 = vsel %vm750, %v752, %v748
      %v754 = vmul.f32 1.0, %v753
      %v755 = vrcp.pop %v611
      %v756 = vmul.f32 %v611, %v755
      %v757 = vsub.f32 1.0, %v756
      %v758 = vmul.f32 %v755, %v757
      %v759 = vadd.f32 %v755, %v758
      %vm760 = vweird.f32 %v611
      %vm761 = vweird.f32 %v755
      %vm762 = vmor %vm760, %vm761
      %v763 = vsel %vm762, %v755, %v759
      %v764 = vand.u32 2147483647, %v611
      %vm765 = vcmp.eq.f32.partialorder %v764, 8.507059e+37
      %v766 = vand.u32 %v611, 2147483648
      %v767 = vor.u32 1.1754944e-38, %v766
      %v768 = vsel %vm765, %v767, %v763
      %v769 = vmul.f32 1.0, %v768
      %v770 = vrcp.pop %v612
      %v771 = vmul.f32 %v612, %v770
      %v772 = vsub.f32 1.0, %v771
      %v773 = vmul.f32 %v770, %v772
      %v774 = vadd.f32 %v770, %v773
      %vm775 = vweird.f32 %v612
      %vm776 = vweird.f32 %v770
      %vm777 = vmor %vm775, %vm776
      %v778 = vsel %vm777, %v770, %v774
      %v779 = vand.u32 2147483647, %v612
      %vm780 = vcmp.eq.f32.partialorder %v779, 8.507059e+37
      %v781 = vand.u32 %v612, 2147483648
      %v782 = vor.u32 1.1754944e-38, %v781
      %v783 = vsel %vm780, %v782, %v778
      %v784 = vmul.f32 1.0, %v783
      %v785 = vrcp.pop %v613
      %v786 = vmul.f32 %v613, %v785
      %v787 = vsub.f32 1.0, %v786
      %v788 = vmul.f32 %v785, %v787
      %v789 = vadd.f32 %v785, %v788
      %vm790 = vweird.f32 %v613
      %vm791 = vweird.f32 %v785
      %vm792 = vmor %vm790, %vm791
      %v793 = vsel %vm792, %v785, %v789
      %v794 = vand.u32 2147483647, %v613
      %vm795 = vcmp.eq.f32.partialorder %v794, 8.507059e+37
      %v796 = vand.u32 %v613, 2147483648
      %v797 = vor.u32 1.1754944e-38, %v796
      %v798 = vsel %vm795, %v797, %v793
      %v799 = vmul.f32 1.0, %v798
      %v800 = vrcp.pop %v614
      %v801 = vmul.f32 %v614, %v800
      %v802 = vsub.f32 1.0, %v801
      %v803 = vmul.f32 %v800, %v802
      %v804 = vadd.f32 %v800, %v803
      %vm805 = vweird.f32 %v614
      %vm806 = vweird.f32 %v800
      %vm807 = vmor %vm805, %vm806
      %v808 = vsel %vm807, %v800, %v804
      %v809 = vand.u32 2147483647, %v614
      %vm810 = vcmp.eq.f32.partialorder %v809, 8.507059e+37
      %v811 = vand.u32 %v614, 2147483648
      %v812 = vor.u32 1.1754944e-38, %v811
      %v813 = vsel %vm810, %v812, %v808
      %v814 = vmul.f32 1.0, %v813
      %v815 = vrcp.pop %v615
      %v816 = vmul.f32 %v615, %v815
      %v817 = vsub.f32 1.0, %v816
      %v818 = vmul.f32 %v815, %v817
      %v819 = vadd.f32 %v815, %v818
      %vm820 = vweird.f32 %v615
      %vm821 = vweird.f32 %v815
      %vm822 = vmor %vm820, %vm821
      %v823 = vsel %vm822, %v815, %v819
      %v824 = vand.u32 2147483647, %v615
      %vm825 = vcmp.eq.f32.partialorder %v824, 8.507059e+37
      %v826 = vand.u32 %v615, 2147483648
      %v827 = vor.u32 1.1754944e-38, %v826
      %v828 = vsel %vm825, %v827, %v823
      %v829 = vmul.f32 1.0, %v828
      %v830 = vrcp.pop %v616
      %v831 = vmul.f32 %v616, %v830
      %v832 = vsub.f32 1.0, %v831
      %v833 = vmul.f32 %v830, %v832
      %v834 = vadd.f32 %v830, %v833
      %vm835 = vweird.f32 %v616
      %vm836 = vweird.f32 %v830
      %vm837 = vmor %vm835, %vm836
      %v838 = vsel %vm837, %v830, %v834
      %v839 = vand.u32 2147483647, %v616
      %vm840 = vcmp.eq.f32.partialorder %v839, 8.507059e+37
      %v841 = vand.u32 %v616, 2147483648
      %v842 = vor.u32 1.1754944e-38, %v841
      %v843 = vsel %vm840, %v842, %v838
      %v844 = vmul.f32 1.0, %v843
      %v845 = vrcp.pop %v617
      %v846 = vmul.f32 %v617, %v845
      %v847 = vsub.f32 1.0, %v846
      %v848 = vmul.f32 %v845, %v847
      %v849 = vadd.f32 %v845, %v848
      %vm850 = vweird.f32 %v617
      %vm851 = vweird.f32 %v845
      %vm852 = vmor %vm850, %vm851
      %v853 = vsel %vm852, %v845, %v849
      %v854 = vand.u32 2147483647, %v617
      %vm855 = vcmp.eq.f32.partialorder %v854, 8.507059e+37
      %v856 = vand.u32 %v617, 2147483648
      %v857 = vor.u32 1.1754944e-38, %v856
      %v858 = vsel %vm855, %v857, %v853
      %v859 = vmul.f32 1.0, %v858
      %v860 = vrcp.pop %v618
      %v861 = vmul.f32 %v618, %v860
      %v862 = vsub.f32 1.0, %v861
      %v863 = vmul.f32 %v860, %v862
      %v864 = vadd.f32 %v860, %v863
      %vm865 = vweird.f32 %v618
      %vm866 = vweird.f32 %v860
      %vm867 = vmor %vm865, %vm866
      %v868 = vsel %vm867, %v860, %v864
      %v869 = vand.u32 2147483647, %v618
      %vm870 = vcmp.eq.f32.partialorder %v869, 8.507059e+37
      %v871 = vand.u32 %v618, 2147483648
      %v872 = vor.u32 1.1754944e-38, %v871
      %v873 = vsel %vm870, %v872, %v868
      %v874 = vmul.f32 1.0, %v873
      %v875 = vrcp.pop %v619
      %v876 = vmul.f32 %v619, %v875
      %v877 = vsub.f32 1.0, %v876
      %v878 = vmul.f32 %v875, %v877
      %v879 = vadd.f32 %v875, %v878
      %vm880 = vweird.f32 %v619
      %vm881 = vweird.f32 %v875
      %vm882 = vmor %vm880, %vm881
      %v883 = vsel %vm882, %v875, %v879
      %v884 = vand.u32 2147483647, %v619
      %vm885 = vcmp.eq.f32.partialorder %v884, 8.507059e+37
      %v886 = vand.u32 %v619, 2147483648
      %v887 = vor.u32 1.1754944e-38, %v886
      %v888 = vsel %vm885, %v887, %v883
      %v889 = vmul.f32 1.0, %v888
      %v890 = vrcp.pop %v620
      %v891 = vmul.f32 %v620, %v890
      %v892 = vsub.f32 1.0, %v891
      %v893 = vmul.f32 %v890, %v892
      %v894 = vadd.f32 %v890, %v893
      %vm895 = vweird.f32 %v620
      %vm896 = vweird.f32 %v890
      %vm897 = vmor %vm895, %vm896
      %v898 = vsel %vm897, %v890, %v894
      %v899 = vand.u32 2147483647, %v620
      %vm900 = vcmp.eq.f32.partialorder %v899, 8.507059e+37
      %v901 = vand.u32 %v620, 2147483648
      %v902 = vor.u32 1.1754944e-38, %v901
      %v903 = vsel %vm900, %v902, %v898
      %v904 = vmul.f32 1.0, %v903
      %v905 = vrcp.pop %v621
      %v906 = vmul.f32 %v621, %v905
      %v907 = vsub.f32 1.0, %v906
      %v908 = vmul.f32 %v905, %v907
      %v909 = vadd.f32 %v905, %v908
      %vm910 = vweird.f32 %v621
      %vm911 = vweird.f32 %v905
      %vm912 = vmor %vm910, %vm911
      %v913 = vsel %vm912, %v905, %v909
      %v914 = vand.u32 2147483647, %v621
      %vm915 = vcmp.eq.f32.partialorder %v914, 8.507059e+37
      %v916 = vand.u32 %v621, 2147483648
      %v917 = vor.u32 1.1754944e-38, %v916
      %v918 = vsel %vm915, %v917, %v913
      %v919 = vmul.f32 1.0, %v918
      %v920 = vrcp.pop %v622
      %v921 = vmul.f32 %v622, %v920
      %v922 = vsub.f32 1.0, %v921
      %v923 = vmul.f32 %v920, %v922
      %v924 = vadd.f32 %v920, %v923
      %vm925 = vweird.f32 %v622
      %vm926 = vweird.f32 %v920
      %vm927 = vmor %vm925, %vm926
      %v928 = vsel %vm927, %v920, %v924
      %v929 = vand.u32 2147483647, %v622
      %vm930 = vcmp.eq.f32.partialorder %v929, 8.507059e+37
      %v931 = vand.u32 %v622, 2147483648
      %v932 = vor.u32 1.1754944e-38, %v931
      %v933 = vsel %vm930, %v932, %v928
      %v934 = vmul.f32 1.0, %v933
      %v935 = vrcp.pop %v623
      %v936 = vmul.f32 %v623, %v935
      %v937 = vsub.f32 1.0, %v936
      %v938 = vmul.f32 %v935, %v937
      %v939 = vadd.f32 %v935, %v938
      %vm940 = vweird.f32 %v623
      %vm941 = vweird.f32 %v935
      %vm942 = vmor %vm940, %vm941
      %v943 = vsel %vm942, %v935, %v939
      %v944 = vand.u32 2147483647, %v623
      %vm945 = vcmp.eq.f32.partialorder %v944, 8.507059e+37
      %v946 = vand.u32 %v623, 2147483648
      %v947 = vor.u32 1.1754944e-38, %v946
      %v948 = vsel %vm945, %v947, %v943
      %v949 = vmul.f32 1.0, %v948
      %v950 = vrcp.pop %v624
      %v951 = vmul.f32 %v624, %v950
      %v952 = vsub.f32 1.0, %v951
      %v953 = vmul.f32 %v950, %v952
      %v954 = vadd.f32 %v950, %v953
      %vm955 = vweird.f32 %v624
      %vm956 = vweird.f32 %v950
      %vm957 = vmor %vm955, %vm956
      %v958 = vsel %vm957, %v950, %v954
      %v959 = vand.u32 2147483647, %v624
      %vm960 = vcmp.eq.f32.partialorder %v959, 8.507059e+37
      %v961 = vand.u32 %v624, 2147483648
      %v962 = vor.u32 1.1754944e-38, %v961
      %v963 = vsel %vm960, %v962, %v958
      %v964 = vmul.f32 1.0, %v963
      %v965 = vrcp.pop %v625
      %v966 = vmul.f32 %v625, %v965
      %v967 = vsub.f32 1.0, %v966
      %v968 = vmul.f32 %v965, %v967
      %v969 = vadd.f32 %v965, %v968
      %vm970 = vweird.f32 %v625
      %vm971 = vweird.f32 %v965
      %vm972 = vmor %vm970, %vm971
      %v973 = vsel %vm972, %v965, %v969
      %v974 = vand.u32 2147483647, %v625
      %vm975 = vcmp.eq.f32.partialorder %v974, 8.507059e+37
      %v976 = vand.u32 %v625, 2147483648
      %v977 = vor.u32 1.1754944e-38, %v976
      %v978 = vsel %vm975, %v977, %v973
      %v979 = vmul.f32 1.0, %v978
      %v980 = vrcp.pop %v626
      %v981 = vmul.f32 %v626, %v980
      %v982 = vsub.f32 1.0, %v981
      %v983 = vmul.f32 %v980, %v982
      %v984 = vadd.f32 %v980, %v983
      %vm985 = vweird.f32 %v626
      %vm986 = vweird.f32 %v980
      %vm987 = vmor %vm985, %vm986
      %v988 = vsel %vm987, %v980, %v984
      %v989 = vand.u32 2147483647, %v626
      %vm990 = vcmp.eq.f32.partialorder %v989, 8.507059e+37
      %v991 = vand.u32 %v626, 2147483648
      %v992 = vor.u32 1.1754944e-38, %v991
      %v993 = vsel %vm990, %v992, %v988
      %v994 = vmul.f32 1.0, %v993
      %v995 = vrcp.pop %v627
      %v996 = vmul.f32 %v627, %v995
      %v997 = vsub.f32 1.0, %v996
      %v998 = vmul.f32 %v995, %v997
      %v999 = vadd.f32 %v995, %v998
      %vm1000 = vweird.f32 %v627
      %vm1001 = vweird.f32 %v995
      %vm1002 = vmor %vm1000, %vm1001
      %v1003 = vsel %vm1002, %v995, %v999
      %v1004 = vand.u32 2147483647, %v627
      %vm1005 = vcmp.eq.f32.partialorder %v1004, 8.507059e+37
      %v1006 = vand.u32 %v627, 2147483648
      %v1007 = vor.u32 1.1754944e-38, %v1006
      %v1008 = vsel %vm1005, %v1007, %v1003
      %v1009 = vmul.f32 1.0, %v1008
      %v1010 = vrcp.pop %v628
      %v1011 = vmul.f32 %v628, %v1010
      %v1012 = vsub.f32 1.0, %v1011
      %v1013 = vmul.f32 %v1010, %v1012
      %v1014 = vadd.f32 %v1010, %v1013
      %vm1015 = vweird.f32 %v628
      %vm1016 = vweird.f32 %v1010
      %vm1017 = vmor %vm1015, %vm1016
      %v1018 = vsel %vm1017, %v1010, %v1014
      %v1019 = vand.u32 2147483647, %v628
      %vm1020 = vcmp.eq.f32.partialorder %v1019, 8.507059e+37
      %v1021 = vand.u32 %v628, 2147483648
      %v1022 = vor.u32 1.1754944e-38, %v1021
      %v1023 = vsel %vm1020, %v1022, %v1018
      %v1024 = vmul.f32 1.0, %v1023
      %v1025 = vrcp.pop %v629
      %v1026 = vmul.f32 %v629, %v1025
      %v1027 = vsub.f32 1.0, %v1026
      %v1028 = vmul.f32 %v1025, %v1027
      %v1029 = vadd.f32 %v1025, %v1028
      %vm1030 = vweird.f32 %v629
      %vm1031 = vweird.f32 %v1025
      %vm1032 = vmor %vm1030, %vm1031
      %v1033 = vsel %vm1032, %v1025, %v1029
      %v1034 = vand.u32 2147483647, %v629
      %vm1035 = vcmp.eq.f32.partialorder %v1034, 8.507059e+37
      %v1036 = vand.u32 %v629, 2147483648
      %v1037 = vor.u32 1.1754944e-38, %v1036
      %v1038 = vsel %vm1035, %v1037, %v1033
      %v1039 = vmul.f32 1.0, %v1038
      %v1040 = vrcp.pop %v630
      %v1041 = vmul.f32 %v630, %v1040
      %v1042 = vsub.f32 1.0, %v1041
      %v1043 = vmul.f32 %v1040, %v1042
      %v1044 = vadd.f32 %v1040, %v1043
      %vm1045 = vweird.f32 %v630
      %vm1046 = vweird.f32 %v1040
      %vm1047 = vmor %vm1045, %vm1046
      %v1048 = vsel %vm1047, %v1040, %v1044
      %v1049 = vand.u32 2147483647, %v630
      %vm1050 = vcmp.eq.f32.partialorder %v1049, 8.507059e+37
      %v1051 = vand.u32 %v630, 2147483648
      %v1052 = vor.u32 1.1754944e-38, %v1051
      %v1053 = vsel %vm1050, %v1052, %v1048
      %v1054 = vmul.f32 1.0, %v1053
      %v1055 = vrcp.pop %v631
      %v1056 = vmul.f32 %v631, %v1055
      %v1057 = vsub.f32 1.0, %v1056
      %v1058 = vmul.f32 %v1055, %v1057
      %v1059 = vadd.f32 %v1055, %v1058
      %vm1060 = vweird.f32 %v631
      %vm1061 = vweird.f32 %v1055
      %vm1062 = vmor %vm1060, %vm1061
      %v1063 = vsel %vm1062, %v1055, %v1059
      %v1064 = vand.u32 2147483647, %v631
      %vm1065 = vcmp.eq.f32.partialorder %v1064, 8.507059e+37
      %v1066 = vand.u32 %v631, 2147483648
      %v1067 = vor.u32 1.1754944e-38, %v1066
      %v1068 = vsel %vm1065, %v1067, %v1063
      %v1069 = vmul.f32 1.0, %v1068
      %v1070 = vrcp.pop %v632
      %v1071 = vmul.f32 %v632, %v1070
      %v1072 = vsub.f32 1.0, %v1071
      %v1073 = vmul.f32 %v1070, %v1072
      %v1074 = vadd.f32 %v1070, %v1073
      %vm1075 = vweird.f32 %v632
      %vm1076 = vweird.f32 %v1070
      %vm1077 = vmor %vm1075, %vm1076
      %v1078 = vsel %vm1077, %v1070, %v1074
      %v1079 = vand.u32 2147483647, %v632
      %vm1080 = vcmp.eq.f32.partialorder %v1079, 8.507059e+37
      %v1081 = vand.u32 %v632, 2147483648
      %v1082 = vor.u32 1.1754944e-38, %v1081
      %v1083 = vsel %vm1080, %v1082, %v1078
      %v1084 = vmul.f32 1.0, %v1083
      %v1085 = vrcp.pop %v633
      %v1086 = vmul.f32 %v633, %v1085
      %v1087 = vsub.f32 1.0, %v1086
      %v1088 = vmul.f32 %v1085, %v1087
      %v1089 = vadd.f32 %v1085, %v1088
      %vm1090 = vweird.f32 %v633
      %vm1091 = vweird.f32 %v1085
      %vm1092 = vmor %vm1090, %vm1091
      %v1093 = vsel %vm1092, %v1085, %v1089
      %v1094 = vand.u32 2147483647, %v633
      %vm1095 = vcmp.eq.f32.partialorder %v1094, 8.507059e+37
      %v1096 = vand.u32 %v633, 2147483648
      %v1097 = vor.u32 1.1754944e-38, %v1096
      %v1098 = vsel %vm1095, %v1097, %v1093
      %v1099 = vmul.f32 1.0, %v1098
      %v1100 = vrcp.pop %v634
      %v1101 = vmul.f32 %v634, %v1100
      %v1102 = vsub.f32 1.0, %v1101
      %v1103 = vmul.f32 %v1100, %v1102
      %v1104 = vadd.f32 %v1100, %v1103
      %vm1105 = vweird.f32 %v634
      %vm1106 = vweird.f32 %v1100
      %vm1107 = vmor %vm1105, %vm1106
      %v1108 = vsel %vm1107, %v1100, %v1104
      %v1109 = vand.u32 2147483647, %v634
      %vm1110 = vcmp.eq.f32.partialorder %v1109, 8.507059e+37
      %v1111 = vand.u32 %v634, 2147483648
      %v1112 = vor.u32 1.1754944e-38, %v1111
      %v1113 = vsel %vm1110, %v1112, %v1108
      %v1114 = vmul.f32 1.0, %v1113
      %v1115 = vmul.f32 %v412, %v649
      %v1116 = vmul.f32 %v415, %v664
      %v1117 = vmul.f32 %v418, %v679
      %v1118 = vmul.f32 %v421, %v694
      %v1119 = vmul.f32 %v424, %v709
      %v1120 = vmul.f32 %v427, %v724
      %v1121 = vmul.f32 %v430, %v739
      %v1122 = vmul.f32 %v433, %v754
      %v1123 = vmul.f32 %v436, %v769
      %v1124 = vmul.f32 %v439, %v784
      %v1125 = vmul.f32 %v442, %v799
      %v1126 = vmul.f32 %v445, %v814
      %v1127 = vmul.f32 %v448, %v829
      %v1128 = vmul.f32 %v451, %v844
      %v1129 = vmul.f32 %v454, %v859
      %v1130 = vmul.f32 %v457, %v874
      %v1131 = vmul.f32 %v460, %v889
      %v1132 = vmul.f32 %v463, %v904
      %v1133 = vmul.f32 %v466, %v919
      %v1134 = vmul.f32 %v469, %v934
      %v1135 = vmul.f32 %v472, %v949
      %v1136 = vmul.f32 %v475, %v964
      %v1137 = vmul.f32 %v478, %v979
      %v1138 = vmul.f32 %v481, %v994
      %v1139 = vmul.f32 %v484, %v1009
      %v1140 = vmul.f32 %v487, %v1024
      %v1141 = vmul.f32 %v490, %v1039
      %v1142 = vmul.f32 %v493, %v1054
      %v1143 = vmul.f32 %v496, %v1069
      %v1144 = vmul.f32 %v499, %v1084
      %v1145 = vmul.f32 %v502, %v1099
      %v1146 = vmul.f32 %v505, %v1114
      %1147 = vst.msk [vmem:[%s239] sm:$0xff] %vm225, %v1115
      %1148 = vst.msk [vmem:[%s239 + $0x8] sm:$0xff] %vm225, %v1116
      %1149 = vst.msk [vmem:[%s239 + $0x18] sm:$0xff] %vm225, %v1117
      %1150 = vst.msk [vmem:[%s239 + $0x20] sm:$0xff] %vm225, %v1118
      %1151 = vst.msk [vmem:[%s239 + $0x30] sm:$0xff] %vm225, %v1119
      %1152 = vst.msk [vmem:[%s239 + $0x38] sm:$0xff] %vm225, %v1120
      %1153 = vst.msk [vmem:[%s239 + $0x48] sm:$0xff] %vm225, %v1121
      %1154 = vst.msk [vmem:[%s239 + $0x50] sm:$0xff] %vm225, %v1122
      %1155 = vst.msk [vmem:[%s239 + $0x60] sm:$0xff] %vm225, %v1123
      %1156 = vst.msk [vmem:[%s239 + $0x68] sm:$0xff] %vm225, %v1124
      %1157 = vst.msk [vmem:[%s239 + $0x78] sm:$0xff] %vm225, %v1125
      %1158 = vst.msk [vmem:[%s239 + $0x80] sm:$0xff] %vm225, %v1126
      %1159 = vst.msk [vmem:[%s239 + $0x90] sm:$0xff] %vm225, %v1127
      %1160 = vst.msk [vmem:[%s239 + $0x98] sm:$0xff] %vm225, %v1128
      %1161 = vst.msk [vmem:[%s239 + $0xa8] sm:$0xff] %vm225, %v1129
      %1162 = vst.msk [vmem:[%s239 + $0xb0] sm:$0xff] %vm225, %v1130
      %1163 = vst.msk [vmem:[%s239 + $0xc0] sm:$0xff] %vm225, %v1131
      %1164 = vst.msk [vmem:[%s239 + $0xc8] sm:$0xff] %vm225, %v1132
      %1165 = vst.msk [vmem:[%s239 + $0xd8] sm:$0xff] %vm225, %v1133
      %1166 = vst.msk [vmem:[%s239 + $0xe0] sm:$0xff] %vm225, %v1134
      %1167 = vst.msk [vmem:[%s239 + $0xf0] sm:$0xff] %vm225, %v1135
      %1168 = vst.msk [vmem:[%s239 + $0xf8] sm:$0xff] %vm225, %v1136
      %1169 = vst.msk [vmem:[%s239 + $0x108] sm:$0xff] %vm225, %v1137
      %1170 = vst.msk [vmem:[%s239 + $0x110] sm:$0xff] %vm225, %v1138
      %1171 = vst.msk [vmem:[%s239 + $0x120] sm:$0xff] %vm225, %v1139
      %1172 = vst.msk [vmem:[%s239 + $0x128] sm:$0xff] %vm225, %v1140
      %1173 = vst.msk [vmem:[%s239 + $0x138] sm:$0xff] %vm225, %v1141
      %1174 = vst.msk [vmem:[%s239 + $0x140] sm:$0xff] %vm225, %v1142
      %1175 = vst.msk [vmem:[%s239 + $0x150] sm:$0xff] %vm225, %v1143
      %1176 = vst.msk [vmem:[%s239 + $0x158] sm:$0xff] %vm225, %v1144
      %1177 = vst.msk [vmem:[%s239 + $0x168] sm:$0xff] %vm225, %v1145
      %1178 = vst.msk [vmem:[%s239 + $0x170] sm:$0xff] %vm225, %v1146
      %v1179 = vlaneseq
      %v1180 = vshrl.u32 %v1179, 7
      %v1181 = vadd.s32 %v1180, 8
      %v1182 = vadd.s32 %v1180, 16
      %vm1183 = vcmp.lt.s32.totalorder %v1180, 16
      %vm1184 = vcmp.lt.s32.totalorder %v1181, 16
      %vm1185 = vcmp.lt.s32.totalorder %v1182, 16
      %v1186 = vld [vmem:[%s239] sm:$0xff]
      %v1187 = vld [vmem:[%s239 + $0x8] sm:$0xff]
      %v1188 = vld [vmem:[%s239 + $0x10] sm:$0xff]
      %v1189 = vld [vmem:[%s239 + $0x18] sm:$0xff]
      %v1190 = vld [vmem:[%s239 + $0x20] sm:$0xff]
      %v1191 = vld [vmem:[%s239 + $0x28] sm:$0xff]
      %v1192 = vld [vmem:[%s239 + $0x30] sm:$0xff]
      %v1193 = vld [vmem:[%s239 + $0x38] sm:$0xff]
      %v1194 = vld [vmem:[%s239 + $0x40] sm:$0xff]
      %v1195 = vld [vmem:[%s239 + $0x48] sm:$0xff]
      %v1196 = vld [vmem:[%s239 + $0x50] sm:$0xff]
      %v1197 = vld [vmem:[%s239 + $0x58] sm:$0xff]
      %v1198 = vld [vmem:[%s239 + $0x60] sm:$0xff]
      %v1199 = vld [vmem:[%s239 + $0x68] sm:$0xff]
      %v1200 = vld [vmem:[%s239 + $0x70] sm:$0xff]
      %v1201 = vld [vmem:[%s239 + $0x78] sm:$0xff]
      %v1202 = vld [vmem:[%s239 + $0x80] sm:$0xff]
      %v1203 = vld [vmem:[%s239 + $0x88] sm:$0xff]
      %v1204 = vld [vmem:[%s239 + $0x90] sm:$0xff]
      %v1205 = vld [vmem:[%s239 + $0x98] sm:$0xff]
      %v1206 = vld [vmem:[%s239 + $0xa0] sm:$0xff]
      %v1207 = vld [vmem:[%s239 + $0xa8] sm:$0xff]
      %v1208 = vld [vmem:[%s239 + $0xb0] sm:$0xff]
      %v1209 = vld [vmem:[%s239 + $0xb8] sm:$0xff]
      %v1210 = vld [vmem:[%s239 + $0xc0] sm:$0xff]
      %v1211 = vld [vmem:[%s239 + $0xc8] sm:$0xff]
      %v1212 = vld [vmem:[%s239 + $0xd0] sm:$0xff]
      %v1213 = vld [vmem:[%s239 + $0xd8] sm:$0xff]
      %v1214 = vld [vmem:[%s239 + $0xe0] sm:$0xff]
      %v1215 = vld [vmem:[%s239 + $0xe8] sm:$0xff]
      %v1216 = vld [vmem:[%s239 + $0xf0] sm:$0xff]
      %v1217 = vld [vmem:[%s239 + $0xf8] sm:$0xff]
      %v1218 = vld [vmem:[%s239 + $0x100] sm:$0xff]
      %v1219 = vld [vmem:[%s239 + $0x108] sm:$0xff]
      %v1220 = vld [vmem:[%s239 + $0x110] sm:$0xff]
      %v1221 = vld [vmem:[%s239 + $0x118] sm:$0xff]
      %v1222 = vld [vmem:[%s239 + $0x120] sm:$0xff]
      %v1223 = vld [vmem:[%s239 + $0x128] sm:$0xff]
      %v1224 = vld [vmem:[%s239 + $0x130] sm:$0xff]
      %v1225 = vld [vmem:[%s239 + $0x138] sm:$0xff]
      %v1226 = vld [vmem:[%s239 + $0x140] sm:$0xff]
      %v1227 = vld [vmem:[%s239 + $0x148] sm:$0xff]
      %v1228 = vld [vmem:[%s239 + $0x150] sm:$0xff]
      %v1229 = vld [vmem:[%s239 + $0x158] sm:$0xff]
      %v1230 = vld [vmem:[%s239 + $0x160] sm:$0xff]
      %v1231 = vld [vmem:[%s239 + $0x168] sm:$0xff]
      %v1232 = vld [vmem:[%s239 + $0x170] sm:$0xff]
      %v1233 = vld [vmem:[%s239 + $0x178] sm:$0xff]
      %v1234 = vld [vmem:[%s3] sm:$0x3]
      %v1235 = vld [vmem:[#allocation2] sm:$0xff]
      %v1236 = vld [vmem:[#allocation2 + $0x8] sm:$0xff]
      %v1237 = vld [vmem:[#allocation2 + $0x10] sm:$0xff]
      %v1238 = vld [vmem:[#allocation2 + $0x18] sm:$0xff]
      %v1239 = vld [vmem:[#allocation2 + $0x20] sm:$0xff]
      %v1240 = vld [vmem:[#allocation2 + $0x28] sm:$0xff]
      %v1241 = vld [vmem:[#allocation2 + $0x30] sm:$0xff]
      %v1242 = vld [vmem:[#allocation2 + $0x38] sm:$0xff]
      %v1243 = vld [vmem:[#allocation2 + $0x40] sm:$0xff]
      %v1244 = vld [vmem:[#allocation2 + $0x48] sm:$0xff]
      %v1245 = vld [vmem:[#allocation2 + $0x50] sm:$0xff]
      %v1246 = vld [vmem:[#allocation2 + $0x58] sm:$0xff]
      %v1247 = vld [vmem:[#allocation2 + $0x60] sm:$0xff]
      %v1248 = vld [vmem:[#allocation2 + $0x68] sm:$0xff]
      %v1249 = vld [vmem:[#allocation2 + $0x70] sm:$0xff]
      %v1250 = vld [vmem:[#allocation2 + $0x78] sm:$0xff]
      %v1251 = vld [vmem:[#allocation2 + $0x80] sm:$0xff]
      %v1252 = vld [vmem:[#allocation2 + $0x88] sm:$0xff]
      %v1253 = vld [vmem:[#allocation2 + $0x90] sm:$0xff]
      %v1254 = vld [vmem:[#allocation2 + $0x98] sm:$0xff]
      %v1255 = vld [vmem:[#allocation2 + $0xa0] sm:$0xff]
      %v1256 = vld [vmem:[#allocation2 + $0xa8] sm:$0xff]
      %v1257 = vld [vmem:[#allocation2 + $0xb0] sm:$0xff]
      %v1258 = vld [vmem:[#allocation2 + $0xb8] sm:$0xff]
      %v1259 = vld [vmem:[#allocation2 + $0xc0] sm:$0xff]
      %v1260 = vld [vmem:[#allocation2 + $0xc8] sm:$0xff]
      %v1261 = vld [vmem:[#allocation2 + $0xd0] sm:$0xff]
      %v1262 = vld [vmem:[#allocation2 + $0xd8] sm:$0xff]
      %v1263 = vld [vmem:[#allocation2 + $0xe0] sm:$0xff]
      %v1264 = vld [vmem:[#allocation2 + $0xe8] sm:$0xff]
      %v1265 = vld [vmem:[#allocation2 + $0xf0] sm:$0xff]
      %v1266 = vld [vmem:[#allocation2 + $0xf8] sm:$0xff]
      %v1267 = vld [vmem:[#allocation2 + $0x100] sm:$0xff]
      %v1268 = vld [vmem:[#allocation2 + $0x108] sm:$0xff]
      %v1269 = vld [vmem:[#allocation2 + $0x110] sm:$0xff]
      %v1270 = vld [vmem:[#allocation2 + $0x118] sm:$0xff]
      %v1271 = vld [vmem:[#allocation2 + $0x120] sm:$0xff]
      %v1272 = vld [vmem:[#allocation2 + $0x128] sm:$0xff]
      %v1273 = vld [vmem:[#allocation2 + $0x130] sm:$0xff]
      %v1274 = vld [vmem:[#allocation2 + $0x138] sm:$0xff]
      %v1275 = vld [vmem:[#allocation2 + $0x140] sm:$0xff]
      %v1276 = vld [vmem:[#allocation2 + $0x148] sm:$0xff]
      %v1277 = vld [vmem:[#allocation2 + $0x150] sm:$0xff]
      %v1278 = vld [vmem:[#allocation2 + $0x158] sm:$0xff]
      %v1279 = vld [vmem:[#allocation2 + $0x160] sm:$0xff]
      %v1280 = vld [vmem:[#allocation2 + $0x168] sm:$0xff]
      %v1281 = vld [vmem:[#allocation2 + $0x170] sm:$0xff]
      %v1282 = vld [vmem:[#allocation2 + $0x178] sm:$0xff]
      %v1283 = vld [vmem:[#allocation2 + $0x180] sm:$0xff]
      %v1284 = vld [vmem:[#allocation2 + $0x188] sm:$0xff]
      %v1285 = vld [vmem:[#allocation2 + $0x190] sm:$0xff]
      %v1286 = vld [vmem:[#allocation2 + $0x198] sm:$0xff]
      %v1287 = vld [vmem:[#allocation2 + $0x1a0] sm:$0xff]
      %v1288 = vld [vmem:[#allocation2 + $0x1a8] sm:$0xff]
      %v1289 = vld [vmem:[#allocation2 + $0x1b0] sm:$0xff]
      %v1290 = vld [vmem:[#allocation2 + $0x1b8] sm:$0xff]
      %v1291 = vld [vmem:[#allocation2 + $0x1c0] sm:$0xff]
      %v1292 = vld [vmem:[#allocation2 + $0x1c8] sm:$0xff]
      %v1293 = vld [vmem:[#allocation2 + $0x1d0] sm:$0xff]
      %v1294 = vld [vmem:[#allocation2 + $0x1d8] sm:$0xff]
      %v1295 = vrot.slane %v1235, 7
      %v1296 = vrot.slane %v1238, 7
      %v1297 = vrot.slane %v1241, 7
      %v1298 = vrot.slane %v1244, 7
      %v1299 = vrot.slane %v1247, 7
      %v1300 = vrot.slane %v1250, 7
      %v1301 = vrot.slane %v1253, 7
      %v1302 = vrot.slane %v1256, 7
      %v1303 = vrot.slane %v1259, 7
      %v1304 = vrot.slane %v1262, 7
      %v1305 = vrot.slane %v1265, 7
      %v1306 = vrot.slane %v1268, 7
      %v1307 = vrot.slane %v1271, 7
      %v1308 = vrot.slane %v1274, 7
      %v1309 = vrot.slane %v1277, 7
      %v1310 = vrot.slane %v1280, 7
      %v1311 = vrot.slane %v1283, 7
      %v1312 = vrot.slane %v1286, 7
      %v1313 = vrot.slane %v1289, 7
      %v1314 = vrot.slane %v1292, 7
      %v1315 = vrot.slane %v1236, 7
      %v1316 = vrot.slane %v1239, 7
      %v1317 = vrot.slane %v1242, 7
      %v1318 = vrot.slane %v1245, 7
      %v1319 = vrot.slane %v1248, 7
      %v1320 = vrot.slane %v1251, 7
      %v1321 = vrot.slane %v1254, 7
      %v1322 = vrot.slane %v1257, 7
      %v1323 = vrot.slane %v1260, 7
      %v1324 = vrot.slane %v1263, 7
      %v1325 = vrot.slane %v1266, 7
      %v1326 = vrot.slane %v1269, 7
      %v1327 = vrot.slane %v1272, 7
      %v1328 = vrot.slane %v1275, 7
      %v1329 = vrot.slane %v1278, 7
      %v1330 = vrot.slane %v1281, 7
      %v1331 = vrot.slane %v1284, 7
      %v1332 = vrot.slane %v1287, 7
      %v1333 = vrot.slane %v1290, 7
      %v1334 = vrot.slane %v1293, 7
      %v1335 = vrot.slane %v1237, 7
      %v1336 = vrot.slane %v1240, 7
      %v1337 = vrot.slane %v1243, 7
      %v1338 = vrot.slane %v1246, 7
      %v1339 = vrot.slane %v1249, 7
      %v1340 = vrot.slane %v1252, 7
      %v1341 = vrot.slane %v1255, 7
      %v1342 = vrot.slane %v1258, 7
      %v1343 = vrot.slane %v1261, 7
      %v1344 = vrot.slane %v1264, 7
      %v1345 = vrot.slane %v1267, 7
      %v1346 = vrot.slane %v1270, 7
      %v1347 = vrot.slane %v1273, 7
      %v1348 = vrot.slane %v1276, 7
      %v1349 = vrot.slane %v1279, 7
      %v1350 = vrot.slane %v1282, 7
      %v1351 = vrot.slane %v1285, 7
      %v1352 = vrot.slane %v1288, 7
      %v1353 = vrot.slane %v1291, 7
      %v1354 = vrot.slane %v1294, 7
      %vm1355 = vcmp.lt.s32.totalorder %v1180, 1
      %v1356 = vsel %vm1355, %v1315, %v1335
      %v1357 = vsel %vm1355, %v1316, %v1336
      %v1358 = vsel %vm1355, %v1317, %v1337
      %v1359 = vsel %vm1355, %v1318, %v1338
      %v1360 = vsel %vm1355, %v1319, %v1339
      %v1361 = vsel %vm1355, %v1320, %v1340
      %v1362 = vsel %vm1355, %v1321, %v1341
      %v1363 = vsel %vm1355, %v1322, %v1342
      %v1364 = vsel %vm1355, %v1323, %v1343
      %v1365 = vsel %vm1355, %v1324, %v1344
      %v1366 = vsel %vm1355, %v1325, %v1345
      %v1367 = vsel %vm1355, %v1326, %v1346
      %v1368 = vsel %vm1355, %v1327, %v1347
      %v1369 = vsel %vm1355, %v1328, %v1348
      %v1370 = vsel %vm1355, %v1329, %v1349
      %v1371 = vsel %vm1355, %v1330, %v1350
      %v1372 = vsel %vm1355, %v1331, %v1351
      %v1373 = vsel %vm1355, %v1332, %v1352
      %v1374 = vsel %vm1355, %v1333, %v1353
      %v1375 = vsel %vm1355, %v1334, %v1354
      %v1376 = vsel %vm1355, %v1295, %v1315
      %v1377 = vsel %vm1355, %v1296, %v1316
      %v1378 = vsel %vm1355, %v1297, %v1317
      %v1379 = vsel %vm1355, %v1298, %v1318
      %v1380 = vsel %vm1355, %v1299, %v1319
      %v1381 = vsel %vm1355, %v1300, %v1320
      %v1382 = vsel %vm1355, %v1301, %v1321
      %v1383 = vsel %vm1355, %v1302, %v1322
      %v1384 = vsel %vm1355, %v1303, %v1323
      %v1385 = vsel %vm1355, %v1304, %v1324
      %v1386 = vsel %vm1355, %v1305, %v1325
      %v1387 = vsel %vm1355, %v1306, %v1326
      %v1388 = vsel %vm1355, %v1307, %v1327
      %v1389 = vsel %vm1355, %v1308, %v1328
      %v1390 = vsel %vm1355, %v1309, %v1329
      %v1391 = vsel %vm1355, %v1310, %v1330
      %v1392 = vsel %vm1355, %v1311, %v1331
      %v1393 = vsel %vm1355, %v1312, %v1332
      %v1394 = vsel %vm1355, %v1313, %v1333
      %v1395 = vsel %vm1355, %v1314, %v1334
      %v1396 = vsel %vm1355, %v1335, %v1295
      %v1397 = vsel %vm1355, %v1336, %v1296
      %v1398 = vsel %vm1355, %v1337, %v1297
      %v1399 = vsel %vm1355, %v1338, %v1298
      %v1400 = vsel %vm1355, %v1339, %v1299
      %v1401 = vsel %vm1355, %v1340, %v1300
      %v1402 = vsel %vm1355, %v1341, %v1301
      %v1403 = vsel %vm1355, %v1342, %v1302
      %v1404 = vsel %vm1355, %v1343, %v1303
      %v1405 = vsel %vm1355, %v1344, %v1304
      %v1406 = vsel %vm1355, %v1345, %v1305
      %v1407 = vsel %vm1355, %v1346, %v1306
      %v1408 = vsel %vm1355, %v1347, %v1307
      %v1409 = vsel %vm1355, %v1348, %v1308
      %v1410 = vsel %vm1355, %v1349, %v1309
      %v1411 = vsel %vm1355, %v1350, %v1310
      %v1412 = vsel %vm1355, %v1351, %v1311
      %v1413 = vsel %vm1355, %v1352, %v1312
      %v1414 = vsel %vm1355, %v1353, %v1313
      %v1415 = vsel %vm1355, %v1354, %v1314
      %v1416 = vmax.f32 %v1235, %v1396
      %v1417 = vmax.f32 %v1236, %v1376
      %v1418 = vmax.f32 %v1237, %v1356
      %v1419 = vmax.f32 %v1238, %v1397
      %v1420 = vmax.f32 %v1239, %v1377
      %v1421 = vmax.f32 %v1240, %v1357
      %v1422 = vmax.f32 %v1241, %v1398
      %v1423 = vmax.f32 %v1242, %v1378
      %v1424 = vmax.f32 %v1243, %v1358
      %v1425 = vmax.f32 %v1244, %v1399
      %v1426 = vmax.f32 %v1245, %v1379
      %v1427 = vmax.f32 %v1246, %v1359
      %v1428 = vmax.f32 %v1247, %v1400
      %v1429 = vmax.f32 %v1248, %v1380
      %v1430 = vmax.f32 %v1249, %v1360
      %v1431 = vmax.f32 %v1250, %v1401
      %v1432 = vmax.f32 %v1251, %v1381
      %v1433 = vmax.f32 %v1252, %v1361
      %v1434 = vmax.f32 %v1253, %v1402
      %v1435 = vmax.f32 %v1254, %v1382
      %v1436 = vmax.f32 %v1255, %v1362
      %v1437 = vmax.f32 %v1256, %v1403
      %v1438 = vmax.f32 %v1257, %v1383
      %v1439 = vmax.f32 %v1258, %v1363
      %v1440 = vmax.f32 %v1259, %v1404
      %v1441 = vmax.f32 %v1260, %v1384
      %v1442 = vmax.f32 %v1261, %v1364
      %v1443 = vmax.f32 %v1262, %v1405
      %v1444 = vmax.f32 %v1263, %v1385
      %v1445 = vmax.f32 %v1264, %v1365
      %v1446 = vmax.f32 %v1265, %v1406
      %v1447 = vmax.f32 %v1266, %v1386
      %v1448 = vmax.f32 %v1267, %v1366
      %v1449 = vmax.f32 %v1268, %v1407
      %v1450 = vmax.f32 %v1269, %v1387
      %v1451 = vmax.f32 %v1270, %v1367
      %v1452 = vmax.f32 %v1271, %v1408
      %v1453 = vmax.f32 %v1272, %v1388
      %v1454 = vmax.f32 %v1273, %v1368
      %v1455 = vmax.f32 %v1274, %v1409
      %v1456 = vmax.f32 %v1275, %v1389
      %v1457 = vmax.f32 %v1276, %v1369
      %v1458 = vmax.f32 %v1277, %v1410
      %v1459 = vmax.f32 %v1278, %v1390
      %v1460 = vmax.f32 %v1279, %v1370
      %v1461 = vmax.f32 %v1280, %v1411
      %v1462 = vmax.f32 %v1281, %v1391
      %v1463 = vmax.f32 %v1282, %v1371
      %v1464 = vmax.f32 %v1283, %v1412
      %v1465 = vmax.f32 %v1284, %v1392
      %v1466 = vmax.f32 %v1285, %v1372
      %v1467 = vmax.f32 %v1286, %v1413
      %v1468 = vmax.f32 %v1287, %v1393
      %v1469 = vmax.f32 %v1288, %v1373
      %v1470 = vmax.f32 %v1289, %v1414
      %v1471 = vmax.f32 %v1290, %v1394
      %v1472 = vmax.f32 %v1291, %v1374
      %v1473 = vmax.f32 %v1292, %v1415
      %v1474 = vmax.f32 %v1293, %v1395
      %v1475 = vmax.f32 %v1294, %v1375
      %v1476 = vrot.slane %v1235, 6
      %v1477 = vrot.slane %v1238, 6
      %v1478 = vrot.slane %v1241, 6
      %v1479 = vrot.slane %v1244, 6
      %v1480 = vrot.slane %v1247, 6
      %v1481 = vrot.slane %v1250, 6
      %v1482 = vrot.slane %v1253, 6
      %v1483 = vrot.slane %v1256, 6
      %v1484 = vrot.slane %v1259, 6
      %v1485 = vrot.slane %v1262, 6
      %v1486 = vrot.slane %v1265, 6
      %v1487 = vrot.slane %v1268, 6
      %v1488 = vrot.slane %v1271, 6
      %v1489 = vrot.slane %v1274, 6
      %v1490 = vrot.slane %v1277, 6
      %v1491 = vrot.slane %v1280, 6
      %v1492 = vrot.slane %v1283, 6
      %v1493 = vrot.slane %v1286, 6
      %v1494 = vrot.slane %v1289, 6
      %v1495 = vrot.slane %v1292, 6
      %v1496 = vrot.slane %v1236, 6
      %v1497 = vrot.slane %v1239, 6
      %v1498 = vrot.slane %v1242, 6
      %v1499 = vrot.slane %v1245, 6
      %v1500 = vrot.slane %v1248, 6
      %v1501 = vrot.slane %v1251, 6
      %v1502 = vrot.slane %v1254, 6
      %v1503 = vrot.slane %v1257, 6
      %v1504 = vrot.slane %v1260, 6
      %v1505 = vrot.slane %v1263, 6
      %v1506 = vrot.slane %v1266, 6
      %v1507 = vrot.slane %v1269, 6
      %v1508 = vrot.slane %v1272, 6
      %v1509 = vrot.slane %v1275, 6
      %v1510 = vrot.slane %v1278, 6
      %v1511 = vrot.slane %v1281, 6
      %v1512 = vrot.slane %v1284, 6
      %v1513 = vrot.slane %v1287, 6
      %v1514 = vrot.slane %v1290, 6
      %v1515 = vrot.slane %v1293, 6
      %v1516 = vrot.slane %v1237, 6
      %v1517 = vrot.slane %v1240, 6
      %v1518 = vrot.slane %v1243, 6
      %v1519 = vrot.slane %v1246, 6
      %v1520 = vrot.slane %v1249, 6
      %v1521 = vrot.slane %v1252, 6
      %v1522 = vrot.slane %v1255, 6
      %v1523 = vrot.slane %v1258, 6
      %v1524 = vrot.slane %v1261, 6
      %v1525 = vrot.slane %v1264, 6
      %v1526 = vrot.slane %v1267, 6
      %v1527 = vrot.slane %v1270, 6
      %v1528 = vrot.slane %v1273, 6
      %v1529 = vrot.slane %v1276, 6
      %v1530 = vrot.slane %v1279, 6
      %v1531 = vrot.slane %v1282, 6
      %v1532 = vrot.slane %v1285, 6
      %v1533 = vrot.slane %v1288, 6
      %v1534 = vrot.slane %v1291, 6
      %v1535 = vrot.slane %v1294, 6
      %vm1536 = vcmp.lt.s32.totalorder %v1180, 2
      %v1537 = vsel %vm1536, %v1496, %v1516
      %v1538 = vsel %vm1536, %v1497, %v1517
      %v1539 = vsel %vm1536, %v1498, %v1518
      %v1540 = vsel %vm1536, %v1499, %v1519
      %v1541 = vsel %vm1536, %v1500, %v1520
      %v1542 = vsel %vm1536, %v1501, %v1521
      %v1543 = vsel %vm1536, %v1502, %v1522
      %v1544 = vsel %vm1536, %v1503, %v1523
      %v1545 = vsel %vm1536, %v1504, %v1524
      %v1546 = vsel %vm1536, %v1505, %v1525
      %v1547 = vsel %vm1536, %v1506, %v1526
      %v1548 = vsel %vm1536, %v1507, %v1527
      %v1549 = vsel %vm1536, %v1508, %v1528
      %v1550 = vsel %vm1536, %v1509, %v1529
      %v1551 = vsel %vm1536, %v1510, %v1530
      %v1552 = vsel %vm1536, %v1511, %v1531
      %v1553 = vsel %vm1536, %v1512, %v1532
      %v1554 = vsel %vm1536, %v1513, %v1533
      %v1555 = vsel %vm1536, %v1514, %v1534
      %v1556 = vsel %vm1536, %v1515, %v1535
      %v1557 = vsel %vm1536, %v1476, %v1496
      %v1558 = vsel %vm1536, %v1477, %v1497
      %v1559 = vsel %vm1536, %v1478, %v1498
      %v1560 = vsel %vm1536, %v1479, %v1499
      %v1561 = vsel %vm1536, %v1480, %v1500
      %v1562 = vsel %vm1536, %v1481, %v1501
      %v1563 = vsel %vm1536, %v1482, %v1502
      %v1564 = vsel %vm1536, %v1483, %v1503
      %v1565 = vsel %vm1536, %v1484, %v1504
      %v1566 = vsel %vm1536, %v1485, %v1505
      %v1567 = vsel %vm1536, %v1486, %v1506
      %v1568 = vsel %vm1536, %v1487, %v1507
      %v1569 = vsel %vm1536, %v1488, %v1508
      %v1570 = vsel %vm1536, %v1489, %v1509
      %v1571 = vsel %vm1536, %v1490, %v1510
      %v1572 = vsel %vm1536, %v1491, %v1511
      %v1573 = vsel %vm1536, %v1492, %v1512
      %v1574 = vsel %vm1536, %v1493, %v1513
      %v1575 = vsel %vm1536, %v1494, %v1514
      %v1576 = vsel %vm1536, %v1495, %v1515
      %v1577 = vsel %vm1536, %v1516, %v1476
      %v1578 = vsel %vm1536, %v1517, %v1477
      %v1579 = vsel %vm1536, %v1518, %v1478
      %v1580 = vsel %vm1536, %v1519, %v1479
      %v1581 = vsel %vm1536, %v1520, %v1480
      %v1582 = vsel %vm1536, %v1521, %v1481
      %v1583 = vsel %vm1536, %v1522, %v1482
      %v1584 = vsel %vm1536, %v1523, %v1483
      %v1585 = vsel %vm1536, %v1524, %v1484
      %v1586 = vsel %vm1536, %v1525, %v1485
      %v1587 = vsel %vm1536, %v1526, %v1486
      %v1588 = vsel %vm1536, %v1527, %v1487
      %v1589 = vsel %vm1536, %v1528, %v1488
      %v1590 = vsel %vm1536, %v1529, %v1489
      %v1591 = vsel %vm1536, %v1530, %v1490
      %v1592 = vsel %vm1536, %v1531, %v1491
      %v1593 = vsel %vm1536, %v1532, %v1492
      %v1594 = vsel %vm1536, %v1533, %v1493
      %v1595 = vsel %vm1536, %v1534, %v1494
      %v1596 = vsel %vm1536, %v1535, %v1495
      %v1597 = vmax.f32 %v1416, %v1577
      %v1598 = vmax.f32 %v1417, %v1557
      %v1599 = vmax.f32 %v1418, %v1537
      %v1600 = vmax.f32 %v1419, %v1578
      %v1601 = vmax.f32 %v1420, %v1558
      %v1602 = vmax.f32 %v1421, %v1538
      %v1603 = vmax.f32 %v1422, %v1579
      %v1604 = vmax.f32 %v1423, %v1559
      %v1605 = vmax.f32 %v1424, %v1539
      %v1606 = vmax.f32 %v1425, %v1580
      %v1607 = vmax.f32 %v1426, %v1560
      %v1608 = vmax.f32 %v1427, %v1540
      %v1609 = vmax.f32 %v1428, %v1581
      %v1610 = vmax.f32 %v1429, %v1561
      %v1611 = vmax.f32 %v1430, %v1541
      %v1612 = vmax.f32 %v1431, %v1582
      %v1613 = vmax.f32 %v1432, %v1562
      %v1614 = vmax.f32 %v1433, %v1542
      %v1615 = vmax.f32 %v1434, %v1583
      %v1616 = vmax.f32 %v1435, %v1563
      %v1617 = vmax.f32 %v1436, %v1543
      %v1618 = vmax.f32 %v1437, %v1584
      %v1619 = vmax.f32 %v1438, %v1564
      %v1620 = vmax.f32 %v1439, %v1544
      %v1621 = vmax.f32 %v1440, %v1585
      %v1622 = vmax.f32 %v1441, %v1565
      %v1623 = vmax.f32 %v1442, %v1545
      %v1624 = vmax.f32 %v1443, %v1586
      %v1625 = vmax.f32 %v1444, %v1566
      %v1626 = vmax.f32 %v1445, %v1546
      %v1627 = vmax.f32 %v1446, %v1587
      %v1628 = vmax.f32 %v1447, %v1567
      %v1629 = vmax.f32 %v1448, %v1547
      %v1630 = vmax.f32 %v1449, %v1588
      %v1631 = vmax.f32 %v1450, %v1568
      %v1632 = vmax.f32 %v1451, %v1548
      %v1633 = vmax.f32 %v1452, %v1589
      %v1634 = vmax.f32 %v1453, %v1569
      %v1635 = vmax.f32 %v1454, %v1549
      %v1636 = vmax.f32 %v1455, %v1590
      %v1637 = vmax.f32 %v1456, %v1570
      %v1638 = vmax.f32 %v1457, %v1550
      %v1639 = vmax.f32 %v1458, %v1591
      %v1640 = vmax.f32 %v1459, %v1571
      %v1641 = vmax.f32 %v1460, %v1551
      %v1642 = vmax.f32 %v1461, %v1592
      %v1643 = vmax.f32 %v1462, %v1572
      %v1644 = vmax.f32 %v1463, %v1552
      %v1645 = vmax.f32 %v1464, %v1593
      %v1646 = vmax.f32 %v1465, %v1573
      %v1647 = vmax.f32 %v1466, %v1553
      %v1648 = vmax.f32 %v1467, %v1594
      %v1649 = vmax.f32 %v1468, %v1574
      %v1650 = vmax.f32 %v1469, %v1554
      %v1651 = vmax.f32 %v1470, %v1595
      %v1652 = vmax.f32 %v1471, %v1575
      %v1653 = vmax.f32 %v1472, %v1555
      %v1654 = vmax.f32 %v1473, %v1596
      %v1655 = vmax.f32 %v1474, %v1576
      %v1656 = vmax.f32 %v1475, %v1556
      %v1657 = vrot.slane %v1235, 1
      %v1658 = vrot.slane %v1238, 1
      %v1659 = vrot.slane %v1241, 1
      %v1660 = vrot.slane %v1244, 1
      %v1661 = vrot.slane %v1247, 1
      %v1662 = vrot.slane %v1250, 1
      %v1663 = vrot.slane %v1253, 1
      %v1664 = vrot.slane %v1256, 1
      %v1665 = vrot.slane %v1259, 1
      %v1666 = vrot.slane %v1262, 1
      %v1667 = vrot.slane %v1265, 1
      %v1668 = vrot.slane %v1268, 1
      %v1669 = vrot.slane %v1271, 1
      %v1670 = vrot.slane %v1274, 1
      %v1671 = vrot.slane %v1277, 1
      %v1672 = vrot.slane %v1280, 1
      %v1673 = vrot.slane %v1283, 1
      %v1674 = vrot.slane %v1286, 1
      %v1675 = vrot.slane %v1289, 1
      %v1676 = vrot.slane %v1292, 1
      %v1677 = vrot.slane %v1236, 1
      %v1678 = vrot.slane %v1239, 1
      %v1679 = vrot.slane %v1242, 1
      %v1680 = vrot.slane %v1245, 1
      %v1681 = vrot.slane %v1248, 1
      %v1682 = vrot.slane %v1251, 1
      %v1683 = vrot.slane %v1254, 1
      %v1684 = vrot.slane %v1257, 1
      %v1685 = vrot.slane %v1260, 1
      %v1686 = vrot.slane %v1263, 1
      %v1687 = vrot.slane %v1266, 1
      %v1688 = vrot.slane %v1269, 1
      %v1689 = vrot.slane %v1272, 1
      %v1690 = vrot.slane %v1275, 1
      %v1691 = vrot.slane %v1278, 1
      %v1692 = vrot.slane %v1281, 1
      %v1693 = vrot.slane %v1284, 1
      %v1694 = vrot.slane %v1287, 1
      %v1695 = vrot.slane %v1290, 1
      %v1696 = vrot.slane %v1293, 1
      %v1697 = vrot.slane %v1237, 1
      %v1698 = vrot.slane %v1240, 1
      %v1699 = vrot.slane %v1243, 1
      %v1700 = vrot.slane %v1246, 1
      %v1701 = vrot.slane %v1249, 1
      %v1702 = vrot.slane %v1252, 1
      %v1703 = vrot.slane %v1255, 1
      %v1704 = vrot.slane %v1258, 1
      %v1705 = vrot.slane %v1261, 1
      %v1706 = vrot.slane %v1264, 1
      %v1707 = vrot.slane %v1267, 1
      %v1708 = vrot.slane %v1270, 1
      %v1709 = vrot.slane %v1273, 1
      %v1710 = vrot.slane %v1276, 1
      %v1711 = vrot.slane %v1279, 1
      %v1712 = vrot.slane %v1282, 1
      %v1713 = vrot.slane %v1285, 1
      %v1714 = vrot.slane %v1288, 1
      %v1715 = vrot.slane %v1291, 1
      %v1716 = vrot.slane %v1294, 1
      %vm1717 = vcmp.lt.s32.totalorder %v1180, 7
      %v1718 = vsel %vm1717, %v1677, %v1697
      %v1719 = vsel %vm1717, %v1678, %v1698
      %v1720 = vsel %vm1717, %v1679, %v1699
      %v1721 = vsel %vm1717, %v1680, %v1700
      %v1722 = vsel %vm1717, %v1681, %v1701
      %v1723 = vsel %vm1717, %v1682, %v1702
      %v1724 = vsel %vm1717, %v1683, %v1703
      %v1725 = vsel %vm1717, %v1684, %v1704
      %v1726 = vsel %vm1717, %v1685, %v1705
      %v1727 = vsel %vm1717, %v1686, %v1706
      %v1728 = vsel %vm1717, %v1687, %v1707
      %v1729 = vsel %vm1717, %v1688, %v1708
      %v1730 = vsel %vm1717, %v1689, %v1709
      %v1731 = vsel %vm1717, %v1690, %v1710
      %v1732 = vsel %vm1717, %v1691, %v1711
      %v1733 = vsel %vm1717, %v1692, %v1712
      %v1734 = vsel %vm1717, %v1693, %v1713
      %v1735 = vsel %vm1717, %v1694, %v1714
      %v1736 = vsel %vm1717, %v1695, %v1715
      %v1737 = vsel %vm1717, %v1696, %v1716
      %v1738 = vsel %vm1717, %v1657, %v1677
      %v1739 = vsel %vm1717, %v1658, %v1678
      %v1740 = vsel %vm1717, %v1659, %v1679
      %v1741 = vsel %vm1717, %v1660, %v1680
      %v1742 = vsel %vm1717, %v1661, %v1681
      %v1743 = vsel %vm1717, %v1662, %v1682
      %v1744 = vsel %vm1717, %v1663, %v1683
      %v1745 = vsel %vm1717, %v1664, %v1684
      %v1746 = vsel %vm1717, %v1665, %v1685
      %v1747 = vsel %vm1717, %v1666, %v1686
      %v1748 = vsel %vm1717, %v1667, %v1687
      %v1749 = vsel %vm1717, %v1668, %v1688
      %v1750 = vsel %vm1717, %v1669, %v1689
      %v1751 = vsel %vm1717, %v1670, %v1690
      %v1752 = vsel %vm1717, %v1671, %v1691
      %v1753 = vsel %vm1717, %v1672, %v1692
      %v1754 = vsel %vm1717, %v1673, %v1693
      %v1755 = vsel %vm1717, %v1674, %v1694
      %v1756 = vsel %vm1717, %v1675, %v1695
      %v1757 = vsel %vm1717, %v1676, %v1696
      %v1758 = vsel %vm1717, %v1697, %v1657
      %v1759 = vsel %vm1717, %v1698, %v1658
      %v1760 = vsel %vm1717, %v1699, %v1659
      %v1761 = vsel %vm1717, %v1700, %v1660
      %v1762 = vsel %vm1717, %v1701, %v1661
      %v1763 = vsel %vm1717, %v1702, %v1662
      %v1764 = vsel %vm1717, %v1703, %v1663
      %v1765 = vsel %vm1717, %v1704, %v1664
      %v1766 = vsel %vm1717, %v1705, %v1665
      %v1767 = vsel %vm1717, %v1706, %v1666
      %v1768 = vsel %vm1717, %v1707, %v1667
      %v1769 = vsel %vm1717, %v1708, %v1668
      %v1770 = vsel %vm1717, %v1709, %v1669
      %v1771 = vsel %vm1717, %v1710, %v1670
      %v1772 = vsel %vm1717, %v1711, %v1671
      %v1773 = vsel %vm1717, %v1712, %v1672
      %v1774 = vsel %vm1717, %v1713, %v1673
      %v1775 = vsel %vm1717, %v1714, %v1674
      %v1776 = vsel %vm1717, %v1715, %v1675
      %v1777 = vsel %vm1717, %v1716, %v1676
      %v1778 = vmax.f32 %v1597, %v1738
      %v1779 = vmax.f32 %v1598, %v1718
      %v1780 = vmax.f32 %v1599, %v1758
      %v1781 = vmax.f32 %v1600, %v1739
      %v1782 = vmax.f32 %v1601, %v1719
      %v1783 = vmax.f32 %v1602, %v1759
      %v1784 = vmax.f32 %v1603, %v1740
      %v1785 = vmax.f32 %v1604, %v1720
      %v1786 = vmax.f32 %v1605, %v1760
      %v1787 = vmax.f32 %v1606, %v1741
      %v1788 = vmax.f32 %v1607, %v1721
      %v1789 = vmax.f32 %v1608, %v1761
      %v1790 = vmax.f32 %v1609, %v1742
      %v1791 = vmax.f32 %v1610, %v1722
      %v1792 = vmax.f32 %v1611, %v1762
      %v1793 = vmax.f32 %v1612, %v1743
      %v1794 = vmax.f32 %v1613, %v1723
      %v1795 = vmax.f32 %v1614, %v1763
      %v1796 = vmax.f32 %v1615, %v1744
      %v1797 = vmax.f32 %v1616, %v1724
      %v1798 = vmax.f32 %v1617, %v1764
      %v1799 = vmax.f32 %v1618, %v1745
      %v1800 = vmax.f32 %v1619, %v1725
      %v1801 = vmax.f32 %v1620, %v1765
      %v1802 = vmax.f32 %v1621, %v1746
      %v1803 = vmax.f32 %v1622, %v1726
      %v1804 = vmax.f32 %v1623, %v1766
      %v1805 = vmax.f32 %v1624, %v1747
      %v1806 = vmax.f32 %v1625, %v1727
      %v1807 = vmax.f32 %v1626, %v1767
      %v1808 = vmax.f32 %v1627, %v1748
      %v1809 = vmax.f32 %v1628, %v1728
      %v1810 = vmax.f32 %v1629, %v1768
      %v1811 = vmax.f32 %v1630, %v1749
      %v1812 = vmax.f32 %v1631, %v1729
      %v1813 = vmax.f32 %v1632, %v1769
      %v1814 = vmax.f32 %v1633, %v1750
      %v1815 = vmax.f32 %v1634, %v1730
      %v1816 = vmax.f32 %v1635, %v1770
      %v1817 = vmax.f32 %v1636, %v1751
      %v1818 = vmax.f32 %v1637, %v1731
      %v1819 = vmax.f32 %v1638, %v1771
      %v1820 = vmax.f32 %v1639, %v1752
      %v1821 = vmax.f32 %v1640, %v1732
      %v1822 = vmax.f32 %v1641, %v1772
      %v1823 = vmax.f32 %v1642, %v1753
      %v1824 = vmax.f32 %v1643, %v1733
      %v1825 = vmax.f32 %v1644, %v1773
      %v1826 = vmax.f32 %v1645, %v1754
      %v1827 = vmax.f32 %v1646, %v1734
      %v1828 = vmax.f32 %v1647, %v1774
      %v1829 = vmax.f32 %v1648, %v1755
      %v1830 = vmax.f32 %v1649, %v1735
      %v1831 = vmax.f32 %v1650, %v1775
      %v1832 = vmax.f32 %v1651, %v1756
      %v1833 = vmax.f32 %v1652, %v1736
      %v1834 = vmax.f32 %v1653, %v1776
      %v1835 = vmax.f32 %v1654, %v1757
      %v1836 = vmax.f32 %v1655, %v1737
      %v1837 = vmax.f32 %v1656, %v1777
      %v1838 = vrot.slane %v1235, 2
      %v1839 = vrot.slane %v1238, 2
      %v1840 = vrot.slane %v1241, 2
      %v1841 = vrot.slane %v1244, 2
      %v1842 = vrot.slane %v1247, 2
      %v1843 = vrot.slane %v1250, 2
      %v1844 = vrot.slane %v1253, 2
      %v1845 = vrot.slane %v1256, 2
      %v1846 = vrot.slane %v1259, 2
      %v1847 = vrot.slane %v1262, 2
      %v1848 = vrot.slane %v1265, 2
      %v1849 = vrot.slane %v1268, 2
      %v1850 = vrot.slane %v1271, 2
      %v1851 = vrot.slane %v1274, 2
      %v1852 = vrot.slane %v1277, 2
      %v1853 = vrot.slane %v1280, 2
      %v1854 = vrot.slane %v1283, 2
      %v1855 = vrot.slane %v1286, 2
      %v1856 = vrot.slane %v1289, 2
      %v1857 = vrot.slane %v1292, 2
      %v1858 = vrot.slane %v1236, 2
      %v1859 = vrot.slane %v1239, 2
      %v1860 = vrot.slane %v1242, 2
      %v1861 = vrot.slane %v1245, 2
      %v1862 = vrot.slane %v1248, 2
      %v1863 = vrot.slane %v1251, 2
      %v1864 = vrot.slane %v1254, 2
      %v1865 = vrot.slane %v1257, 2
      %v1866 = vrot.slane %v1260, 2
      %v1867 = vrot.slane %v1263, 2
      %v1868 = vrot.slane %v1266, 2
      %v1869 = vrot.slane %v1269, 2
      %v1870 = vrot.slane %v1272, 2
      %v1871 = vrot.slane %v1275, 2
      %v1872 = vrot.slane %v1278, 2
      %v1873 = vrot.slane %v1281, 2
      %v1874 = vrot.slane %v1284, 2
      %v1875 = vrot.slane %v1287, 2
      %v1876 = vrot.slane %v1290, 2
      %v1877 = vrot.slane %v1293, 2
      %v1878 = vrot.slane %v1237, 2
      %v1879 = vrot.slane %v1240, 2
      %v1880 = vrot.slane %v1243, 2
      %v1881 = vrot.slane %v1246, 2
      %v1882 = vrot.slane %v1249, 2
      %v1883 = vrot.slane %v1252, 2
      %v1884 = vrot.slane %v1255, 2
      %v1885 = vrot.slane %v1258, 2
      %v1886 = vrot.slane %v1261, 2
      %v1887 = vrot.slane %v1264, 2
      %v1888 = vrot.slane %v1267, 2
      %v1889 = vrot.slane %v1270, 2
      %v1890 = vrot.slane %v1273, 2
      %v1891 = vrot.slane %v1276, 2
      %v1892 = vrot.slane %v1279, 2
      %v1893 = vrot.slane %v1282, 2
      %v1894 = vrot.slane %v1285, 2
      %v1895 = vrot.slane %v1288, 2
      %v1896 = vrot.slane %v1291, 2
      %v1897 = vrot.slane %v1294, 2
      %vm1898 = vcmp.lt.s32.totalorder %v1180, 6
      %v1899 = vsel %vm1898, %v1858, %v1878
      %v1900 = vsel %vm1898, %v1859, %v1879
      %v1901 = vsel %vm1898, %v1860, %v1880
      %v1902 = vsel %vm1898, %v1861, %v1881
      %v1903 = vsel %vm1898, %v1862, %v1882
      %v1904 = vsel %vm1898, %v1863, %v1883
      %v1905 = vsel %vm1898, %v1864, %v1884
      %v1906 = vsel %vm1898, %v1865, %v1885
      %v1907 = vsel %vm1898, %v1866, %v1886
      %v1908 = vsel %vm1898, %v1867, %v1887
      %v1909 = vsel %vm1898, %v1868, %v1888
      %v1910 = vsel %vm1898, %v1869, %v1889
      %v1911 = vsel %vm1898, %v1870, %v1890
      %v1912 = vsel %vm1898, %v1871, %v1891
      %v1913 = vsel %vm1898, %v1872, %v1892
      %v1914 = vsel %vm1898, %v1873, %v1893
      %v1915 = vsel %vm1898, %v1874, %v1894
      %v1916 = vsel %vm1898, %v1875, %v1895
      %v1917 = vsel %vm1898, %v1876, %v1896
      %v1918 = vsel %vm1898, %v1877, %v1897
      %v1919 = vsel %vm1898, %v1838, %v1858
      %v1920 = vsel %vm1898, %v1839, %v1859
      %v1921 = vsel %vm1898, %v1840, %v1860
      %v1922 = vsel %vm1898, %v1841, %v1861
      %v1923 = vsel %vm1898, %v1842, %v1862
      %v1924 = vsel %vm1898, %v1843, %v1863
      %v1925 = vsel %vm1898, %v1844, %v1864
      %v1926 = vsel %vm1898, %v1845, %v1865
      %v1927 = vsel %vm1898, %v1846, %v1866
      %v1928 = vsel %vm1898, %v1847, %v1867
      %v1929 = vsel %vm1898, %v1848, %v1868
      %v1930 = vsel %vm1898, %v1849, %v1869
      %v1931 = vsel %vm1898, %v1850, %v1870
      %v1932 = vsel %vm1898, %v1851, %v1871
      %v1933 = vsel %vm1898, %v1852, %v1872
      %v1934 = vsel %vm1898, %v1853, %v1873
      %v1935 = vsel %vm1898, %v1854, %v1874
      %v1936 = vsel %vm1898, %v1855, %v1875
      %v1937 = vsel %vm1898, %v1856, %v1876
      %v1938 = vsel %vm1898, %v1857, %v1877
      %v1939 = vsel %vm1898, %v1878, %v1838
      %v1940 = vsel %vm1898, %v1879, %v1839
      %v1941 = vsel %vm1898, %v1880, %v1840
      %v1942 = vsel %vm1898, %v1881, %v1841
      %v1943 = vsel %vm1898, %v1882, %v1842
      %v1944 = vsel %vm1898, %v1883, %v1843
      %v1945 = vsel %vm1898, %v1884, %v1844
      %v1946 = vsel %vm1898, %v1885, %v1845
      %v1947 = vsel %vm1898, %v1886, %v1846
      %v1948 = vsel %vm1898, %v1887, %v1847
      %v1949 = vsel %vm1898, %v1888, %v1848
      %v1950 = vsel %vm1898, %v1889, %v1849
      %v1951 = vsel %vm1898, %v1890, %v1850
      %v1952 = vsel %vm1898, %v1891, %v1851
      %v1953 = vsel %vm1898, %v1892, %v1852
      %v1954 = vsel %vm1898, %v1893, %v1853
      %v1955 = vsel %vm1898, %v1894, %v1854
      %v1956 = vsel %vm1898, %v1895, %v1855
      %v1957 = vsel %vm1898, %v1896, %v1856
      %v1958 = vsel %vm1898, %v1897, %v1857
      %v1959 = vmax.f32 %v1778, %v1919
      %v1960 = vmax.f32 %v1779, %v1899
      %v1961 = vmax.f32 %v1780, %v1939
      %v1962 = vmax.f32 %v1781, %v1920
      %v1963 = vmax.f32 %v1782, %v1900
      %v1964 = vmax.f32 %v1783, %v1940
      %v1965 = vmax.f32 %v1784, %v1921
      %v1966 = vmax.f32 %v1785, %v1901
      %v1967 = vmax.f32 %v1786, %v1941
      %v1968 = vmax.f32 %v1787, %v1922
      %v1969 = vmax.f32 %v1788, %v1902
      %v1970 = vmax.f32 %v1789, %v1942
      %v1971 = vmax.f32 %v1790, %v1923
      %v1972 = vmax.f32 %v1791, %v1903
      %v1973 = vmax.f32 %v1792, %v1943
      %v1974 = vmax.f32 %v1793, %v1924
      %v1975 = vmax.f32 %v1794, %v1904
      %v1976 = vmax.f32 %v1795, %v1944
      %v1977 = vmax.f32 %v1796, %v1925
      %v1978 = vmax.f32 %v1797, %v1905
      %v1979 = vmax.f32 %v1798, %v1945
      %v1980 = vmax.f32 %v1799, %v1926
      %v1981 = vmax.f32 %v1800, %v1906
      %v1982 = vmax.f32 %v1801, %v1946
      %v1983 = vmax.f32 %v1802, %v1927
      %v1984 = vmax.f32 %v1803, %v1907
      %v1985 = vmax.f32 %v1804, %v1947
      %v1986 = vmax.f32 %v1805, %v1928
      %v1987 = vmax.f32 %v1806, %v1908
      %v1988 = vmax.f32 %v1807, %v1948
      %v1989 = vmax.f32 %v1808, %v1929
      %v1990 = vmax.f32 %v1809, %v1909
      %v1991 = vmax.f32 %v1810, %v1949
      %v1992 = vmax.f32 %v1811, %v1930
      %v1993 = vmax.f32 %v1812, %v1910
      %v1994 = vmax.f32 %v1813, %v1950
      %v1995 = vmax.f32 %v1814, %v1931
      %v1996 = vmax.f32 %v1815, %v1911
      %v1997 = vmax.f32 %v1816, %v1951
      %v1998 = vmax.f32 %v1817, %v1932
      %v1999 = vmax.f32 %v1818, %v1912
      %v2000 = vmax.f32 %v1819, %v1952
      %v2001 = vmax.f32 %v1820, %v1933
      %v2002 = vmax.f32 %v1821, %v1913
      %v2003 = vmax.f32 %v1822, %v1953
      %v2004 = vmax.f32 %v1823, %v1934
      %v2005 = vmax.f32 %v1824, %v1914
      %v2006 = vmax.f32 %v1825, %v1954
      %v2007 = vmax.f32 %v1826, %v1935
      %v2008 = vmax.f32 %v1827, %v1915
      %v2009 = vmax.f32 %v1828, %v1955
      %v2010 = vmax.f32 %v1829, %v1936
      %v2011 = vmax.f32 %v1830, %v1916
      %v2012 = vmax.f32 %v1831, %v1956
      %v2013 = vmax.f32 %v1832, %v1937
      %v2014 = vmax.f32 %v1833, %v1917
      %v2015 = vmax.f32 %v1834, %v1957
      %v2016 = vmax.f32 %v1835, %v1938
      %v2017 = vmax.f32 %v1836, %v1918
      %v2018 = vmax.f32 %v1837, %v1958
      %v2019 = vmax.f32 %v1959, %v1962
      %v2020 = vmax.f32 %v1960, %v1963
      %v2021 = vmax.f32 %v1961, %v1964
      %v2022 = vmax.f32 %v1962, %v1965
      %v2023 = vmax.f32 %v1963, %v1966
      %v2024 = vmax.f32 %v1964, %v1967
      %v2025 = vmax.f32 %v1965, %v1968
      %v2026 = vmax.f32 %v1966, %v1969
      %v2027 = vmax.f32 %v1967, %v1970
      %v2028 = vmax.f32 %v1968, %v1971
      %v2029 = vmax.f32 %v1969, %v1972
      %v2030 = vmax.f32 %v1970, %v1973
      %v2031 = vmax.f32 %v1971, %v1974
      %v2032 = vmax.f32 %v1972, %v1975
      %v2033 = vmax.f32 %v1973, %v1976
      %v2034 = vmax.f32 %v1974, %v1977
      %v2035 = vmax.f32 %v1975, %v1978
      %v2036 = vmax.f32 %v1976, %v1979
      %v2037 = vmax.f32 %v1977, %v1980
      %v2038 = vmax.f32 %v1978, %v1981
      %v2039 = vmax.f32 %v1979, %v1982
      %v2040 = vmax.f32 %v1980, %v1983
      %v2041 = vmax.f32 %v1981, %v1984
      %v2042 = vmax.f32 %v1982, %v1985
      %v2043 = vmax.f32 %v1983, %v1986
      %v2044 = vmax.f32 %v1984, %v1987
      %v2045 = vmax.f32 %v1985, %v1988
      %v2046 = vmax.f32 %v1986, %v1989
      %v2047 = vmax.f32 %v1987, %v1990
      %v2048 = vmax.f32 %v1988, %v1991
      %v2049 = vmax.f32 %v1989, %v1992
      %v2050 = vmax.f32 %v1990, %v1993
      %v2051 = vmax.f32 %v1991, %v1994
      %v2052 = vmax.f32 %v1992, %v1995
      %v2053 = vmax.f32 %v1993, %v1996
      %v2054 = vmax.f32 %v1994, %v1997
      %v2055 = vmax.f32 %v1995, %v1998
      %v2056 = vmax.f32 %v1996, %v1999
      %v2057 = vmax.f32 %v1997, %v2000
      %v2058 = vmax.f32 %v1998, %v2001
      %v2059 = vmax.f32 %v1999, %v2002
      %v2060 = vmax.f32 %v2000, %v2003
      %v2061 = vmax.f32 %v2001, %v2004
      %v2062 = vmax.f32 %v2002, %v2005
      %v2063 = vmax.f32 %v2003, %v2006
      %v2064 = vmax.f32 %v2004, %v2007
      %v2065 = vmax.f32 %v2005, %v2008
      %v2066 = vmax.f32 %v2006, %v2009
      %v2067 = vmax.f32 %v2019, %v1965
      %v2068 = vmax.f32 %v2020, %v1966
      %v2069 = vmax.f32 %v2021, %v1967
      %v2070 = vmax.f32 %v2022, %v1968
      %v2071 = vmax.f32 %v2023, %v1969
      %v2072 = vmax.f32 %v2024, %v1970
      %v2073 = vmax.f32 %v2025, %v1971
      %v2074 = vmax.f32 %v2026, %v1972
      %v2075 = vmax.f32 %v2027, %v1973
      %v2076 = vmax.f32 %v2028, %v1974
      %v2077 = vmax.f32 %v2029, %v1975
      %v2078 = vmax.f32 %v2030, %v1976
      %v2079 = vmax.f32 %v2031, %v1977
      %v2080 = vmax.f32 %v2032, %v1978
      %v2081 = vmax.f32 %v2033, %v1979
      %v2082 = vmax.f32 %v2034, %v1980
      %v2083 = vmax.f32 %v2035, %v1981
      %v2084 = vmax.f32 %v2036, %v1982
      %v2085 = vmax.f32 %v2037, %v1983
      %v2086 = vmax.f32 %v2038, %v1984
      %v2087 = vmax.f32 %v2039, %v1985
      %v2088 = vmax.f32 %v2040, %v1986
      %v2089 = vmax.f32 %v2041, %v1987
      %v2090 = vmax.f32 %v2042, %v1988
      %v2091 = vmax.f32 %v2043, %v1989
      %v2092 = vmax.f32 %v2044, %v1990
      %v2093 = vmax.f32 %v2045, %v1991
      %v2094 = vmax.f32 %v2046, %v1992
      %v2095 = vmax.f32 %v2047, %v1993
      %v2096 = vmax.f32 %v2048, %v1994
      %v2097 = vmax.f32 %v2049, %v1995
      %v2098 = vmax.f32 %v2050, %v1996
      %v2099 = vmax.f32 %v2051, %v1997
      %v2100 = vmax.f32 %v2052, %v1998
      %v2101 = vmax.f32 %v2053, %v1999
      %v2102 = vmax.f32 %v2054, %v2000
      %v2103 = vmax.f32 %v2055, %v2001
      %v2104 = vmax.f32 %v2056, %v2002
      %v2105 = vmax.f32 %v2057, %v2003
      %v2106 = vmax.f32 %v2058, %v2004
      %v2107 = vmax.f32 %v2059, %v2005
      %v2108 = vmax.f32 %v2060, %v2006
      %v2109 = vmax.f32 %v2061, %v2007
      %v2110 = vmax.f32 %v2062, %v2008
      %v2111 = vmax.f32 %v2063, %v2009
      %v2112 = vmax.f32 %v2064, %v2010
      %v2113 = vmax.f32 %v2065, %v2011
      %v2114 = vmax.f32 %v2066, %v2012
      %v2115 = vmax.f32 %v2067, %v1968
      %v2116 = vmax.f32 %v2068, %v1969
      %v2117 = vmax.f32 %v2069, %v1970
      %v2118 = vmax.f32 %v2070, %v1971
      %v2119 = vmax.f32 %v2071, %v1972
      %v2120 = vmax.f32 %v2072, %v1973
      %v2121 = vmax.f32 %v2073, %v1974
      %v2122 = vmax.f32 %v2074, %v1975
      %v2123 = vmax.f32 %v2075, %v1976
      %v2124 = vmax.f32 %v2076, %v1977
      %v2125 = vmax.f32 %v2077, %v1978
      %v2126 = vmax.f32 %v2078, %v1979
      %v2127 = vmax.f32 %v2079, %v1980
      %v2128 = vmax.f32 %v2080, %v1981
      %v2129 = vmax.f32 %v2081, %v1982
      %v2130 = vmax.f32 %v2082, %v1983
      %v2131 = vmax.f32 %v2083, %v1984
      %v2132 = vmax.f32 %v2084, %v1985
      %v2133 = vmax.f32 %v2085, %v1986
      %v2134 = vmax.f32 %v2086, %v1987
      %v2135 = vmax.f32 %v2087, %v1988
      %v2136 = vmax.f32 %v2088, %v1989
      %v2137 = vmax.f32 %v2089, %v1990
      %v2138 = vmax.f32 %v2090, %v1991
      %v2139 = vmax.f32 %v2091, %v1992
      %v2140 = vmax.f32 %v2092, %v1993
      %v2141 = vmax.f32 %v2093, %v1994
      %v2142 = vmax.f32 %v2094, %v1995
      %v2143 = vmax.f32 %v2095, %v1996
      %v2144 = vmax.f32 %v2096, %v1997
      %v2145 = vmax.f32 %v2097, %v1998
      %v2146 = vmax.f32 %v2098, %v1999
      %v2147 = vmax.f32 %v2099, %v2000
      %v2148 = vmax.f32 %v2100, %v2001
      %v2149 = vmax.f32 %v2101, %v2002
      %v2150 = vmax.f32 %v2102, %v2003
      %v2151 = vmax.f32 %v2103, %v2004
      %v2152 = vmax.f32 %v2104, %v2005
      %v2153 = vmax.f32 %v2105, %v2006
      %v2154 = vmax.f32 %v2106, %v2007
      %v2155 = vmax.f32 %v2107, %v2008
      %v2156 = vmax.f32 %v2108, %v2009
      %v2157 = vmax.f32 %v2109, %v2010
      %v2158 = vmax.f32 %v2110, %v2011
      %v2159 = vmax.f32 %v2111, %v2012
      %v2160 = vmax.f32 %v2112, %v2013
      %v2161 = vmax.f32 %v2113, %v2014
      %v2162 = vmax.f32 %v2114, %v2015
      %v2163 = vmax.f32 %v2115, %v1971
      %v2164 = vmax.f32 %v2116, %v1972
      %v2165 = vmax.f32 %v2117, %v1973
      %v2166 = vmax.f32 %v2118, %v1974
      %v2167 = vmax.f32 %v2119, %v1975
      %v2168 = vmax.f32 %v2120, %v1976
      %v2169 = vmax.f32 %v2121, %v1977
      %v2170 = vmax.f32 %v2122, %v1978
      %v2171 = vmax.f32 %v2123, %v1979
      %v2172 = vmax.f32 %v2124, %v1980
      %v2173 = vmax.f32 %v2125, %v1981
      %v2174 = vmax.f32 %v2126, %v1982
      %v2175 = vmax.f32 %v2127, %v1983
      %v2176 = vmax.f32 %v2128, %v1984
      %v2177 = vmax.f32 %v2129, %v1985
      %v2178 = vmax.f32 %v2130, %v1986
      %v2179 = vmax.f32 %v2131, %v1987
      %v2180 = vmax.f32 %v2132, %v1988
      %v2181 = vmax.f32 %v2133, %v1989
      %v2182 = vmax.f32 %v2134, %v1990
      %v2183 = vmax.f32 %v2135, %v1991
      %v2184 = vmax.f32 %v2136, %v1992
      %v2185 = vmax.f32 %v2137, %v1993
      %v2186 = vmax.f32 %v2138, %v1994
      %v2187 = vmax.f32 %v2139, %v1995
      %v2188 = vmax.f32 %v2140, %v1996
      %v2189 = vmax.f32 %v2141, %v1997
      %v2190 = vmax.f32 %v2142, %v1998
      %v2191 = vmax.f32 %v2143, %v1999
      %v2192 = vmax.f32 %v2144, %v2000
      %v2193 = vmax.f32 %v2145, %v2001
      %v2194 = vmax.f32 %v2146, %v2002
      %v2195 = vmax.f32 %v2147, %v2003
      %v2196 = vmax.f32 %v2148, %v2004
      %v2197 = vmax.f32 %v2149, %v2005
      %v2198 = vmax.f32 %v2150, %v2006
      %v2199 = vmax.f32 %v2151, %v2007
      %v2200 = vmax.f32 %v2152, %v2008
      %v2201 = vmax.f32 %v2153, %v2009
      %v2202 = vmax.f32 %v2154, %v2010
      %v2203 = vmax.f32 %v2155, %v2011
      %v2204 = vmax.f32 %v2156, %v2012
      %v2205 = vmax.f32 %v2157, %v2013
      %v2206 = vmax.f32 %v2158, %v2014
      %v2207 = vmax.f32 %v2159, %v2015
      %v2208 = vmax.f32 %v2160, %v2016
      %v2209 = vmax.f32 %v2161, %v2017
      %v2210 = vmax.f32 %v2162, %v2018
      %v2211 = vsel %vm1183, 1, 0
      %v2212 = vsel %vm1184, 1, 0
      %v2213 = vsel %vm1185, 1, 0
      %vm2214 = vcmp.eq.s32.totalorder %v2211, 1
      %vm2215 = vcmp.eq.s32.totalorder %v2212, 1
      %vm2216 = vcmp.eq.s32.totalorder %v2213, 1
      %v2217 = vsel %vm2214, %v2163, -inf
      %v2218 = vsel %vm2215, %v2164, -inf
      %v2219 = vsel %vm2216, %v2165, -inf
      %v2220 = vsel %vm2214, %v2166, -inf
      %v2221 = vsel %vm2215, %v2167, -inf
      %v2222 = vsel %vm2216, %v2168, -inf
      %v2223 = vsel %vm2214, %v2169, -inf
      %v2224 = vsel %vm2215, %v2170, -inf
      %v2225 = vsel %vm2216, %v2171, -inf
      %v2226 = vsel %vm2214, %v2172, -inf
      %v2227 = vsel %vm2215, %v2173, -inf
      %v2228 = vsel %vm2216, %v2174, -inf
      %v2229 = vsel %vm2214, %v2175, -inf
      %v2230 = vsel %vm2215, %v2176, -inf
      %v2231 = vsel %vm2216, %v2177, -inf
      %v2232 = vsel %vm2214, %v2178, -inf
      %v2233 = vsel %vm2215, %v2179, -inf
      %v2234 = vsel %vm2216, %v2180, -inf
      %v2235 = vsel %vm2214, %v2181, -inf
      %v2236 = vsel %vm2215, %v2182, -inf
      %v2237 = vsel %vm2216, %v2183, -inf
      %v2238 = vsel %vm2214, %v2184, -inf
      %v2239 = vsel %vm2215, %v2185, -inf
      %v2240 = vsel %vm2216, %v2186, -inf
      %v2241 = vsel %vm2214, %v2187, -inf
      %v2242 = vsel %vm2215, %v2188, -inf
      %v2243 = vsel %vm2216, %v2189, -inf
      %v2244 = vsel %vm2214, %v2190, -inf
      %v2245 = vsel %vm2215, %v2191, -inf
      %v2246 = vsel %vm2216, %v2192, -inf
      %v2247 = vsel %vm2214, %v2193, -inf
      %v2248 = vsel %vm2215, %v2194, -inf
      %v2249 = vsel %vm2216, %v2195, -inf
      %v2250 = vsel %vm2214, %v2196, -inf
      %v2251 = vsel %vm2215, %v2197, -inf
      %v2252 = vsel %vm2216, %v2198, -inf
      %v2253 = vsel %vm2214, %v2199, -inf
      %v2254 = vsel %vm2215, %v2200, -inf
      %v2255 = vsel %vm2216, %v2201, -inf
      %v2256 = vsel %vm2214, %v2202, -inf
      %v2257 = vsel %vm2215, %v2203, -inf
      %v2258 = vsel %vm2216, %v2204, -inf
      %v2259 = vsel %vm2214, %v2205, -inf
      %v2260 = vsel %vm2215, %v2206, -inf
      %v2261 = vsel %vm2216, %v2207, -inf
      %v2262 = vsel %vm2214, %v2208, -inf
      %v2263 = vsel %vm2215, %v2209, -inf
      %v2264 = vsel %vm2216, %v2210, -inf
      %s2265 = scalar_lea.vmem %s3, 2
      %v2266 = vld [vmem:[%s2265] sm:$0x3]
      %v2268 = vsel %vm225, %v2217, 0
      %v2271 = vsel %vm225, %v2218, 0
      %v2274 = vsel %vm225, %v2219, 0
      %v2277 = vsel %vm225, %v2220, 0
      %v2280 = vsel %vm225, %v2221, 0
      %v2283 = vsel %vm225, %v2222, 0
      %v2286 = vsel %vm225, %v2223, 0
      %v2289 = vsel %vm225, %v2224, 0
      %v2292 = vsel %vm225, %v2225, 0
      %v2295 = vsel %vm225, %v2226, 0
      %v2298 = vsel %vm225, %v2227, 0
      %v2301 = vsel %vm225, %v2228, 0
      %v2304 = vsel %vm225, %v2229, 0
      %v2307 = vsel %vm225, %v2230, 0
      %v2310 = vsel %vm225, %v2231, 0
      %v2313 = vsel %vm225, %v2232, 0
      %v2316 = vsel %vm225, %v2233, 0
      %v2319 = vsel %vm225, %v2234, 0
      %v2322 = vsel %vm225, %v2235, 0
      %v2325 = vsel %vm225, %v2236, 0
      %v2328 = vsel %vm225, %v2237, 0
      %v2331 = vsel %vm225, %v2238, 0
      %v2334 = vsel %vm225, %v2239, 0
      %v2337 = vsel %vm225, %v2240, 0
      %v2340 = vsel %vm225, %v2241, 0
      %v2343 = vsel %vm225, %v2242, 0
      %v2346 = vsel %vm225, %v2243, 0
      %v2349 = vsel %vm225, %v2244, 0
      %v2352 = vsel %vm225, %v2245, 0
      %v2355 = vsel %vm225, %v2246, 0
      %v2358 = vsel %vm225, %v2247, 0
      %v2361 = vsel %vm225, %v2248, 0
      %v2364 = vsel %vm225, %v2249, 0
      %v2367 = vsel %vm225, %v2250, 0
      %v2370 = vsel %vm225, %v2251, 0
      %v2373 = vsel %vm225, %v2252, 0
      %v2376 = vsel %vm225, %v2253, 0
      %v2379 = vsel %vm225, %v2254, 0
      %v2382 = vsel %vm225, %v2255, 0
      %v2385 = vsel %vm225, %v2256, 0
      %v2388 = vsel %vm225, %v2257, 0
      %v2391 = vsel %vm225, %v2258, 0
      %v2394 = vsel %vm225, %v2259, 0
      %v2397 = vsel %vm225, %v2260, 0
      %v2400 = vsel %vm225, %v2261, 0
      %v2403 = vsel %vm225, %v2262, 0
      %v2406 = vsel %vm225, %v2263, 0
      %v2409 = vsel %vm225, %v2264, 0
      %vm2411 = vcmask 1041408
      %v2413 = vsel %vm2411, %v2266, 0
      %2415 = vmatpush.msra.mxu0 0.0
      %2416 = vmatpush.msra.mxu0 0.0
      %2417 = vmatpush.msra.mxu0 0.0
      %2418 = vmatpush.msra.mxu0 0.0
      %2419 = vmatpush.msra.mxu0 0.0
      %2420 = vmatpush.msra.mxu0 0.0
      %2421 = vmatpush.msra.mxu0 0.0
      %2422 = vmatpush.msra.mxu0 0.0
      %2423 = vmatpush.msra.mxu0 0.0
      %2424 = vmatpush.msra.mxu0 0.0
      %2425 = vmatpush.msra.mxu0 0.0
      %2426 = vmatpush.msra.mxu0 0.0
      %2427 = vmatpush.msra.mxu0 0.0
      %2428 = vmatpush.msra.mxu0 0.0
      %2429 = vmatpush.msra.mxu0 0.0
      %2430 = vmatpush.msra.mxu0 %v2413
      %2431 = vmatmul.f32.gmra.mxu0 %v2268
      %v2432 = vpop.f32.mrf.mxu0
      %v2433 = vadd.f32 0.0, %v2432
      %2434 = vmatmul.f32.gmra.mxu0 %v2271
      %v2435 = vpop.f32.mrf.mxu0
      %v2436 = vadd.f32 0.0, %v2435
      %2437 = vmatmul.f32.gmra.mxu0 %v2274
      %v2438 = vpop.f32.mrf.mxu0
      %2439 = vmatmul.f32.gmra.mxu0 %v2277
      %v2440 = vpop.f32.mrf.mxu0
      %v2441 = vadd.f32 0.0, %v2440
      %2442 = vmatmul.f32.gmra.mxu0 %v2280
      %v2443 = vpop.f32.mrf.mxu0
      %v2444 = vadd.f32 0.0, %v2443
      %2445 = vmatmul.f32.gmra.mxu0 %v2283
      %v2446 = vpop.f32.mrf.mxu0
      %2447 = vmatmul.f32.gmra.mxu0 %v2286
      %v2448 = vpop.f32.mrf.mxu0
      %v2449 = vadd.f32 0.0, %v2448
      %2450 = vmatmul.f32.gmra.mxu0 %v2289
      %v2451 = vpop.f32.mrf.mxu0
      %v2452 = vadd.f32 0.0, %v2451
      %2453 = vmatmul.f32.gmra.mxu0 %v2292
      %v2454 = vpop.f32.mrf.mxu0
      %2455 = vmatmul.f32.gmra.mxu0 %v2295
      %v2456 = vpop.f32.mrf.mxu0
      %v2457 = vadd.f32 0.0, %v2456
      %2458 = vmatmul.f32.gmra.mxu0 %v2298
      %v2459 = vpop.f32.mrf.mxu0
      %v2460 = vadd.f32 0.0, %v2459
      %2461 = vmatmul.f32.gmra.mxu0 %v2301
      %v2462 = vpop.f32.mrf.mxu0
      %2463 = vmatmul.f32.gmra.mxu0 %v2304
      %v2464 = vpop.f32.mrf.mxu0
      %v2465 = vadd.f32 0.0, %v2464
      %2466 = vmatmul.f32.gmra.mxu0 %v2307
      %v2467 = vpop.f32.mrf.mxu0
      %v2468 = vadd.f32 0.0, %v2467
      %2469 = vmatmul.f32.gmra.mxu0 %v2310
      %v2470 = vpop.f32.mrf.mxu0
      %2471 = vmatmul.f32.gmra.mxu0 %v2313
      %v2472 = vpop.f32.mrf.mxu0
      %v2473 = vadd.f32 0.0, %v2472
      %2474 = vmatmul.f32.gmra.mxu0 %v2316
      %v2475 = vpop.f32.mrf.mxu0
      %v2476 = vadd.f32 0.0, %v2475
      %2477 = vmatmul.f32.gmra.mxu0 %v2319
      %v2478 = vpop.f32.mrf.mxu0
      %2479 = vmatmul.f32.gmra.mxu0 %v2322
      %v2480 = vpop.f32.mrf.mxu0
      %v2481 = vadd.f32 0.0, %v2480
      %2482 = vmatmul.f32.gmra.mxu0 %v2325
      %v2483 = vpop.f32.mrf.mxu0
      %v2484 = vadd.f32 0.0, %v2483
      %2485 = vmatmul.f32.gmra.mxu0 %v2328
      %v2486 = vpop.f32.mrf.mxu0
      %2487 = vmatmul.f32.gmra.mxu0 %v2331
      %v2488 = vpop.f32.mrf.mxu0
      %v2489 = vadd.f32 0.0, %v2488
      %2490 = vmatmul.f32.gmra.mxu0 %v2334
      %v2491 = vpop.f32.mrf.mxu0
      %v2492 = vadd.f32 0.0, %v2491
      %2493 = vmatmul.f32.gmra.mxu0 %v2337
      %v2494 = vpop.f32.mrf.mxu0
      %2495 = vmatmul.f32.gmra.mxu0 %v2340
      %v2496 = vpop.f32.mrf.mxu0
      %v2497 = vadd.f32 0.0, %v2496
      %2498 = vmatmul.f32.gmra.mxu0 %v2343
      %v2499 = vpop.f32.mrf.mxu0
      %v2500 = vadd.f32 0.0, %v2499
      %2501 = vmatmul.f32.gmra.mxu0 %v2346
      %v2502 = vpop.f32.mrf.mxu0
      %2503 = vmatmul.f32.gmra.mxu0 %v2349
      %v2504 = vpop.f32.mrf.mxu0
      %v2505 = vadd.f32 0.0, %v2504
      %2506 = vmatmul.f32.gmra.mxu0 %v2352
      %v2507 = vpop.f32.mrf.mxu0
      %v2508 = vadd.f32 0.0, %v2507
      %2509 = vmatmul.f32.gmra.mxu0 %v2355
      %v2510 = vpop.f32.mrf.mxu0
      %2511 = vmatmul.f32.gmra.mxu0 %v2358
      %v2512 = vpop.f32.mrf.mxu0
      %v2513 = vadd.f32 0.0, %v2512
      %2514 = vmatmul.f32.gmra.mxu0 %v2361
      %v2515 = vpop.f32.mrf.mxu0
      %v2516 = vadd.f32 0.0, %v2515
      %2517 = vmatmul.f32.gmra.mxu0 %v2364
      %v2518 = vpop.f32.mrf.mxu0
      %2519 = vmatmul.f32.gmra.mxu0 %v2367
      %v2520 = vpop.f32.mrf.mxu0
      %v2521 = vadd.f32 0.0, %v2520
      %2522 = vmatmul.f32.gmra.mxu0 %v2370
      %v2523 = vpop.f32.mrf.mxu0
      %v2524 = vadd.f32 0.0, %v2523
      %2525 = vmatmul.f32.gmra.mxu0 %v2373
      %v2526 = vpop.f32.mrf.mxu0
      %2527 = vmatmul.f32.gmra.mxu0 %v2376
      %v2528 = vpop.f32.mrf.mxu0
      %v2529 = vadd.f32 0.0, %v2528
      %2530 = vmatmul.f32.gmra.mxu0 %v2379
      %v2531 = vpop.f32.mrf.mxu0
      %v2532 = vadd.f32 0.0, %v2531
      %2533 = vmatmul.f32.gmra.mxu0 %v2382
      %v2534 = vpop.f32.mrf.mxu0
      %2535 = vmatmul.f32.gmra.mxu0 %v2385
      %v2536 = vpop.f32.mrf.mxu0
      %v2537 = vadd.f32 0.0, %v2536
      %2538 = vmatmul.f32.gmra.mxu0 %v2388
      %v2539 = vpop.f32.mrf.mxu0
      %v2540 = vadd.f32 0.0, %v2539
      %2541 = vmatmul.f32.gmra.mxu0 %v2391
      %v2542 = vpop.f32.mrf.mxu0
      %2543 = vmatmul.f32.gmra.mxu0 %v2394
      %v2544 = vpop.f32.mrf.mxu0
      %v2545 = vadd.f32 0.0, %v2544
      %2546 = vmatmul.f32.gmra.mxu0 %v2397
      %v2547 = vpop.f32.mrf.mxu0
      %v2548 = vadd.f32 0.0, %v2547
      %2549 = vmatmul.f32.gmra.mxu0 %v2400
      %v2550 = vpop.f32.mrf.mxu0
      %2551 = vmatmul.f32.gmra.mxu0 %v2403
      %v2552 = vpop.f32.mrf.mxu0
      %v2553 = vadd.f32 0.0, %v2552
      %2554 = vmatmul.f32.gmra.mxu0 %v2406
      %v2555 = vpop.f32.mrf.mxu0
      %v2556 = vadd.f32 0.0, %v2555
      %2557 = vmatmul.f32.gmra.mxu0 %v2409
      %v2558 = vpop.f32.mrf.mxu0
      %2559 = vdwg.mxu0
      %v2561 = vsel %vm225, %v1186, 0
      %v2564 = vsel %vm225, %v1187, 0
      %v2567 = vsel %vm225, %v1188, 0
      %v2570 = vsel %vm225, %v1189, 0
      %v2573 = vsel %vm225, %v1190, 0
      %v2576 = vsel %vm225, %v1191, 0
      %v2579 = vsel %vm225, %v1192, 0
      %v2582 = vsel %vm225, %v1193, 0
      %v2585 = vsel %vm225, %v1194, 0
      %v2588 = vsel %vm225, %v1195, 0
      %v2591 = vsel %vm225, %v1196, 0
      %v2594 = vsel %vm225, %v1197, 0
      %v2597 = vsel %vm225, %v1198, 0
      %v2600 = vsel %vm225, %v1199, 0
      %v2603 = vsel %vm225, %v1200, 0
      %v2606 = vsel %vm225, %v1201, 0
      %v2609 = vsel %vm225, %v1202, 0
      %v2612 = vsel %vm225, %v1203, 0
      %v2615 = vsel %vm225, %v1204, 0
      %v2618 = vsel %vm225, %v1205, 0
      %v2621 = vsel %vm225, %v1206, 0
      %v2624 = vsel %vm225, %v1207, 0
      %v2627 = vsel %vm225, %v1208, 0
      %v2630 = vsel %vm225, %v1209, 0
      %v2633 = vsel %vm225, %v1210, 0
      %v2636 = vsel %vm225, %v1211, 0
      %v2639 = vsel %vm225, %v1212, 0
      %v2642 = vsel %vm225, %v1213, 0
      %v2645 = vsel %vm225, %v1214, 0
      %v2648 = vsel %vm225, %v1215, 0
      %v2651 = vsel %vm225, %v1216, 0
      %v2654 = vsel %vm225, %v1217, 0
      %v2657 = vsel %vm225, %v1218, 0
      %v2660 = vsel %vm225, %v1219, 0
      %v2663 = vsel %vm225, %v1220, 0
      %v2666 = vsel %vm225, %v1221, 0
      %v2669 = vsel %vm225, %v1222, 0
      %v2672 = vsel %vm225, %v1223, 0
      %v2675 = vsel %vm225, %v1224, 0
      %v2678 = vsel %vm225, %v1225, 0
      %v2681 = vsel %vm225, %v1226, 0
      %v2684 = vsel %vm225, %v1227, 0
      %v2687 = vsel %vm225, %v1228, 0
      %v2690 = vsel %vm225, %v1229, 0
      %v2693 = vsel %vm225, %v1230, 0
      %v2696 = vsel %vm225, %v1231, 0
      %v2699 = vsel %vm225, %v1232, 0
      %v2702 = vsel %vm225, %v1233, 0
      %v2705 = vsel %vm2411, %v1234, 0
      %2707 = vmatpush.msra.mxu0 0.0
      %2708 = vmatpush.msra.mxu0 0.0
      %2709 = vmatpush.msra.mxu0 0.0
      %2710 = vmatpush.msra.mxu0 0.0
      %2711 = vmatpush.msra.mxu0 0.0
      %2712 = vmatpush.msra.mxu0 0.0
      %2713 = vmatpush.msra.mxu0 0.0
      %2714 = vmatpush.msra.mxu0 0.0
      %2715 = vmatpush.msra.mxu0 0.0
      %2716 = vmatpush.msra.mxu0 0.0
      %2717 = vmatpush.msra.mxu0 0.0
      %2718 = vmatpush.msra.mxu0 0.0
      %2719 = vmatpush.msra.mxu0 0.0
      %2720 = vmatpush.msra.mxu0 0.0
      %2721 = vmatpush.msra.mxu0 0.0
      %2722 = vmatpush.msra.mxu0 %v2705
      %2723 = vmatmul.f32.gmra.mxu0 %v2561
      %v2724 = vpop.f32.mrf.mxu0
      %v2725 = vadd.f32 %v2433, %v2724
      %2726 = vmatmul.f32.gmra.mxu0 %v2564
      %v2727 = vpop.f32.mrf.mxu0
      %v2728 = vadd.f32 %v2436, %v2727
      %2729 = vmatmul.f32.gmra.mxu0 %v2567
      %v2730 = vpop.f32.mrf.mxu0
      %2731 = vmatmul.f32.gmra.mxu0 %v2570
      %v2732 = vpop.f32.mrf.mxu0
      %v2733 = vadd.f32 %v2441, %v2732
      %2734 = vmatmul.f32.gmra.mxu0 %v2573
      %v2735 = vpop.f32.mrf.mxu0
      %v2736 = vadd.f32 %v2444, %v2735
      %2737 = vmatmul.f32.gmra.mxu0 %v2576
      %v2738 = vpop.f32.mrf.mxu0
      %2739 = vmatmul.f32.gmra.mxu0 %v2579
      %v2740 = vpop.f32.mrf.mxu0
      %v2741 = vadd.f32 %v2449, %v2740
      %2742 = vmatmul.f32.gmra.mxu0 %v2582
      %v2743 = vpop.f32.mrf.mxu0
      %v2744 = vadd.f32 %v2452, %v2743
      %2745 = vmatmul.f32.gmra.mxu0 %v2585
      %v2746 = vpop.f32.mrf.mxu0
      %2747 = vmatmul.f32.gmra.mxu0 %v2588
      %v2748 = vpop.f32.mrf.mxu0
      %v2749 = vadd.f32 %v2457, %v2748
      %2750 = vmatmul.f32.gmra.mxu0 %v2591
      %v2751 = vpop.f32.mrf.mxu0
      %v2752 = vadd.f32 %v2460, %v2751
      %2753 = vmatmul.f32.gmra.mxu0 %v2594
      %v2754 = vpop.f32.mrf.mxu0
      %2755 = vmatmul.f32.gmra.mxu0 %v2597
      %v2756 = vpop.f32.mrf.mxu0
      %v2757 = vadd.f32 %v2465, %v2756
      %2758 = vmatmul.f32.gmra.mxu0 %v2600
      %v2759 = vpop.f32.mrf.mxu0
      %v2760 = vadd.f32 %v2468, %v2759
      %2761 = vmatmul.f32.gmra.mxu0 %v2603
      %v2762 = vpop.f32.mrf.mxu0
      %2763 = vmatmul.f32.gmra.mxu0 %v2606
      %v2764 = vpop.f32.mrf.mxu0
      %v2765 = vadd.f32 %v2473, %v2764
      %2766 = vmatmul.f32.gmra.mxu0 %v2609
      %v2767 = vpop.f32.mrf.mxu0
      %v2768 = vadd.f32 %v2476, %v2767
      %2769 = vmatmul.f32.gmra.mxu0 %v2612
      %v2770 = vpop.f32.mrf.mxu0
      %2771 = vmatmul.f32.gmra.mxu0 %v2615
      %v2772 = vpop.f32.mrf.mxu0
      %v2773 = vadd.f32 %v2481, %v2772
      %2774 = vmatmul.f32.gmra.mxu0 %v2618
      %v2775 = vpop.f32.mrf.mxu0
      %v2776 = vadd.f32 %v2484, %v2775
      %2777 = vmatmul.f32.gmra.mxu0 %v2621
      %v2778 = vpop.f32.mrf.mxu0
      %2779 = vmatmul.f32.gmra.mxu0 %v2624
      %v2780 = vpop.f32.mrf.mxu0
      %v2781 = vadd.f32 %v2489, %v2780
      %2782 = vmatmul.f32.gmra.mxu0 %v2627
      %v2783 = vpop.f32.mrf.mxu0
      %v2784 = vadd.f32 %v2492, %v2783
      %2785 = vmatmul.f32.gmra.mxu0 %v2630
      %v2786 = vpop.f32.mrf.mxu0
      %2787 = vmatmul.f32.gmra.mxu0 %v2633
      %v2788 = vpop.f32.mrf.mxu0
      %v2789 = vadd.f32 %v2497, %v2788
      %2790 = vmatmul.f32.gmra.mxu0 %v2636
      %v2791 = vpop.f32.mrf.mxu0
      %v2792 = vadd.f32 %v2500, %v2791
      %2793 = vmatmul.f32.gmra.mxu0 %v2639
      %v2794 = vpop.f32.mrf.mxu0
      %2795 = vmatmul.f32.gmra.mxu0 %v2642
      %v2796 = vpop.f32.mrf.mxu0
      %v2797 = vadd.f32 %v2505, %v2796
      %2798 = vmatmul.f32.gmra.mxu0 %v2645
      %v2799 = vpop.f32.mrf.mxu0
      %v2800 = vadd.f32 %v2508, %v2799
      %2801 = vmatmul.f32.gmra.mxu0 %v2648
      %v2802 = vpop.f32.mrf.mxu0
      %2803 = vmatmul.f32.gmra.mxu0 %v2651
      %v2804 = vpop.f32.mrf.mxu0
      %v2805 = vadd.f32 %v2513, %v2804
      %2806 = vmatmul.f32.gmra.mxu0 %v2654
      %v2807 = vpop.f32.mrf.mxu0
      %v2808 = vadd.f32 %v2516, %v2807
      %2809 = vmatmul.f32.gmra.mxu0 %v2657
      %v2810 = vpop.f32.mrf.mxu0
      %2811 = vmatmul.f32.gmra.mxu0 %v2660
      %v2812 = vpop.f32.mrf.mxu0
      %v2813 = vadd.f32 %v2521, %v2812
      %2814 = vmatmul.f32.gmra.mxu0 %v2663
      %v2815 = vpop.f32.mrf.mxu0
      %v2816 = vadd.f32 %v2524, %v2815
      %2817 = vmatmul.f32.gmra.mxu0 %v2666
      %v2818 = vpop.f32.mrf.mxu0
      %2819 = vmatmul.f32.gmra.mxu0 %v2669
      %v2820 = vpop.f32.mrf.mxu0
      %v2821 = vadd.f32 %v2529, %v2820
      %2822 = vmatmul.f32.gmra.mxu0 %v2672
      %v2823 = vpop.f32.mrf.mxu0
      %v2824 = vadd.f32 %v2532, %v2823
      %2825 = vmatmul.f32.gmra.mxu0 %v2675
      %v2826 = vpop.f32.mrf.mxu0
      %2827 = vmatmul.f32.gmra.mxu0 %v2678
      %v2828 = vpop.f32.mrf.mxu0
      %v2829 = vadd.f32 %v2537, %v2828
      %2830 = vmatmul.f32.gmra.mxu0 %v2681
      %v2831 = vpop.f32.mrf.mxu0
      %v2832 = vadd.f32 %v2540, %v2831
      %2833 = vmatmul.f32.gmra.mxu0 %v2684
      %v2834 = vpop.f32.mrf.mxu0
      %2835 = vmatmul.f32.gmra.mxu0 %v2687
      %v2836 = vpop.f32.mrf.mxu0
      %v2837 = vadd.f32 %v2545, %v2836
      %2838 = vmatmul.f32.gmra.mxu0 %v2690
      %v2839 = vpop.f32.mrf.mxu0
      %v2840 = vadd.f32 %v2548, %v2839
      %2841 = vmatmul.f32.gmra.mxu0 %v2693
      %v2842 = vpop.f32.mrf.mxu0
      %2843 = vmatmul.f32.gmra.mxu0 %v2696
      %v2844 = vpop.f32.mrf.mxu0
      %v2845 = vadd.f32 %v2553, %v2844
      %2846 = vmatmul.f32.gmra.mxu0 %v2699
      %v2847 = vpop.f32.mrf.mxu0
      %v2848 = vadd.f32 %v2556, %v2847
      %2849 = vmatmul.f32.gmra.mxu0 %v2702
      %v2850 = vpop.f32.mrf.mxu0
      %2851 = vdwg.mxu0
      %2852 = vst.msk [vmem:[%s239] sm:$0xff] %vm225, %v2217
      %2853 = vst.msk [vmem:[%s239 + $0x8] sm:$0xff] %vm225, %v2218
      %2854 = vst.msk [vmem:[%s239 + $0x10] sm:$0xff] %vm225, %v2219
      %2855 = vst.msk [vmem:[%s239 + $0x18] sm:$0xff] %vm225, %v2220
      %2856 = vst.msk [vmem:[%s239 + $0x20] sm:$0xff] %vm225, %v2221
      %2857 = vst.msk [vmem:[%s239 + $0x28] sm:$0xff] %vm225, %v2222
      %2858 = vst.msk [vmem:[%s239 + $0x30] sm:$0xff] %vm225, %v2223
      %2859 = vst.msk [vmem:[%s239 + $0x38] sm:$0xff] %vm225, %v2224
      %2860 = vst.msk [vmem:[%s239 + $0x40] sm:$0xff] %vm225, %v2225
      %2861 = vst.msk [vmem:[%s239 + $0x48] sm:$0xff] %vm225, %v2226
      %2862 = vst.msk [vmem:[%s239 + $0x50] sm:$0xff] %vm225, %v2227
      %2863 = vst.msk [vmem:[%s239 + $0x58] sm:$0xff] %vm225, %v2228
      %2864 = vst.msk [vmem:[%s239 + $0x60] sm:$0xff] %vm225, %v2229
      %2865 = vst.msk [vmem:[%s239 + $0x68] sm:$0xff] %vm225, %v2230
      %2866 = vst.msk [vmem:[%s239 + $0x70] sm:$0xff] %vm225, %v2231
      %2867 = vst.msk [vmem:[%s239 + $0x78] sm:$0xff] %vm225, %v2232
      %2868 = vst.msk [vmem:[%s239 + $0x80] sm:$0xff] %vm225, %v2233
      %2869 = vst.msk [vmem:[%s239 + $0x88] sm:$0xff] %vm225, %v2234
      %2870 = vst.msk [vmem:[%s239 + $0x90] sm:$0xff] %vm225, %v2235
      %2871 = vst.msk [vmem:[%s239 + $0x98] sm:$0xff] %vm225, %v2236
      %2872 = vst.msk [vmem:[%s239 + $0xa0] sm:$0xff] %vm225, %v2237
      %2873 = vst.msk [vmem:[%s239 + $0xa8] sm:$0xff] %vm225, %v2238
      %2874 = vst.msk [vmem:[%s239 + $0xb0] sm:$0xff] %vm225, %v2239
      %2875 = vst.msk [vmem:[%s239 + $0xb8] sm:$0xff] %vm225, %v2240
      %2876 = vst.msk [vmem:[%s239 + $0xc0] sm:$0xff] %vm225, %v2241
      %2877 = vst.msk [vmem:[%s239 + $0xc8] sm:$0xff] %vm225, %v2242
      %2878 = vst.msk [vmem:[%s239 + $0xd0] sm:$0xff] %vm225, %v2243
      %2879 = vst.msk [vmem:[%s239 + $0xd8] sm:$0xff] %vm225, %v2244
      %2880 = vst.msk [vmem:[%s239 + $0xe0] sm:$0xff] %vm225, %v2245
      %2881 = vst.msk [vmem:[%s239 + $0xe8] sm:$0xff] %vm225, %v2246
      %2882 = vst.msk [vmem:[%s239 + $0xf0] sm:$0xff] %vm225, %v2247
      %2883 = vst.msk [vmem:[%s239 + $0xf8] sm:$0xff] %vm225, %v2248
      %2884 = vst.msk [vmem:[%s239 + $0x100] sm:$0xff] %vm225, %v2249
      %2885 = vst.msk [vmem:[%s239 + $0x108] sm:$0xff] %vm225, %v2250
      %2886 = vst.msk [vmem:[%s239 + $0x110] sm:$0xff] %vm225, %v2251
      %2887 = vst.msk [vmem:[%s239 + $0x118] sm:$0xff] %vm225, %v2252
      %2888 = vst.msk [vmem:[%s239 + $0x120] sm:$0xff] %vm225, %v2253
      %2889 = vst.msk [vmem:[%s239 + $0x128] sm:$0xff] %vm225, %v2254
      %2890 = vst.msk [vmem:[%s239 + $0x130] sm:$0xff] %vm225, %v2255
      %2891 = vst.msk [vmem:[%s239 + $0x138] sm:$0xff] %vm225, %v2256
      %2892 = vst.msk [vmem:[%s239 + $0x140] sm:$0xff] %vm225, %v2257
      %2893 = vst.msk [vmem:[%s239 + $0x148] sm:$0xff] %vm225, %v2258
      %2894 = vst.msk [vmem:[%s239 + $0x150] sm:$0xff] %vm225, %v2259
      %2895 = vst.msk [vmem:[%s239 + $0x158] sm:$0xff] %vm225, %v2260
      %2896 = vst.msk [vmem:[%s239 + $0x160] sm:$0xff] %vm225, %v2261
      %2897 = vst.msk [vmem:[%s239 + $0x168] sm:$0xff] %vm225, %v2262
      %2898 = vst.msk [vmem:[%s239 + $0x170] sm:$0xff] %vm225, %v2263
      %2899 = vst.msk [vmem:[%s239 + $0x178] sm:$0xff] %vm225, %v2264
      %v2900 = vld [vmem:[#allocation2] sm:$0xff]
      %v2901 = vld [vmem:[#allocation2 + $0x8] sm:$0xff]
      %v2902 = vld [vmem:[#allocation2 + $0x10] sm:$0xff]
      %v2903 = vld [vmem:[#allocation2 + $0x18] sm:$0xff]
      %v2904 = vld [vmem:[#allocation2 + $0x20] sm:$0xff]
      %v2905 = vld [vmem:[#allocation2 + $0x28] sm:$0xff]
      %v2906 = vld [vmem:[#allocation2 + $0x30] sm:$0xff]
      %v2907 = vld [vmem:[#allocation2 + $0x38] sm:$0xff]
      %v2908 = vld [vmem:[#allocation2 + $0x40] sm:$0xff]
      %v2909 = vld [vmem:[#allocation2 + $0x48] sm:$0xff]
      %v2910 = vld [vmem:[#allocation2 + $0x50] sm:$0xff]
      %v2911 = vld [vmem:[#allocation2 + $0x58] sm:$0xff]
      %v2912 = vld [vmem:[#allocation2 + $0x60] sm:$0xff]
      %v2913 = vld [vmem:[#allocation2 + $0x68] sm:$0xff]
      %v2914 = vld [vmem:[#allocation2 + $0x70] sm:$0xff]
      %v2915 = vld [vmem:[#allocation2 + $0x78] sm:$0xff]
      %v2916 = vld [vmem:[#allocation2 + $0x80] sm:$0xff]
      %v2917 = vld [vmem:[#allocation2 + $0x88] sm:$0xff]
      %v2918 = vld [vmem:[#allocation2 + $0x90] sm:$0xff]
      %v2919 = vld [vmem:[#allocation2 + $0x98] sm:$0xff]
      %v2920 = vld [vmem:[#allocation2 + $0xa0] sm:$0xff]
      %v2921 = vld [vmem:[#allocation2 + $0xa8] sm:$0xff]
      %v2922 = vld [vmem:[#allocation2 + $0xb0] sm:$0xff]
      %v2923 = vld [vmem:[#allocation2 + $0xb8] sm:$0xff]
      %v2924 = vld [vmem:[#allocation2 + $0xc0] sm:$0xff]
      %v2925 = vld [vmem:[#allocation2 + $0xc8] sm:$0xff]
      %v2926 = vld [vmem:[#allocation2 + $0xd0] sm:$0xff]
      %v2927 = vld [vmem:[#allocation2 + $0xd8] sm:$0xff]
      %v2928 = vld [vmem:[#allocation2 + $0xe0] sm:$0xff]
      %v2929 = vld [vmem:[#allocation2 + $0xe8] sm:$0xff]
      %v2930 = vld [vmem:[#allocation2 + $0xf0] sm:$0xff]
      %v2931 = vld [vmem:[#allocation2 + $0xf8] sm:$0xff]
      %v2932 = vld [vmem:[#allocation2 + $0x100] sm:$0xff]
      %v2933 = vld [vmem:[#allocation2 + $0x108] sm:$0xff]
      %v2934 = vld [vmem:[#allocation2 + $0x110] sm:$0xff]
      %v2935 = vld [vmem:[#allocation2 + $0x118] sm:$0xff]
      %v2936 = vld [vmem:[#allocation2 + $0x120] sm:$0xff]
      %v2937 = vld [vmem:[#allocation2 + $0x128] sm:$0xff]
      %v2938 = vld [vmem:[#allocation2 + $0x130] sm:$0xff]
      %v2939 = vld [vmem:[#allocation2 + $0x138] sm:$0xff]
      %v2940 = vld [vmem:[#allocation2 + $0x140] sm:$0xff]
      %v2941 = vld [vmem:[#allocation2 + $0x148] sm:$0xff]
      %v2942 = vld [vmem:[#allocation2 + $0x150] sm:$0xff]
      %v2943 = vld [vmem:[#allocation2 + $0x158] sm:$0xff]
      %v2944 = vld [vmem:[#allocation2 + $0x160] sm:$0xff]
      %v2945 = vld [vmem:[#allocation2 + $0x168] sm:$0xff]
      %v2946 = vld [vmem:[#allocation2 + $0x170] sm:$0xff]
      %v2947 = vld [vmem:[#allocation2 + $0x178] sm:$0xff]
      %v2948 = vld [vmem:[#allocation2 + $0x180] sm:$0xff]
      %v2949 = vld [vmem:[#allocation2 + $0x188] sm:$0xff]
      %v2950 = vld [vmem:[#allocation2 + $0x190] sm:$0xff]
      %v2951 = vld [vmem:[#allocation2 + $0x198] sm:$0xff]
      %v2952 = vld [vmem:[#allocation2 + $0x1a0] sm:$0xff]
      %v2953 = vld [vmem:[#allocation2 + $0x1a8] sm:$0xff]
      %v2954 = vld [vmem:[#allocation2 + $0x1b0] sm:$0xff]
      %v2955 = vld [vmem:[#allocation2 + $0x1b8] sm:$0xff]
      %v2956 = vld [vmem:[#allocation2 + $0x1c0] sm:$0xff]
      %v2957 = vld [vmem:[#allocation2 + $0x1c8] sm:$0xff]
      %v2958 = vld [vmem:[#allocation2 + $0x1d0] sm:$0xff]
      %v2959 = vld [vmem:[#allocation2 + $0x1d8] sm:$0xff]
      %v2960 = vrot.slane %v2900, 7
      %v2961 = vrot.slane %v2903, 7
      %v2962 = vrot.slane %v2906, 7
      %v2963 = vrot.slane %v2909, 7
      %v2964 = vrot.slane %v2912, 7
      %v2965 = vrot.slane %v2915, 7
      %v2966 = vrot.slane %v2918, 7
      %v2967 = vrot.slane %v2921, 7
      %v2968 = vrot.slane %v2924, 7
      %v2969 = vrot.slane %v2927, 7
      %v2970 = vrot.slane %v2930, 7
      %v2971 = vrot.slane %v2933, 7
      %v2972 = vrot.slane %v2936, 7
      %v2973 = vrot.slane %v2939, 7
      %v2974 = vrot.slane %v2942, 7
      %v2975 = vrot.slane %v2945, 7
      %v2976 = vrot.slane %v2948, 7
      %v2977 = vrot.slane %v2951, 7
      %v2978 = vrot.slane %v2954, 7
      %v2979 = vrot.slane %v2957, 7
      %v2980 = vrot.slane %v2901, 7
      %v2981 = vrot.slane %v2904, 7
      %v2982 = vrot.slane %v2907, 7
      %v2983 = vrot.slane %v2910, 7
      %v2984 = vrot.slane %v2913, 7
      %v2985 = vrot.slane %v2916, 7
      %v2986 = vrot.slane %v2919, 7
      %v2987 = vrot.slane %v2922, 7
      %v2988 = vrot.slane %v2925, 7
      %v2989 = vrot.slane %v2928, 7
      %v2990 = vrot.slane %v2931, 7
      %v2991 = vrot.slane %v2934, 7
      %v2992 = vrot.slane %v2937, 7
      %v2993 = vrot.slane %v2940, 7
      %v2994 = vrot.slane %v2943, 7
      %v2995 = vrot.slane %v2946, 7
      %v2996 = vrot.slane %v2949, 7
      %v2997 = vrot.slane %v2952, 7
      %v2998 = vrot.slane %v2955, 7
      %v2999 = vrot.slane %v2958, 7
      %v3000 = vrot.slane %v2902, 7
      %v3001 = vrot.slane %v2905, 7
      %v3002 = vrot.slane %v2908, 7
      %v3003 = vrot.slane %v2911, 7
      %v3004 = vrot.slane %v2914, 7
      %v3005 = vrot.slane %v2917, 7
      %v3006 = vrot.slane %v2920, 7
      %v3007 = vrot.slane %v2923, 7
      %v3008 = vrot.slane %v2926, 7
      %v3009 = vrot.slane %v2929, 7
      %v3010 = vrot.slane %v2932, 7
      %v3011 = vrot.slane %v2935, 7
      %v3012 = vrot.slane %v2938, 7
      %v3013 = vrot.slane %v2941, 7
      %v3014 = vrot.slane %v2944, 7
      %v3015 = vrot.slane %v2947, 7
      %v3016 = vrot.slane %v2950, 7
      %v3017 = vrot.slane %v2953, 7
      %v3018 = vrot.slane %v2956, 7
      %v3019 = vrot.slane %v2959, 7
      %v3020 = vsel %vm1355, %v2980, %v3000
      %v3021 = vsel %vm1355, %v2981, %v3001
      %v3022 = vsel %vm1355, %v2982, %v3002
      %v3023 = vsel %vm1355, %v2983, %v3003
      %v3024 = vsel %vm1355, %v2984, %v3004
      %v3025 = vsel %vm1355, %v2985, %v3005
      %v3026 = vsel %vm1355, %v2986, %v3006
      %v3027 = vsel %vm1355, %v2987, %v3007
      %v3028 = vsel %vm1355, %v2988, %v3008
      %v3029 = vsel %vm1355, %v2989, %v3009
      %v3030 = vsel %vm1355, %v2990, %v3010
      %v3031 = vsel %vm1355, %v2991, %v3011
      %v3032 = vsel %vm1355, %v2992, %v3012
      %v3033 = vsel %vm1355, %v2993, %v3013
      %v3034 = vsel %vm1355, %v2994, %v3014
      %v3035 = vsel %vm1355, %v2995, %v3015
      %v3036 = vsel %vm1355, %v2996, %v3016
      %v3037 = vsel %vm1355, %v2997, %v3017
      %v3038 = vsel %vm1355, %v2998, %v3018
      %v3039 = vsel %vm1355, %v2999, %v3019
      %v3040 = vsel %vm1355, %v2960, %v2980
      %v3041 = vsel %vm1355, %v2961, %v2981
      %v3042 = vsel %vm1355, %v2962, %v2982
      %v3043 = vsel %vm1355, %v2963, %v2983
      %v3044 = vsel %vm1355, %v2964, %v2984
      %v3045 = vsel %vm1355, %v2965, %v2985
      %v3046 = vsel %vm1355, %v2966, %v2986
      %v3047 = vsel %vm1355, %v2967, %v2987
      %v3048 = vsel %vm1355, %v2968, %v2988
      %v3049 = vsel %vm1355, %v2969, %v2989
      %v3050 = vsel %vm1355, %v2970, %v2990
      %v3051 = vsel %vm1355, %v2971, %v2991
      %v3052 = vsel %vm1355, %v2972, %v2992
      %v3053 = vsel %vm1355, %v2973, %v2993
      %v3054 = vsel %vm1355, %v2974, %v2994
      %v3055 = vsel %vm1355, %v2975, %v2995
      %v3056 = vsel %vm1355, %v2976, %v2996
      %v3057 = vsel %vm1355, %v2977, %v2997
      %v3058 = vsel %vm1355, %v2978, %v2998
      %v3059 = vsel %vm1355, %v2979, %v2999
      %v3060 = vsel %vm1355, %v3000, %v2960
      %v3061 = vsel %vm1355, %v3001, %v2961
      %v3062 = vsel %vm1355, %v3002, %v2962
      %v3063 = vsel %vm1355, %v3003, %v2963
      %v3064 = vsel %vm1355, %v3004, %v2964
      %v3065 = vsel %vm1355, %v3005, %v2965
      %v3066 = vsel %vm1355, %v3006, %v2966
      %v3067 = vsel %vm1355, %v3007, %v2967
      %v3068 = vsel %vm1355, %v3008, %v2968
      %v3069 = vsel %vm1355, %v3009, %v2969
      %v3070 = vsel %vm1355, %v3010, %v2970
      %v3071 = vsel %vm1355, %v3011, %v2971
      %v3072 = vsel %vm1355, %v3012, %v2972
      %v3073 = vsel %vm1355, %v3013, %v2973
      %v3074 = vsel %vm1355, %v3014, %v2974
      %v3075 = vsel %vm1355, %v3015, %v2975
      %v3076 = vsel %vm1355, %v3016, %v2976
      %v3077 = vsel %vm1355, %v3017, %v2977
      %v3078 = vsel %vm1355, %v3018, %v2978
      %v3079 = vsel %vm1355, %v3019, %v2979
      %v3080 = vmax.f32 %v2900, %v3060
      %v3081 = vmax.f32 %v2901, %v3040
      %v3082 = vmax.f32 %v2902, %v3020
      %v3083 = vmax.f32 %v2903, %v3061
      %v3084 = vmax.f32 %v2904, %v3041
      %v3085 = vmax.f32 %v2905, %v3021
      %v3086 = vmax.f32 %v2906, %v3062
      %v3087 = vmax.f32 %v2907, %v3042
      %v3088 = vmax.f32 %v2908, %v3022
      %v3089 = vmax.f32 %v2909, %v3063
      %v3090 = vmax.f32 %v2910, %v3043
      %v3091 = vmax.f32 %v2911, %v3023
      %v3092 = vmax.f32 %v2912, %v3064
      %v3093 = vmax.f32 %v2913, %v3044
      %v3094 = vmax.f32 %v2914, %v3024
      %v3095 = vmax.f32 %v2915, %v3065
      %v3096 = vmax.f32 %v2916, %v3045
      %v3097 = vmax.f32 %v2917, %v3025
      %v3098 = vmax.f32 %v2918, %v3066
      %v3099 = vmax.f32 %v2919, %v3046
      %v3100 = vmax.f32 %v2920, %v3026
      %v3101 = vmax.f32 %v2921, %v3067
      %v3102 = vmax.f32 %v2922, %v3047
      %v3103 = vmax.f32 %v2923, %v3027
      %v3104 = vmax.f32 %v2924, %v3068
      %v3105 = vmax.f32 %v2925, %v3048
      %v3106 = vmax.f32 %v2926, %v3028
      %v3107 = vmax.f32 %v2927, %v3069
      %v3108 = vmax.f32 %v2928, %v3049
      %v3109 = vmax.f32 %v2929, %v3029
      %v3110 = vmax.f32 %v2930, %v3070
      %v3111 = vmax.f32 %v2931, %v3050
      %v3112 = vmax.f32 %v2932, %v3030
      %v3113 = vmax.f32 %v2933, %v3071
      %v3114 = vmax.f32 %v2934, %v3051
      %v3115 = vmax.f32 %v2935, %v3031
      %v3116 = vmax.f32 %v2936, %v3072
      %v3117 = vmax.f32 %v2937, %v3052
      %v3118 = vmax.f32 %v2938, %v3032
      %v3119 = vmax.f32 %v2939, %v3073
      %v3120 = vmax.f32 %v2940, %v3053
      %v3121 = vmax.f32 %v2941, %v3033
      %v3122 = vmax.f32 %v2942, %v3074
      %v3123 = vmax.f32 %v2943, %v3054
      %v3124 = vmax.f32 %v2944, %v3034
      %v3125 = vmax.f32 %v2945, %v3075
      %v3126 = vmax.f32 %v2946, %v3055
      %v3127 = vmax.f32 %v2947, %v3035
      %v3128 = vmax.f32 %v2948, %v3076
      %v3129 = vmax.f32 %v2949, %v3056
      %v3130 = vmax.f32 %v2950, %v3036
      %v3131 = vmax.f32 %v2951, %v3077
      %v3132 = vmax.f32 %v2952, %v3057
      %v3133 = vmax.f32 %v2953, %v3037
      %v3134 = vmax.f32 %v2954, %v3078
      %v3135 = vmax.f32 %v2955, %v3058
      %v3136 = vmax.f32 %v2956, %v3038
      %v3137 = vmax.f32 %v2957, %v3079
      %v3138 = vmax.f32 %v2958, %v3059
      %v3139 = vmax.f32 %v2959, %v3039
      %v3140 = vrot.slane %v2900, 6
      %v3141 = vrot.slane %v2903, 6
      %v3142 = vrot.slane %v2906, 6
      %v3143 = vrot.slane %v2909, 6
      %v3144 = vrot.slane %v2912, 6
      %v3145 = vrot.slane %v2915, 6
      %v3146 = vrot.slane %v2918, 6
      %v3147 = vrot.slane %v2921, 6
      %v3148 = vrot.slane %v2924, 6
      %v3149 = vrot.slane %v2927, 6
      %v3150 = vrot.slane %v2930, 6
      %v3151 = vrot.slane %v2933, 6
      %v3152 = vrot.slane %v2936, 6
      %v3153 = vrot.slane %v2939, 6
      %v3154 = vrot.slane %v2942, 6
      %v3155 = vrot.slane %v2945, 6
      %v3156 = vrot.slane %v2948, 6
      %v3157 = vrot.slane %v2951, 6
      %v3158 = vrot.slane %v2954, 6
      %v3159 = vrot.slane %v2957, 6
      %v3160 = vrot.slane %v2901, 6
      %v3161 = vrot.slane %v2904, 6
      %v3162 = vrot.slane %v2907, 6
      %v3163 = vrot.slane %v2910, 6
      %v3164 = vrot.slane %v2913, 6
      %v3165 = vrot.slane %v2916, 6
      %v3166 = vrot.slane %v2919, 6
      %v3167 = vrot.slane %v2922, 6
      %v3168 = vrot.slane %v2925, 6
      %v3169 = vrot.slane %v2928, 6
      %v3170 = vrot.slane %v2931, 6
      %v3171 = vrot.slane %v2934, 6
      %v3172 = vrot.slane %v2937, 6
      %v3173 = vrot.slane %v2940, 6
      %v3174 = vrot.slane %v2943, 6
      %v3175 = vrot.slane %v2946, 6
      %v3176 = vrot.slane %v2949, 6
      %v3177 = vrot.slane %v2952, 6
      %v3178 = vrot.slane %v2955, 6
      %v3179 = vrot.slane %v2958, 6
      %v3180 = vrot.slane %v2902, 6
      %v3181 = vrot.slane %v2905, 6
      %v3182 = vrot.slane %v2908, 6
      %v3183 = vrot.slane %v2911, 6
      %v3184 = vrot.slane %v2914, 6
      %v3185 = vrot.slane %v2917, 6
      %v3186 = vrot.slane %v2920, 6
      %v3187 = vrot.slane %v2923, 6
      %v3188 = vrot.slane %v2926, 6
      %v3189 = vrot.slane %v2929, 6
      %v3190 = vrot.slane %v2932, 6
      %v3191 = vrot.slane %v2935, 6
      %v3192 = vrot.slane %v2938, 6
      %v3193 = vrot.slane %v2941, 6
      %v3194 = vrot.slane %v2944, 6
      %v3195 = vrot.slane %v2947, 6
      %v3196 = vrot.slane %v2950, 6
      %v3197 = vrot.slane %v2953, 6
      %v3198 = vrot.slane %v2956, 6
      %v3199 = vrot.slane %v2959, 6
      %v3200 = vsel %vm1536, %v3160, %v3180
      %v3201 = vsel %vm1536, %v3161, %v3181
      %v3202 = vsel %vm1536, %v3162, %v3182
      %v3203 = vsel %vm1536, %v3163, %v3183
      %v3204 = vsel %vm1536, %v3164, %v3184
      %v3205 = vsel %vm1536, %v3165, %v3185
      %v3206 = vsel %vm1536, %v3166, %v3186
      %v3207 = vsel %vm1536, %v3167, %v3187
      %v3208 = vsel %vm1536, %v3168, %v3188
      %v3209 = vsel %vm1536, %v3169, %v3189
      %v3210 = vsel %vm1536, %v3170, %v3190
      %v3211 = vsel %vm1536, %v3171, %v3191
      %v3212 = vsel %vm1536, %v3172, %v3192
      %v3213 = vsel %vm1536, %v3173, %v3193
      %v3214 = vsel %vm1536, %v3174, %v3194
      %v3215 = vsel %vm1536, %v3175, %v3195
      %v3216 = vsel %vm1536, %v3176, %v3196
      %v3217 = vsel %vm1536, %v3177, %v3197
      %v3218 = vsel %vm1536, %v3178, %v3198
      %v3219 = vsel %vm1536, %v3179, %v3199
      %v3220 = vsel %vm1536, %v3140, %v3160
      %v3221 = vsel %vm1536, %v3141, %v3161
      %v3222 = vsel %vm1536, %v3142, %v3162
      %v3223 = vsel %vm1536, %v3143, %v3163
      %v3224 = vsel %vm1536, %v3144, %v3164
      %v3225 = vsel %vm1536, %v3145, %v3165
      %v3226 = vsel %vm1536, %v3146, %v3166
      %v3227 = vsel %vm1536, %v3147, %v3167
      %v3228 = vsel %vm1536, %v3148, %v3168
      %v3229 = vsel %vm1536, %v3149, %v3169
      %v3230 = vsel %vm1536, %v3150, %v3170
      %v3231 = vsel %vm1536, %v3151, %v3171
      %v3232 = vsel %vm1536, %v3152, %v3172
      %v3233 = vsel %vm1536, %v3153, %v3173
      %v3234 = vsel %vm1536, %v3154, %v3174
      %v3235 = vsel %vm1536, %v3155, %v3175
      %v3236 = vsel %vm1536, %v3156, %v3176
      %v3237 = vsel %vm1536, %v3157, %v3177
      %v3238 = vsel %vm1536, %v3158, %v3178
      %v3239 = vsel %vm1536, %v3159, %v3179
      %v3240 = vsel %vm1536, %v3180, %v3140
      %v3241 = vsel %vm1536, %v3181, %v3141
      %v3242 = vsel %vm1536, %v3182, %v3142
      %v3243 = vsel %vm1536, %v3183, %v3143
      %v3244 = vsel %vm1536, %v3184, %v3144
      %v3245 = vsel %vm1536, %v3185, %v3145
      %v3246 = vsel %vm1536, %v3186, %v3146
      %v3247 = vsel %vm1536, %v3187, %v3147
      %v3248 = vsel %vm1536, %v3188, %v3148
      %v3249 = vsel %vm1536, %v3189, %v3149
      %v3250 = vsel %vm1536, %v3190, %v3150
      %v3251 = vsel %vm1536, %v3191, %v3151
      %v3252 = vsel %vm1536, %v3192, %v3152
      %v3253 = vsel %vm1536, %v3193, %v3153
      %v3254 = vsel %vm1536, %v3194, %v3154
      %v3255 = vsel %vm1536, %v3195, %v3155
      %v3256 = vsel %vm1536, %v3196, %v3156
      %v3257 = vsel %vm1536, %v3197, %v3157
      %v3258 = vsel %vm1536, %v3198, %v3158
      %v3259 = vsel %vm1536, %v3199, %v3159
      %v3260 = vmax.f32 %v3080, %v3240
      %v3261 = vmax.f32 %v3081, %v3220
      %v3262 = vmax.f32 %v3082, %v3200
      %v3263 = vmax.f32 %v3083, %v3241
      %v3264 = vmax.f32 %v3084, %v3221
      %v3265 = vmax.f32 %v3085, %v3201
      %v3266 = vmax.f32 %v3086, %v3242
      %v3267 = vmax.f32 %v3087, %v3222
      %v3268 = vmax.f32 %v3088, %v3202
      %v3269 = vmax.f32 %v3089, %v3243
      %v3270 = vmax.f32 %v3090, %v3223
      %v3271 = vmax.f32 %v3091, %v3203
      %v3272 = vmax.f32 %v3092, %v3244
      %v3273 = vmax.f32 %v3093, %v3224
      %v3274 = vmax.f32 %v3094, %v3204
      %v3275 = vmax.f32 %v3095, %v3245
      %v3276 = vmax.f32 %v3096, %v3225
      %v3277 = vmax.f32 %v3097, %v3205
      %v3278 = vmax.f32 %v3098, %v3246
      %v3279 = vmax.f32 %v3099, %v3226
      %v3280 = vmax.f32 %v3100, %v3206
      %v3281 = vmax.f32 %v3101, %v3247
      %v3282 = vmax.f32 %v3102, %v3227
      %v3283 = vmax.f32 %v3103, %v3207
      %v3284 = vmax.f32 %v3104, %v3248
      %v3285 = vmax.f32 %v3105, %v3228
      %v3286 = vmax.f32 %v3106, %v3208
      %v3287 = vmax.f32 %v3107, %v3249
      %v3288 = vmax.f32 %v3108, %v3229
      %v3289 = vmax.f32 %v3109, %v3209
      %v3290 = vmax.f32 %v3110, %v3250
      %v3291 = vmax.f32 %v3111, %v3230
      %v3292 = vmax.f32 %v3112, %v3210
      %v3293 = vmax.f32 %v3113, %v3251
      %v3294 = vmax.f32 %v3114, %v3231
      %v3295 = vmax.f32 %v3115, %v3211
      %v3296 = vmax.f32 %v3116, %v3252
      %v3297 = vmax.f32 %v3117, %v3232
      %v3298 = vmax.f32 %v3118, %v3212
      %v3299 = vmax.f32 %v3119, %v3253
      %v3300 = vmax.f32 %v3120, %v3233
      %v3301 = vmax.f32 %v3121, %v3213
      %v3302 = vmax.f32 %v3122, %v3254
      %v3303 = vmax.f32 %v3123, %v3234
      %v3304 = vmax.f32 %v3124, %v3214
      %v3305 = vmax.f32 %v3125, %v3255
      %v3306 = vmax.f32 %v3126, %v3235
      %v3307 = vmax.f32 %v3127, %v3215
      %v3308 = vmax.f32 %v3128, %v3256
      %v3309 = vmax.f32 %v3129, %v3236
      %v3310 = vmax.f32 %v3130, %v3216
      %v3311 = vmax.f32 %v3131, %v3257
      %v3312 = vmax.f32 %v3132, %v3237
      %v3313 = vmax.f32 %v3133, %v3217
      %v3314 = vmax.f32 %v3134, %v3258
      %v3315 = vmax.f32 %v3135, %v3238
      %v3316 = vmax.f32 %v3136, %v3218
      %v3317 = vmax.f32 %v3137, %v3259
      %v3318 = vmax.f32 %v3138, %v3239
      %v3319 = vmax.f32 %v3139, %v3219
      %v3320 = vrot.slane %v2900, 1
      %v3321 = vrot.slane %v2903, 1
      %v3322 = vrot.slane %v2906, 1
      %v3323 = vrot.slane %v2909, 1
      %v3324 = vrot.slane %v2912, 1
      %v3325 = vrot.slane %v2915, 1
      %v3326 = vrot.slane %v2918, 1
      %v3327 = vrot.slane %v2921, 1
      %v3328 = vrot.slane %v2924, 1
      %v3329 = vrot.slane %v2927, 1
      %v3330 = vrot.slane %v2930, 1
      %v3331 = vrot.slane %v2933, 1
      %v3332 = vrot.slane %v2936, 1
      %v3333 = vrot.slane %v2939, 1
      %v3334 = vrot.slane %v2942, 1
      %v3335 = vrot.slane %v2945, 1
      %v3336 = vrot.slane %v2948, 1
      %v3337 = vrot.slane %v2951, 1
      %v3338 = vrot.slane %v2954, 1
      %v3339 = vrot.slane %v2957, 1
      %v3340 = vrot.slane %v2901, 1
      %v3341 = vrot.slane %v2904, 1
      %v3342 = vrot.slane %v2907, 1
      %v3343 = vrot.slane %v2910, 1
      %v3344 = vrot.slane %v2913, 1
      %v3345 = vrot.slane %v2916, 1
      %v3346 = vrot.slane %v2919, 1
      %v3347 = vrot.slane %v2922, 1
      %v3348 = vrot.slane %v2925, 1
      %v3349 = vrot.slane %v2928, 1
      %v3350 = vrot.slane %v2931, 1
      %v3351 = vrot.slane %v2934, 1
      %v3352 = vrot.slane %v2937, 1
      %v3353 = vrot.slane %v2940, 1
      %v3354 = vrot.slane %v2943, 1
      %v3355 = vrot.slane %v2946, 1
      %v3356 = vrot.slane %v2949, 1
      %v3357 = vrot.slane %v2952, 1
      %v3358 = vrot.slane %v2955, 1
      %v3359 = vrot.slane %v2958, 1
      %v3360 = vrot.slane %v2902, 1
      %v3361 = vrot.slane %v2905, 1
      %v3362 = vrot.slane %v2908, 1
      %v3363 = vrot.slane %v2911, 1
      %v3364 = vrot.slane %v2914, 1
      %v3365 = vrot.slane %v2917, 1
      %v3366 = vrot.slane %v2920, 1
      %v3367 = vrot.slane %v2923, 1
      %v3368 = vrot.slane %v2926, 1
      %v3369 = vrot.slane %v2929, 1
      %v3370 = vrot.slane %v2932, 1
      %v3371 = vrot.slane %v2935, 1
      %v3372 = vrot.slane %v2938, 1
      %v3373 = vrot.slane %v2941, 1
      %v3374 = vrot.slane %v2944, 1
      %v3375 = vrot.slane %v2947, 1
      %v3376 = vrot.slane %v2950, 1
      %v3377 = vrot.slane %v2953, 1
      %v3378 = vrot.slane %v2956, 1
      %v3379 = vrot.slane %v2959, 1
      %v3380 = vsel %vm1717, %v3340, %v3360
      %v3381 = vsel %vm1717, %v3341, %v3361
      %v3382 = vsel %vm1717, %v3342, %v3362
      %v3383 = vsel %vm1717, %v3343, %v3363
      %v3384 = vsel %vm1717, %v3344, %v3364
      %v3385 = vsel %vm1717, %v3345, %v3365
      %v3386 = vsel %vm1717, %v3346, %v3366
      %v3387 = vsel %vm1717, %v3347, %v3367
      %v3388 = vsel %vm1717, %v3348, %v3368
      %v3389 = vsel %vm1717, %v3349, %v3369
      %v3390 = vsel %vm1717, %v3350, %v3370
      %v3391 = vsel %vm1717, %v3351, %v3371
      %v3392 = vsel %vm1717, %v3352, %v3372
      %v3393 = vsel %vm1717, %v3353, %v3373
      %v3394 = vsel %vm1717, %v3354, %v3374
      %v3395 = vsel %vm1717, %v3355, %v3375
      %v3396 = vsel %vm1717, %v3356, %v3376
      %v3397 = vsel %vm1717, %v3357, %v3377
      %v3398 = vsel %vm1717, %v3358, %v3378
      %v3399 = vsel %vm1717, %v3359, %v3379
      %v3400 = vsel %vm1717, %v3320, %v3340
      %v3401 = vsel %vm1717, %v3321, %v3341
      %v3402 = vsel %vm1717, %v3322, %v3342
      %v3403 = vsel %vm1717, %v3323, %v3343
      %v3404 = vsel %vm1717, %v3324, %v3344
      %v3405 = vsel %vm1717, %v3325, %v3345
      %v3406 = vsel %vm1717, %v3326, %v3346
      %v3407 = vsel %vm1717, %v3327, %v3347
      %v3408 = vsel %vm1717, %v3328, %v3348
      %v3409 = vsel %vm1717, %v3329, %v3349
      %v3410 = vsel %vm1717, %v3330, %v3350
      %v3411 = vsel %vm1717, %v3331, %v3351
      %v3412 = vsel %vm1717, %v3332, %v3352
      %v3413 = vsel %vm1717, %v3333, %v3353
      %v3414 = vsel %vm1717, %v3334, %v3354
      %v3415 = vsel %vm1717, %v3335, %v3355
      %v3416 = vsel %vm1717, %v3336, %v3356
      %v3417 = vsel %vm1717, %v3337, %v3357
      %v3418 = vsel %vm1717, %v3338, %v3358
      %v3419 = vsel %vm1717, %v3339, %v3359
      %v3420 = vsel %vm1717, %v3360, %v3320
      %v3421 = vsel %vm1717, %v3361, %v3321
      %v3422 = vsel %vm1717, %v3362, %v3322
      %v3423 = vsel %vm1717, %v3363, %v3323
      %v3424 = vsel %vm1717, %v3364, %v3324
      %v3425 = vsel %vm1717, %v3365, %v3325
      %v3426 = vsel %vm1717, %v3366, %v3326
      %v3427 = vsel %vm1717, %v3367, %v3327
      %v3428 = vsel %vm1717, %v3368, %v3328
      %v3429 = vsel %vm1717, %v3369, %v3329
      %v3430 = vsel %vm1717, %v3370, %v3330
      %v3431 = vsel %vm1717, %v3371, %v3331
      %v3432 = vsel %vm1717, %v3372, %v3332
      %v3433 = vsel %vm1717, %v3373, %v3333
      %v3434 = vsel %vm1717, %v3374, %v3334
      %v3435 = vsel %vm1717, %v3375, %v3335
      %v3436 = vsel %vm1717, %v3376, %v3336
      %v3437 = vsel %vm1717, %v3377, %v3337
      %v3438 = vsel %vm1717, %v3378, %v3338
      %v3439 = vsel %vm1717, %v3379, %v3339
      %v3440 = vmax.f32 %v3260, %v3400
      %v3441 = vmax.f32 %v3261, %v3380
      %v3442 = vmax.f32 %v3262, %v3420
      %v3443 = vmax.f32 %v3263, %v3401
      %v3444 = vmax.f32 %v3264, %v3381
      %v3445 = vmax.f32 %v3265, %v3421
      %v3446 = vmax.f32 %v3266, %v3402
      %v3447 = vmax.f32 %v3267, %v3382
      %v3448 = vmax.f32 %v3268, %v3422
      %v3449 = vmax.f32 %v3269, %v3403
      %v3450 = vmax.f32 %v3270, %v3383
      %v3451 = vmax.f32 %v3271, %v3423
      %v3452 = vmax.f32 %v3272, %v3404
      %v3453 = vmax.f32 %v3273, %v3384
      %v3454 = vmax.f32 %v3274, %v3424
      %v3455 = vmax.f32 %v3275, %v3405
      %v3456 = vmax.f32 %v3276, %v3385
      %v3457 = vmax.f32 %v3277, %v3425
      %v3458 = vmax.f32 %v3278, %v3406
      %v3459 = vmax.f32 %v3279, %v3386
      %v3460 = vmax.f32 %v3280, %v3426
      %v3461 = vmax.f32 %v3281, %v3407
      %v3462 = vmax.f32 %v3282, %v3387
      %v3463 = vmax.f32 %v3283, %v3427
      %v3464 = vmax.f32 %v3284, %v3408
      %v3465 = vmax.f32 %v3285, %v3388
      %v3466 = vmax.f32 %v3286, %v3428
      %v3467 = vmax.f32 %v3287, %v3409
      %v3468 = vmax.f32 %v3288, %v3389
      %v3469 = vmax.f32 %v3289, %v3429
      %v3470 = vmax.f32 %v3290, %v3410
      %v3471 = vmax.f32 %v3291, %v3390
      %v3472 = vmax.f32 %v3292, %v3430
      %v3473 = vmax.f32 %v3293, %v3411
      %v3474 = vmax.f32 %v3294, %v3391
      %v3475 = vmax.f32 %v3295, %v3431
      %v3476 = vmax.f32 %v3296, %v3412
      %v3477 = vmax.f32 %v3297, %v3392
      %v3478 = vmax.f32 %v3298, %v3432
      %v3479 = vmax.f32 %v3299, %v3413
      %v3480 = vmax.f32 %v3300, %v3393
      %v3481 = vmax.f32 %v3301, %v3433
      %v3482 = vmax.f32 %v3302, %v3414
      %v3483 = vmax.f32 %v3303, %v3394
      %v3484 = vmax.f32 %v3304, %v3434
      %v3485 = vmax.f32 %v3305, %v3415
      %v3486 = vmax.f32 %v3306, %v3395
      %v3487 = vmax.f32 %v3307, %v3435
      %v3488 = vmax.f32 %v3308, %v3416
      %v3489 = vmax.f32 %v3309, %v3396
      %v3490 = vmax.f32 %v3310, %v3436
      %v3491 = vmax.f32 %v3311, %v3417
      %v3492 = vmax.f32 %v3312, %v3397
      %v3493 = vmax.f32 %v3313, %v3437
      %v3494 = vmax.f32 %v3314, %v3418
      %v3495 = vmax.f32 %v3315, %v3398
      %v3496 = vmax.f32 %v3316, %v3438
      %v3497 = vmax.f32 %v3317, %v3419
      %v3498 = vmax.f32 %v3318, %v3399
      %v3499 = vmax.f32 %v3319, %v3439
      %v3500 = vrot.slane %v2900, 2
      %v3501 = vrot.slane %v2903, 2
      %v3502 = vrot.slane %v2906, 2
      %v3503 = vrot.slane %v2909, 2
      %v3504 = vrot.slane %v2912, 2
      %v3505 = vrot.slane %v2915, 2
      %v3506 = vrot.slane %v2918, 2
      %v3507 = vrot.slane %v2921, 2
      %v3508 = vrot.slane %v2924, 2
      %v3509 = vrot.slane %v2927, 2
      %v3510 = vrot.slane %v2930, 2
      %v3511 = vrot.slane %v2933, 2
      %v3512 = vrot.slane %v2936, 2
      %v3513 = vrot.slane %v2939, 2
      %v3514 = vrot.slane %v2942, 2
      %v3515 = vrot.slane %v2945, 2
      %v3516 = vrot.slane %v2948, 2
      %v3517 = vrot.slane %v2951, 2
      %v3518 = vrot.slane %v2954, 2
      %v3519 = vrot.slane %v2957, 2
      %v3520 = vrot.slane %v2901, 2
      %v3521 = vrot.slane %v2904, 2
      %v3522 = vrot.slane %v2907, 2
      %v3523 = vrot.slane %v2910, 2
      %v3524 = vrot.slane %v2913, 2
      %v3525 = vrot.slane %v2916, 2
      %v3526 = vrot.slane %v2919, 2
      %v3527 = vrot.slane %v2922, 2
      %v3528 = vrot.slane %v2925, 2
      %v3529 = vrot.slane %v2928, 2
      %v3530 = vrot.slane %v2931, 2
      %v3531 = vrot.slane %v2934, 2
      %v3532 = vrot.slane %v2937, 2
      %v3533 = vrot.slane %v2940, 2
      %v3534 = vrot.slane %v2943, 2
      %v3535 = vrot.slane %v2946, 2
      %v3536 = vrot.slane %v2949, 2
      %v3537 = vrot.slane %v2952, 2
      %v3538 = vrot.slane %v2955, 2
      %v3539 = vrot.slane %v2958, 2
      %v3540 = vrot.slane %v2902, 2
      %v3541 = vrot.slane %v2905, 2
      %v3542 = vrot.slane %v2908, 2
      %v3543 = vrot.slane %v2911, 2
      %v3544 = vrot.slane %v2914, 2
      %v3545 = vrot.slane %v2917, 2
      %v3546 = vrot.slane %v2920, 2
      %v3547 = vrot.slane %v2923, 2
      %v3548 = vrot.slane %v2926, 2
      %v3549 = vrot.slane %v2929, 2
      %v3550 = vrot.slane %v2932, 2
      %v3551 = vrot.slane %v2935, 2
      %v3552 = vrot.slane %v2938, 2
      %v3553 = vrot.slane %v2941, 2
      %v3554 = vrot.slane %v2944, 2
      %v3555 = vrot.slane %v2947, 2
      %v3556 = vrot.slane %v2950, 2
      %v3557 = vrot.slane %v2953, 2
      %v3558 = vrot.slane %v2956, 2
      %v3559 = vrot.slane %v2959, 2
      %v3560 = vsel %vm1898, %v3520, %v3540
      %v3561 = vsel %vm1898, %v3521, %v3541
      %v3562 = vsel %vm1898, %v3522, %v3542
      %v3563 = vsel %vm1898, %v3523, %v3543
      %v3564 = vsel %vm1898, %v3524, %v3544
      %v3565 = vsel %vm1898, %v3525, %v3545
      %v3566 = vsel %vm1898, %v3526, %v3546
      %v3567 = vsel %vm1898, %v3527, %v3547
      %v3568 = vsel %vm1898, %v3528, %v3548
      %v3569 = vsel %vm1898, %v3529, %v3549
      %v3570 = vsel %vm1898, %v3530, %v3550
      %v3571 = vsel %vm1898, %v3531, %v3551
      %v3572 = vsel %vm1898, %v3532, %v3552
      %v3573 = vsel %vm1898, %v3533, %v3553
      %v3574 = vsel %vm1898, %v3534, %v3554
      %v3575 = vsel %vm1898, %v3535, %v3555
      %v3576 = vsel %vm1898, %v3536, %v3556
      %v3577 = vsel %vm1898, %v3537, %v3557
      %v3578 = vsel %vm1898, %v3538, %v3558
      %v3579 = vsel %vm1898, %v3539, %v3559
      %v3580 = vsel %vm1898, %v3500, %v3520
      %v3581 = vsel %vm1898, %v3501, %v3521
      %v3582 = vsel %vm1898, %v3502, %v3522
      %v3583 = vsel %vm1898, %v3503, %v3523
      %v3584 = vsel %vm1898, %v3504, %v3524
      %v3585 = vsel %vm1898, %v3505, %v3525
      %v3586 = vsel %vm1898, %v3506, %v3526
      %v3587 = vsel %vm1898, %v3507, %v3527
      %v3588 = vsel %vm1898, %v3508, %v3528
      %v3589 = vsel %vm1898, %v3509, %v3529
      %v3590 = vsel %vm1898, %v3510, %v3530
      %v3591 = vsel %vm1898, %v3511, %v3531
      %v3592 = vsel %vm1898, %v3512, %v3532
      %v3593 = vsel %vm1898, %v3513, %v3533
      %v3594 = vsel %vm1898, %v3514, %v3534
      %v3595 = vsel %vm1898, %v3515, %v3535
      %v3596 = vsel %vm1898, %v3516, %v3536
      %v3597 = vsel %vm1898, %v3517, %v3537
      %v3598 = vsel %vm1898, %v3518, %v3538
      %v3599 = vsel %vm1898, %v3519, %v3539
      %v3600 = vsel %vm1898, %v3540, %v3500
      %v3601 = vsel %vm1898, %v3541, %v3501
      %v3602 = vsel %vm1898, %v3542, %v3502
      %v3603 = vsel %vm1898, %v3543, %v3503
      %v3604 = vsel %vm1898, %v3544, %v3504
      %v3605 = vsel %vm1898, %v3545, %v3505
      %v3606 = vsel %vm1898, %v3546, %v3506
      %v3607 = vsel %vm1898, %v3547, %v3507
      %v3608 = vsel %vm1898, %v3548, %v3508
      %v3609 = vsel %vm1898, %v3549, %v3509
      %v3610 = vsel %vm1898, %v3550, %v3510
      %v3611 = vsel %vm1898, %v3551, %v3511
      %v3612 = vsel %vm1898, %v3552, %v3512
      %v3613 = vsel %vm1898, %v3553, %v3513
      %v3614 = vsel %vm1898, %v3554, %v3514
      %v3615 = vsel %vm1898, %v3555, %v3515
      %v3616 = vsel %vm1898, %v3556, %v3516
      %v3617 = vsel %vm1898, %v3557, %v3517
      %v3618 = vsel %vm1898, %v3558, %v3518
      %v3619 = vsel %vm1898, %v3559, %v3519
      %v3620 = vmax.f32 %v3440, %v3580
      %v3621 = vmax.f32 %v3441, %v3560
      %v3622 = vmax.f32 %v3442, %v3600
      %v3623 = vmax.f32 %v3443, %v3581
      %v3624 = vmax.f32 %v3444, %v3561
      %v3625 = vmax.f32 %v3445, %v3601
      %v3626 = vmax.f32 %v3446, %v3582
      %v3627 = vmax.f32 %v3447, %v3562
      %v3628 = vmax.f32 %v3448, %v3602
      %v3629 = vmax.f32 %v3449, %v3583
      %v3630 = vmax.f32 %v3450, %v3563
      %v3631 = vmax.f32 %v3451, %v3603
      %v3632 = vmax.f32 %v3452, %v3584
      %v3633 = vmax.f32 %v3453, %v3564
      %v3634 = vmax.f32 %v3454, %v3604
      %v3635 = vmax.f32 %v3455, %v3585
      %v3636 = vmax.f32 %v3456, %v3565
      %v3637 = vmax.f32 %v3457, %v3605
      %v3638 = vmax.f32 %v3458, %v3586
      %v3639 = vmax.f32 %v3459, %v3566
      %v3640 = vmax.f32 %v3460, %v3606
      %v3641 = vmax.f32 %v3461, %v3587
      %v3642 = vmax.f32 %v3462, %v3567
      %v3643 = vmax.f32 %v3463, %v3607
      %v3644 = vmax.f32 %v3464, %v3588
      %v3645 = vmax.f32 %v3465, %v3568
      %v3646 = vmax.f32 %v3466, %v3608
      %v3647 = vmax.f32 %v3467, %v3589
      %v3648 = vmax.f32 %v3468, %v3569
      %v3649 = vmax.f32 %v3469, %v3609
      %v3650 = vmax.f32 %v3470, %v3590
      %v3651 = vmax.f32 %v3471, %v3570
      %v3652 = vmax.f32 %v3472, %v3610
      %v3653 = vmax.f32 %v3473, %v3591
      %v3654 = vmax.f32 %v3474, %v3571
      %v3655 = vmax.f32 %v3475, %v3611
      %v3656 = vmax.f32 %v3476, %v3592
      %v3657 = vmax.f32 %v3477, %v3572
      %v3658 = vmax.f32 %v3478, %v3612
      %v3659 = vmax.f32 %v3479, %v3593
      %v3660 = vmax.f32 %v3480, %v3573
      %v3661 = vmax.f32 %v3481, %v3613
      %v3662 = vmax.f32 %v3482, %v3594
      %v3663 = vmax.f32 %v3483, %v3574
      %v3664 = vmax.f32 %v3484, %v3614
      %v3665 = vmax.f32 %v3485, %v3595
      %v3666 = vmax.f32 %v3486, %v3575
      %v3667 = vmax.f32 %v3487, %v3615
      %v3668 = vmax.f32 %v3488, %v3596
      %v3669 = vmax.f32 %v3489, %v3576
      %v3670 = vmax.f32 %v3490, %v3616
      %v3671 = vmax.f32 %v3491, %v3597
      %v3672 = vmax.f32 %v3492, %v3577
      %v3673 = vmax.f32 %v3493, %v3617
      %v3674 = vmax.f32 %v3494, %v3598
      %v3675 = vmax.f32 %v3495, %v3578
      %v3676 = vmax.f32 %v3496, %v3618
      %v3677 = vmax.f32 %v3497, %v3599
      %v3678 = vmax.f32 %v3498, %v3579
      %v3679 = vmax.f32 %v3499, %v3619
      %v3680 = vmax.f32 %v3620, %v3623
      %v3681 = vmax.f32 %v3621, %v3624
      %v3682 = vmax.f32 %v3622, %v3625
      %v3683 = vmax.f32 %v3623, %v3626
      %v3684 = vmax.f32 %v3624, %v3627
      %v3685 = vmax.f32 %v3625, %v3628
      %v3686 = vmax.f32 %v3626, %v3629
      %v3687 = vmax.f32 %v3627, %v3630
      %v3688 = vmax.f32 %v3628, %v3631
      %v3689 = vmax.f32 %v3629, %v3632
      %v3690 = vmax.f32 %v3630, %v3633
      %v3691 = vmax.f32 %v3631, %v3634
      %v3692 = vmax.f32 %v3632, %v3635
      %v3693 = vmax.f32 %v3633, %v3636
      %v3694 = vmax.f32 %v3634, %v3637
      %v3695 = vmax.f32 %v3635, %v3638
      %v3696 = vmax.f32 %v3636, %v3639
      %v3697 = vmax.f32 %v3637, %v3640
      %v3698 = vmax.f32 %v3638, %v3641
      %v3699 = vmax.f32 %v3639, %v3642
      %v3700 = vmax.f32 %v3640, %v3643
      %v3701 = vmax.f32 %v3641, %v3644
      %v3702 = vmax.f32 %v3642, %v3645
      %v3703 = vmax.f32 %v3643, %v3646
      %v3704 = vmax.f32 %v3644, %v3647
      %v3705 = vmax.f32 %v3645, %v3648
      %v3706 = vmax.f32 %v3646, %v3649
      %v3707 = vmax.f32 %v3647, %v3650
      %v3708 = vmax.f32 %v3648, %v3651
      %v3709 = vmax.f32 %v3649, %v3652
      %v3710 = vmax.f32 %v3650, %v3653
      %v3711 = vmax.f32 %v3651, %v3654
      %v3712 = vmax.f32 %v3652, %v3655
      %v3713 = vmax.f32 %v3653, %v3656
      %v3714 = vmax.f32 %v3654, %v3657
      %v3715 = vmax.f32 %v3655, %v3658
      %v3716 = vmax.f32 %v3656, %v3659
      %v3717 = vmax.f32 %v3657, %v3660
      %v3718 = vmax.f32 %v3658, %v3661
      %v3719 = vmax.f32 %v3659, %v3662
      %v3720 = vmax.f32 %v3660, %v3663
      %v3721 = vmax.f32 %v3661, %v3664
      %v3722 = vmax.f32 %v3662, %v3665
      %v3723 = vmax.f32 %v3663, %v3666
      %v3724 = vmax.f32 %v3664, %v3667
      %v3725 = vmax.f32 %v3665, %v3668
      %v3726 = vmax.f32 %v3666, %v3669
      %v3727 = vmax.f32 %v3667, %v3670
      %v3728 = vmax.f32 %v3680, %v3626
      %v3729 = vmax.f32 %v3681, %v3627
      %v3730 = vmax.f32 %v3682, %v3628
      %v3731 = vmax.f32 %v3683, %v3629
      %v3732 = vmax.f32 %v3684, %v3630
      %v3733 = vmax.f32 %v3685, %v3631
      %v3734 = vmax.f32 %v3686, %v3632
      %v3735 = vmax.f32 %v3687, %v3633
      %v3736 = vmax.f32 %v3688, %v3634
      %v3737 = vmax.f32 %v3689, %v3635
      %v3738 = vmax.f32 %v3690, %v3636
      %v3739 = vmax.f32 %v3691, %v3637
      %v3740 = vmax.f32 %v3692, %v3638
      %v3741 = vmax.f32 %v3693, %v3639
      %v3742 = vmax.f32 %v3694, %v3640
      %v3743 = vmax.f32 %v3695, %v3641
      %v3744 = vmax.f32 %v3696, %v3642
      %v3745 = vmax.f32 %v3697, %v3643
      %v3746 = vmax.f32 %v3698, %v3644
      %v3747 = vmax.f32 %v3699, %v3645
      %v3748 = vmax.f32 %v3700, %v3646
      %v3749 = vmax.f32 %v3701, %v3647
      %v3750 = vmax.f32 %v3702, %v3648
      %v3751 = vmax.f32 %v3703, %v3649
      %v3752 = vmax.f32 %v3704, %v3650
      %v3753 = vmax.f32 %v3705, %v3651
      %v3754 = vmax.f32 %v3706, %v3652
      %v3755 = vmax.f32 %v3707, %v3653
      %v3756 = vmax.f32 %v3708, %v3654
      %v3757 = vmax.f32 %v3709, %v3655
      %v3758 = vmax.f32 %v3710, %v3656
      %v3759 = vmax.f32 %v3711, %v3657
      %v3760 = vmax.f32 %v3712, %v3658
      %v3761 = vmax.f32 %v3713, %v3659
      %v3762 = vmax.f32 %v3714, %v3660
      %v3763 = vmax.f32 %v3715, %v3661
      %v3764 = vmax.f32 %v3716, %v3662
      %v3765 = vmax.f32 %v3717, %v3663
      %v3766 = vmax.f32 %v3718, %v3664
      %v3767 = vmax.f32 %v3719, %v3665
      %v3768 = vmax.f32 %v3720, %v3666
      %v3769 = vmax.f32 %v3721, %v3667
      %v3770 = vmax.f32 %v3722, %v3668
      %v3771 = vmax.f32 %v3723, %v3669
      %v3772 = vmax.f32 %v3724, %v3670
      %v3773 = vmax.f32 %v3725, %v3671
      %v3774 = vmax.f32 %v3726, %v3672
      %v3775 = vmax.f32 %v3727, %v3673
      %v3776 = vmax.f32 %v3728, %v3629
      %v3777 = vmax.f32 %v3729, %v3630
      %v3778 = vmax.f32 %v3730, %v3631
      %v3779 = vmax.f32 %v3731, %v3632
      %v3780 = vmax.f32 %v3732, %v3633
      %v3781 = vmax.f32 %v3733, %v3634
      %v3782 = vmax.f32 %v3734, %v3635
      %v3783 = vmax.f32 %v3735, %v3636
      %v3784 = vmax.f32 %v3736, %v3637
      %v3785 = vmax.f32 %v3737, %v3638
      %v3786 = vmax.f32 %v3738, %v3639
      %v3787 = vmax.f32 %v3739, %v3640
      %v3788 = vmax.f32 %v3740, %v3641
      %v3789 = vmax.f32 %v3741, %v3642
      %v3790 = vmax.f32 %v3742, %v3643
      %v3791 = vmax.f32 %v3743, %v3644
      %v3792 = vmax.f32 %v3744, %v3645
      %v3793 = vmax.f32 %v3745, %v3646
      %v3794 = vmax.f32 %v3746, %v3647
      %v3795 = vmax.f32 %v3747, %v3648
      %v3796 = vmax.f32 %v3748, %v3649
      %v3797 = vmax.f32 %v3749, %v3650
      %v3798 = vmax.f32 %v3750, %v3651
      %v3799 = vmax.f32 %v3751, %v3652
      %v3800 = vmax.f32 %v3752, %v3653
      %v3801 = vmax.f32 %v3753, %v3654
      %v3802 = vmax.f32 %v3754, %v3655
      %v3803 = vmax.f32 %v3755, %v3656
      %v3804 = vmax.f32 %v3756, %v3657
      %v3805 = vmax.f32 %v3757, %v3658
      %v3806 = vmax.f32 %v3758, %v3659
      %v3807 = vmax.f32 %v3759, %v3660
      %v3808 = vmax.f32 %v3760, %v3661
      %v3809 = vmax.f32 %v3761, %v3662
      %v3810 = vmax.f32 %v3762, %v3663
      %v3811 = vmax.f32 %v3763, %v3664
      %v3812 = vmax.f32 %v3764, %v3665
      %v3813 = vmax.f32 %v3765, %v3666
      %v3814 = vmax.f32 %v3766, %v3667
      %v3815 = vmax.f32 %v3767, %v3668
      %v3816 = vmax.f32 %v3768, %v3669
      %v3817 = vmax.f32 %v3769, %v3670
      %v3818 = vmax.f32 %v3770, %v3671
      %v3819 = vmax.f32 %v3771, %v3672
      %v3820 = vmax.f32 %v3772, %v3673
      %v3821 = vmax.f32 %v3773, %v3674
      %v3822 = vmax.f32 %v3774, %v3675
      %v3823 = vmax.f32 %v3775, %v3676
      %v3824 = vmax.f32 %v3776, %v3632
      %v3825 = vmax.f32 %v3777, %v3633
      %v3826 = vmax.f32 %v3778, %v3634
      %v3827 = vmax.f32 %v3779, %v3635
      %v3828 = vmax.f32 %v3780, %v3636
      %v3829 = vmax.f32 %v3781, %v3637
      %v3830 = vmax.f32 %v3782, %v3638
      %v3831 = vmax.f32 %v3783, %v3639
      %v3832 = vmax.f32 %v3784, %v3640
      %v3833 = vmax.f32 %v3785, %v3641
      %v3834 = vmax.f32 %v3786, %v3642
      %v3835 = vmax.f32 %v3787, %v3643
      %v3836 = vmax.f32 %v3788, %v3644
      %v3837 = vmax.f32 %v3789, %v3645
      %v3838 = vmax.f32 %v3790, %v3646
      %v3839 = vmax.f32 %v3791, %v3647
      %v3840 = vmax.f32 %v3792, %v3648
      %v3841 = vmax.f32 %v3793, %v3649
      %v3842 = vmax.f32 %v3794, %v3650
      %v3843 = vmax.f32 %v3795, %v3651
      %v3844 = vmax.f32 %v3796, %v3652
      %v3845 = vmax.f32 %v3797, %v3653
      %v3846 = vmax.f32 %v3798, %v3654
      %v3847 = vmax.f32 %v3799, %v3655
      %v3848 = vmax.f32 %v3800, %v3656
      %v3849 = vmax.f32 %v3801, %v3657
      %v3850 = vmax.f32 %v3802, %v3658
      %v3851 = vmax.f32 %v3803, %v3659
      %v3852 = vmax.f32 %v3804, %v3660
      %v3853 = vmax.f32 %v3805, %v3661
      %v3854 = vmax.f32 %v3806, %v3662
      %v3855 = vmax.f32 %v3807, %v3663
      %v3856 = vmax.f32 %v3808, %v3664
      %v3857 = vmax.f32 %v3809, %v3665
      %v3858 = vmax.f32 %v3810, %v3666
      %v3859 = vmax.f32 %v3811, %v3667
      %v3860 = vmax.f32 %v3812, %v3668
      %v3861 = vmax.f32 %v3813, %v3669
      %v3862 = vmax.f32 %v3814, %v3670
      %v3863 = vmax.f32 %v3815, %v3671
      %v3864 = vmax.f32 %v3816, %v3672
      %v3865 = vmax.f32 %v3817, %v3673
      %v3866 = vmax.f32 %v3818, %v3674
      %v3867 = vmax.f32 %v3819, %v3675
      %v3868 = vmax.f32 %v3820, %v3676
      %v3869 = vmax.f32 %v3821, %v3677
      %v3870 = vmax.f32 %v3822, %v3678
      %v3871 = vmax.f32 %v3823, %v3679
      %v3872 = vsel %vm2214, %v3824, -inf
      %v3873 = vsel %vm2215, %v3825, -inf
      %v3874 = vsel %vm2216, %v3826, -inf
      %v3875 = vsel %vm2214, %v3827, -inf
      %v3876 = vsel %vm2215, %v3828, -inf
      %v3877 = vsel %vm2216, %v3829, -inf
      %v3878 = vsel %vm2214, %v3830, -inf
      %v3879 = vsel %vm2215, %v3831, -inf
      %v3880 = vsel %vm2216, %v3832, -inf
      %v3881 = vsel %vm2214, %v3833, -inf
      %v3882 = vsel %vm2215, %v3834, -inf
      %v3883 = vsel %vm2216, %v3835, -inf
      %v3884 = vsel %vm2214, %v3836, -inf
      %v3885 = vsel %vm2215, %v3837, -inf
      %v3886 = vsel %vm2216, %v3838, -inf
      %v3887 = vsel %vm2214, %v3839, -inf
      %v3888 = vsel %vm2215, %v3840, -inf
      %v3889 = vsel %vm2216, %v3841, -inf
      %v3890 = vsel %vm2214, %v3842, -inf
      %v3891 = vsel %vm2215, %v3843, -inf
      %v3892 = vsel %vm2216, %v3844, -inf
      %v3893 = vsel %vm2214, %v3845, -inf
      %v3894 = vsel %vm2215, %v3846, -inf
      %v3895 = vsel %vm2216, %v3847, -inf
      %v3896 = vsel %vm2214, %v3848, -inf
      %v3897 = vsel %vm2215, %v3849, -inf
      %v3898 = vsel %vm2216, %v3850, -inf
      %v3899 = vsel %vm2214, %v3851, -inf
      %v3900 = vsel %vm2215, %v3852, -inf
      %v3901 = vsel %vm2216, %v3853, -inf
      %v3902 = vsel %vm2214, %v3854, -inf
      %v3903 = vsel %vm2215, %v3855, -inf
      %v3904 = vsel %vm2216, %v3856, -inf
      %v3905 = vsel %vm2214, %v3857, -inf
      %v3906 = vsel %vm2215, %v3858, -inf
      %v3907 = vsel %vm2216, %v3859, -inf
      %v3908 = vsel %vm2214, %v3860, -inf
      %v3909 = vsel %vm2215, %v3861, -inf
      %v3910 = vsel %vm2216, %v3862, -inf
      %v3911 = vsel %vm2214, %v3863, -inf
      %v3912 = vsel %vm2215, %v3864, -inf
      %v3913 = vsel %vm2216, %v3865, -inf
      %v3914 = vsel %vm2214, %v3866, -inf
      %v3915 = vsel %vm2215, %v3867, -inf
      %v3916 = vsel %vm2216, %v3868, -inf
      %v3917 = vsel %vm2214, %v3869, -inf
      %v3918 = vsel %vm2215, %v3870, -inf
      %v3919 = vsel %vm2216, %v3871, -inf
      %s3920 = scalar_lea.vmem %s3, 4
      %v3921 = vld [vmem:[%s3920] sm:$0x3]
      %v3923 = vsel %vm225, %v3872, 0
      %v3926 = vsel %vm225, %v3873, 0
      %v3929 = vsel %vm225, %v3874, 0
      %v3932 = vsel %vm225, %v3875, 0
      %v3935 = vsel %vm225, %v3876, 0
      %v3938 = vsel %vm225, %v3877, 0
      %v3941 = vsel %vm225, %v3878, 0
      %v3944 = vsel %vm225, %v3879, 0
      %v3947 = vsel %vm225, %v3880, 0
      %v3950 = vsel %vm225, %v3881, 0
      %v3953 = vsel %vm225, %v3882, 0
      %v3956 = vsel %vm225, %v3883, 0
      %v3959 = vsel %vm225, %v3884, 0
      %v3962 = vsel %vm225, %v3885, 0
      %v3965 = vsel %vm225, %v3886, 0
      %v3968 = vsel %vm225, %v3887, 0
      %v3971 = vsel %vm225, %v3888, 0
      %v3974 = vsel %vm225, %v3889, 0
      %v3977 = vsel %vm225, %v3890, 0
      %v3980 = vsel %vm225, %v3891, 0
      %v3983 = vsel %vm225, %v3892, 0
      %v3986 = vsel %vm225, %v3893, 0
      %v3989 = vsel %vm225, %v3894, 0
      %v3992 = vsel %vm225, %v3895, 0
      %v3995 = vsel %vm225, %v3896, 0
      %v3998 = vsel %vm225, %v3897, 0
      %v4001 = vsel %vm225, %v3898, 0
      %v4004 = vsel %vm225, %v3899, 0
      %v4007 = vsel %vm225, %v3900, 0
      %v4010 = vsel %vm225, %v3901, 0
      %v4013 = vsel %vm225, %v3902, 0
      %v4016 = vsel %vm225, %v3903, 0
      %v4019 = vsel %vm225, %v3904, 0
      %v4022 = vsel %vm225, %v3905, 0
      %v4025 = vsel %vm225, %v3906, 0
      %v4028 = vsel %vm225, %v3907, 0
      %v4031 = vsel %vm225, %v3908, 0
      %v4034 = vsel %vm225, %v3909, 0
      %v4037 = vsel %vm225, %v3910, 0
      %v4040 = vsel %vm225, %v3911, 0
      %v4043 = vsel %vm225, %v3912, 0
      %v4046 = vsel %vm225, %v3913, 0
      %v4049 = vsel %vm225, %v3914, 0
      %v4052 = vsel %vm225, %v3915, 0
      %v4055 = vsel %vm225, %v3916, 0
      %v4058 = vsel %vm225, %v3917, 0
      %v4061 = vsel %vm225, %v3918, 0
      %v4064 = vsel %vm225, %v3919, 0
      %v4067 = vsel %vm2411, %v3921, 0
      %4069 = vmatpush.msra.mxu0 0.0
      %4070 = vmatpush.msra.mxu0 0.0
      %4071 = vmatpush.msra.mxu0 0.0
      %4072 = vmatpush.msra.mxu0 0.0
      %4073 = vmatpush.msra.mxu0 0.0
      %4074 = vmatpush.msra.mxu0 0.0
      %4075 = vmatpush.msra.mxu0 0.0
      %4076 = vmatpush.msra.mxu0 0.0
      %4077 = vmatpush.msra.mxu0 0.0
      %4078 = vmatpush.msra.mxu0 0.0
      %4079 = vmatpush.msra.mxu0 0.0
      %4080 = vmatpush.msra.mxu0 0.0
      %4081 = vmatpush.msra.mxu0 0.0
      %4082 = vmatpush.msra.mxu0 0.0
      %4083 = vmatpush.msra.mxu0 0.0
      %4084 = vmatpush.msra.mxu0 %v4067
      %4085 = vmatmul.f32.gmra.mxu0 %v3923
      %v4086 = vpop.f32.mrf.mxu0
      %v4087 = vadd.f32 0.0, %v4086
      %4088 = vmatmul.f32.gmra.mxu0 %v3926
      %v4089 = vpop.f32.mrf.mxu0
      %v4090 = vadd.f32 0.0, %v4089
      %4091 = vmatmul.f32.gmra.mxu0 %v3929
      %v4092 = vpop.f32.mrf.mxu0
      %4093 = vmatmul.f32.gmra.mxu0 %v3932
      %v4094 = vpop.f32.mrf.mxu0
      %v4095 = vadd.f32 0.0, %v4094
      %4096 = vmatmul.f32.gmra.mxu0 %v3935
      %v4097 = vpop.f32.mrf.mxu0
      %v4098 = vadd.f32 0.0, %v4097
      %4099 = vmatmul.f32.gmra.mxu0 %v3938
      %v4100 = vpop.f32.mrf.mxu0
      %4101 = vmatmul.f32.gmra.mxu0 %v3941
      %v4102 = vpop.f32.mrf.mxu0
      %v4103 = vadd.f32 0.0, %v4102
      %4104 = vmatmul.f32.gmra.mxu0 %v3944
      %v4105 = vpop.f32.mrf.mxu0
      %v4106 = vadd.f32 0.0, %v4105
      %4107 = vmatmul.f32.gmra.mxu0 %v3947
      %v4108 = vpop.f32.mrf.mxu0
      %4109 = vmatmul.f32.gmra.mxu0 %v3950
      %v4110 = vpop.f32.mrf.mxu0
      %v4111 = vadd.f32 0.0, %v4110
      %4112 = vmatmul.f32.gmra.mxu0 %v3953
      %v4113 = vpop.f32.mrf.mxu0
      %v4114 = vadd.f32 0.0, %v4113
      %4115 = vmatmul.f32.gmra.mxu0 %v3956
      %v4116 = vpop.f32.mrf.mxu0
      %4117 = vmatmul.f32.gmra.mxu0 %v3959
      %v4118 = vpop.f32.mrf.mxu0
      %v4119 = vadd.f32 0.0, %v4118
      %4120 = vmatmul.f32.gmra.mxu0 %v3962
      %v4121 = vpop.f32.mrf.mxu0
      %v4122 = vadd.f32 0.0, %v4121
      %4123 = vmatmul.f32.gmra.mxu0 %v3965
      %v4124 = vpop.f32.mrf.mxu0
      %4125 = vmatmul.f32.gmra.mxu0 %v3968
      %v4126 = vpop.f32.mrf.mxu0
      %v4127 = vadd.f32 0.0, %v4126
      %4128 = vmatmul.f32.gmra.mxu0 %v3971
      %v4129 = vpop.f32.mrf.mxu0
      %v4130 = vadd.f32 0.0, %v4129
      %4131 = vmatmul.f32.gmra.mxu0 %v3974
      %v4132 = vpop.f32.mrf.mxu0
      %4133 = vmatmul.f32.gmra.mxu0 %v3977
      %v4134 = vpop.f32.mrf.mxu0
      %v4135 = vadd.f32 0.0, %v4134
      %4136 = vmatmul.f32.gmra.mxu0 %v3980
      %v4137 = vpop.f32.mrf.mxu0
      %v4138 = vadd.f32 0.0, %v4137
      %4139 = vmatmul.f32.gmra.mxu0 %v3983
      %v4140 = vpop.f32.mrf.mxu0
      %4141 = vmatmul.f32.gmra.mxu0 %v3986
      %v4142 = vpop.f32.mrf.mxu0
      %v4143 = vadd.f32 0.0, %v4142
      %4144 = vmatmul.f32.gmra.mxu0 %v3989
      %v4145 = vpop.f32.mrf.mxu0
      %v4146 = vadd.f32 0.0, %v4145
      %4147 = vmatmul.f32.gmra.mxu0 %v3992
      %v4148 = vpop.f32.mrf.mxu0
      %4149 = vmatmul.f32.gmra.mxu0 %v3995
      %v4150 = vpop.f32.mrf.mxu0
      %v4151 = vadd.f32 0.0, %v4150
      %4152 = vmatmul.f32.gmra.mxu0 %v3998
      %v4153 = vpop.f32.mrf.mxu0
      %v4154 = vadd.f32 0.0, %v4153
      %4155 = vmatmul.f32.gmra.mxu0 %v4001
      %v4156 = vpop.f32.mrf.mxu0
      %4157 = vmatmul.f32.gmra.mxu0 %v4004
      %v4158 = vpop.f32.mrf.mxu0
      %v4159 = vadd.f32 0.0, %v4158
      %4160 = vmatmul.f32.gmra.mxu0 %v4007
      %v4161 = vpop.f32.mrf.mxu0
      %v4162 = vadd.f32 0.0, %v4161
      %4163 = vmatmul.f32.gmra.mxu0 %v4010
      %v4164 = vpop.f32.mrf.mxu0
      %4165 = vmatmul.f32.gmra.mxu0 %v4013
      %v4166 = vpop.f32.mrf.mxu0
      %v4167 = vadd.f32 0.0, %v4166
      %4168 = vmatmul.f32.gmra.mxu0 %v4016
      %v4169 = vpop.f32.mrf.mxu0
      %v4170 = vadd.f32 0.0, %v4169
      %4171 = vmatmul.f32.gmra.mxu0 %v4019
      %v4172 = vpop.f32.mrf.mxu0
      %4173 = vmatmul.f32.gmra.mxu0 %v4022
      %v4174 = vpop.f32.mrf.mxu0
      %v4175 = vadd.f32 0.0, %v4174
      %4176 = vmatmul.f32.gmra.mxu0 %v4025
      %v4177 = vpop.f32.mrf.mxu0
      %v4178 = vadd.f32 0.0, %v4177
      %4179 = vmatmul.f32.gmra.mxu0 %v4028
      %v4180 = vpop.f32.mrf.mxu0
      %4181 = vmatmul.f32.gmra.mxu0 %v4031
      %v4182 = vpop.f32.mrf.mxu0
      %v4183 = vadd.f32 0.0, %v4182
      %4184 = vmatmul.f32.gmra.mxu0 %v4034
      %v4185 = vpop.f32.mrf.mxu0
      %v4186 = vadd.f32 0.0, %v4185
      %4187 = vmatmul.f32.gmra.mxu0 %v4037
      %v4188 = vpop.f32.mrf.mxu0
      %4189 = vmatmul.f32.gmra.mxu0 %v4040
      %v4190 = vpop.f32.mrf.mxu0
      %v4191 = vadd.f32 0.0, %v4190
      %4192 = vmatmul.f32.gmra.mxu0 %v4043
      %v4193 = vpop.f32.mrf.mxu0
      %v4194 = vadd.f32 0.0, %v4193
      %4195 = vmatmul.f32.gmra.mxu0 %v4046
      %v4196 = vpop.f32.mrf.mxu0
      %4197 = vmatmul.f32.gmra.mxu0 %v4049
      %v4198 = vpop.f32.mrf.mxu0
      %v4199 = vadd.f32 0.0, %v4198
      %4200 = vmatmul.f32.gmra.mxu0 %v4052
      %v4201 = vpop.f32.mrf.mxu0
      %v4202 = vadd.f32 0.0, %v4201
      %4203 = vmatmul.f32.gmra.mxu0 %v4055
      %v4204 = vpop.f32.mrf.mxu0
      %4205 = vmatmul.f32.gmra.mxu0 %v4058
      %v4206 = vpop.f32.mrf.mxu0
      %v4207 = vadd.f32 0.0, %v4206
      %4208 = vmatmul.f32.gmra.mxu0 %v4061
      %v4209 = vpop.f32.mrf.mxu0
      %v4210 = vadd.f32 0.0, %v4209
      %4211 = vmatmul.f32.gmra.mxu0 %v4064
      %v4212 = vpop.f32.mrf.mxu0
      %4213 = vdwg.mxu0
      %v4214 = vadd.f32 %v2725, %v4087
      %v4215 = vadd.f32 %v2728, %v4090
      %v4216 = vadd.f32 %v2733, %v4095
      %v4217 = vadd.f32 %v2736, %v4098
      %v4218 = vadd.f32 %v2741, %v4103
      %v4219 = vadd.f32 %v2744, %v4106
      %v4220 = vadd.f32 %v2749, %v4111
      %v4221 = vadd.f32 %v2752, %v4114
      %v4222 = vadd.f32 %v2757, %v4119
      %v4223 = vadd.f32 %v2760, %v4122
      %v4224 = vadd.f32 %v2765, %v4127
      %v4225 = vadd.f32 %v2768, %v4130
      %v4226 = vadd.f32 %v2773, %v4135
      %v4227 = vadd.f32 %v2776, %v4138
      %v4228 = vadd.f32 %v2781, %v4143
      %v4229 = vadd.f32 %v2784, %v4146
      %v4230 = vadd.f32 %v2789, %v4151
      %v4231 = vadd.f32 %v2792, %v4154
      %v4232 = vadd.f32 %v2797, %v4159
      %v4233 = vadd.f32 %v2800, %v4162
      %v4234 = vadd.f32 %v2805, %v4167
      %v4235 = vadd.f32 %v2808, %v4170
      %v4236 = vadd.f32 %v2813, %v4175
      %v4237 = vadd.f32 %v2816, %v4178
      %v4238 = vadd.f32 %v2821, %v4183
      %v4239 = vadd.f32 %v2824, %v4186
      %v4240 = vadd.f32 %v2829, %v4191
      %v4241 = vadd.f32 %v2832, %v4194
      %v4242 = vadd.f32 %v2837, %v4199
      %v4243 = vadd.f32 %v2840, %v4202
      %v4244 = vadd.f32 %v2845, %v4207
      %v4245 = vadd.f32 %v2848, %v4210
      %4246 = vst.msk [vmem:[%s239] sm:$0xff] %vm225, %v3872
      %4247 = vst.msk [vmem:[%s239 + $0x8] sm:$0xff] %vm225, %v3873
      %4248 = vst.msk [vmem:[%s239 + $0x10] sm:$0xff] %vm225, %v3874
      %4249 = vst.msk [vmem:[%s239 + $0x18] sm:$0xff] %vm225, %v3875
      %4250 = vst.msk [vmem:[%s239 + $0x20] sm:$0xff] %vm225, %v3876
      %4251 = vst.msk [vmem:[%s239 + $0x28] sm:$0xff] %vm225, %v3877
      %4252 = vst.msk [vmem:[%s239 + $0x30] sm:$0xff] %vm225, %v3878
      %4253 = vst.msk [vmem:[%s239 + $0x38] sm:$0xff] %vm225, %v3879
      %4254 = vst.msk [vmem:[%s239 + $0x40] sm:$0xff] %vm225, %v3880
      %4255 = vst.msk [vmem:[%s239 + $0x48] sm:$0xff] %vm225, %v3881
      %4256 = vst.msk [vmem:[%s239 + $0x50] sm:$0xff] %vm225, %v3882
      %4257 = vst.msk [vmem:[%s239 + $0x58] sm:$0xff] %vm225, %v3883
      %4258 = vst.msk [vmem:[%s239 + $0x60] sm:$0xff] %vm225, %v3884
      %4259 = vst.msk [vmem:[%s239 + $0x68] sm:$0xff] %vm225, %v3885
      %4260 = vst.msk [vmem:[%s239 + $0x70] sm:$0xff] %vm225, %v3886
      %4261 = vst.msk [vmem:[%s239 + $0x78] sm:$0xff] %vm225, %v3887
      %4262 = vst.msk [vmem:[%s239 + $0x80] sm:$0xff] %vm225, %v3888
      %4263 = vst.msk [vmem:[%s239 + $0x88] sm:$0xff] %vm225, %v3889
      %4264 = vst.msk [vmem:[%s239 + $0x90] sm:$0xff] %vm225, %v3890
      %4265 = vst.msk [vmem:[%s239 + $0x98] sm:$0xff] %vm225, %v3891
      %4266 = vst.msk [vmem:[%s239 + $0xa0] sm:$0xff] %vm225, %v3892
      %4267 = vst.msk [vmem:[%s239 + $0xa8] sm:$0xff] %vm225, %v3893
      %4268 = vst.msk [vmem:[%s239 + $0xb0] sm:$0xff] %vm225, %v3894
      %4269 = vst.msk [vmem:[%s239 + $0xb8] sm:$0xff] %vm225, %v3895
      %4270 = vst.msk [vmem:[%s239 + $0xc0] sm:$0xff] %vm225, %v3896
      %4271 = vst.msk [vmem:[%s239 + $0xc8] sm:$0xff] %vm225, %v3897
      %4272 = vst.msk [vmem:[%s239 + $0xd0] sm:$0xff] %vm225, %v3898
      %4273 = vst.msk [vmem:[%s239 + $0xd8] sm:$0xff] %vm225, %v3899
      %4274 = vst.msk [vmem:[%s239 + $0xe0] sm:$0xff] %vm225, %v3900
      %4275 = vst.msk [vmem:[%s239 + $0xe8] sm:$0xff] %vm225, %v3901
      %4276 = vst.msk [vmem:[%s239 + $0xf0] sm:$0xff] %vm225, %v3902
      %4277 = vst.msk [vmem:[%s239 + $0xf8] sm:$0xff] %vm225, %v3903
      %4278 = vst.msk [vmem:[%s239 + $0x100] sm:$0xff] %vm225, %v3904
      %4279 = vst.msk [vmem:[%s239 + $0x108] sm:$0xff] %vm225, %v3905
      %4280 = vst.msk [vmem:[%s239 + $0x110] sm:$0xff] %vm225, %v3906
      %4281 = vst.msk [vmem:[%s239 + $0x118] sm:$0xff] %vm225, %v3907
      %4282 = vst.msk [vmem:[%s239 + $0x120] sm:$0xff] %vm225, %v3908
      %4283 = vst.msk [vmem:[%s239 + $0x128] sm:$0xff] %vm225, %v3909
      %4284 = vst.msk [vmem:[%s239 + $0x130] sm:$0xff] %vm225, %v3910
      %4285 = vst.msk [vmem:[%s239 + $0x138] sm:$0xff] %vm225, %v3911
      %4286 = vst.msk [vmem:[%s239 + $0x140] sm:$0xff] %vm225, %v3912
      %4287 = vst.msk [vmem:[%s239 + $0x148] sm:$0xff] %vm225, %v3913
      %4288 = vst.msk [vmem:[%s239 + $0x150] sm:$0xff] %vm225, %v3914
      %4289 = vst.msk [vmem:[%s239 + $0x158] sm:$0xff] %vm225, %v3915
      %4290 = vst.msk [vmem:[%s239 + $0x160] sm:$0xff] %vm225, %v3916
      %4291 = vst.msk [vmem:[%s239 + $0x168] sm:$0xff] %vm225, %v3917
      %4292 = vst.msk [vmem:[%s239 + $0x170] sm:$0xff] %vm225, %v3918
      %4293 = vst.msk [vmem:[%s239 + $0x178] sm:$0xff] %vm225, %v3919
      %v4294 = vld [vmem:[#allocation2] sm:$0xff]
      %v4295 = vld [vmem:[#allocation2 + $0x8] sm:$0xff]
      %v4296 = vld [vmem:[#allocation2 + $0x10] sm:$0xff]
      %v4297 = vld [vmem:[#allocation2 + $0x18] sm:$0xff]
      %v4298 = vld [vmem:[#allocation2 + $0x20] sm:$0xff]
      %v4299 = vld [vmem:[#allocation2 + $0x28] sm:$0xff]
      %v4300 = vld [vmem:[#allocation2 + $0x30] sm:$0xff]
      %v4301 = vld [vmem:[#allocation2 + $0x38] sm:$0xff]
      %v4302 = vld [vmem:[#allocation2 + $0x40] sm:$0xff]
      %v4303 = vld [vmem:[#allocation2 + $0x48] sm:$0xff]
      %v4304 = vld [vmem:[#allocation2 + $0x50] sm:$0xff]
      %v4305 = vld [vmem:[#allocation2 + $0x58] sm:$0xff]
      %v4306 = vld [vmem:[#allocation2 + $0x60] sm:$0xff]
      %v4307 = vld [vmem:[#allocation2 + $0x68] sm:$0xff]
      %v4308 = vld [vmem:[#allocation2 + $0x70] sm:$0xff]
      %v4309 = vld [vmem:[#allocation2 + $0x78] sm:$0xff]
      %v4310 = vld [vmem:[#allocation2 + $0x80] sm:$0xff]
      %v4311 = vld [vmem:[#allocation2 + $0x88] sm:$0xff]
      %v4312 = vld [vmem:[#allocation2 + $0x90] sm:$0xff]
      %v4313 = vld [vmem:[#allocation2 + $0x98] sm:$0xff]
      %v4314 = vld [vmem:[#allocation2 + $0xa0] sm:$0xff]
      %v4315 = vld [vmem:[#allocation2 + $0xa8] sm:$0xff]
      %v4316 = vld [vmem:[#allocation2 + $0xb0] sm:$0xff]
      %v4317 = vld [vmem:[#allocation2 + $0xb8] sm:$0xff]
      %v4318 = vld [vmem:[#allocation2 + $0xc0] sm:$0xff]
      %v4319 = vld [vmem:[#allocation2 + $0xc8] sm:$0xff]
      %v4320 = vld [vmem:[#allocation2 + $0xd0] sm:$0xff]
      %v4321 = vld [vmem:[#allocation2 + $0xd8] sm:$0xff]
      %v4322 = vld [vmem:[#allocation2 + $0xe0] sm:$0xff]
      %v4323 = vld [vmem:[#allocation2 + $0xe8] sm:$0xff]
      %v4324 = vld [vmem:[#allocation2 + $0xf0] sm:$0xff]
      %v4325 = vld [vmem:[#allocation2 + $0xf8] sm:$0xff]
      %v4326 = vld [vmem:[#allocation2 + $0x100] sm:$0xff]
      %v4327 = vld [vmem:[#allocation2 + $0x108] sm:$0xff]
      %v4328 = vld [vmem:[#allocation2 + $0x110] sm:$0xff]
      %v4329 = vld [vmem:[#allocation2 + $0x118] sm:$0xff]
      %v4330 = vld [vmem:[#allocation2 + $0x120] sm:$0xff]
      %v4331 = vld [vmem:[#allocation2 + $0x128] sm:$0xff]
      %v4332 = vld [vmem:[#allocation2 + $0x130] sm:$0xff]
      %v4333 = vld [vmem:[#allocation2 + $0x138] sm:$0xff]
      %v4334 = vld [vmem:[#allocation2 + $0x140] sm:$0xff]
      %v4335 = vld [vmem:[#allocation2 + $0x148] sm:$0xff]
      %v4336 = vld [vmem:[#allocation2 + $0x150] sm:$0xff]
      %v4337 = vld [vmem:[#allocation2 + $0x158] sm:$0xff]
      %v4338 = vld [vmem:[#allocation2 + $0x160] sm:$0xff]
      %v4339 = vld [vmem:[#allocation2 + $0x168] sm:$0xff]
      %v4340 = vld [vmem:[#allocation2 + $0x170] sm:$0xff]
      %v4341 = vld [vmem:[#allocation2 + $0x178] sm:$0xff]
      %v4342 = vld [vmem:[#allocation2 + $0x180] sm:$0xff]
      %v4343 = vld [vmem:[#allocation2 + $0x188] sm:$0xff]
      %v4344 = vld [vmem:[#allocation2 + $0x190] sm:$0xff]
      %v4345 = vld [vmem:[#allocation2 + $0x198] sm:$0xff]
      %v4346 = vld [vmem:[#allocation2 + $0x1a0] sm:$0xff]
      %v4347 = vld [vmem:[#allocation2 + $0x1a8] sm:$0xff]
      %v4348 = vld [vmem:[#allocation2 + $0x1b0] sm:$0xff]
      %v4349 = vld [vmem:[#allocation2 + $0x1b8] sm:$0xff]
      %v4350 = vld [vmem:[#allocation2 + $0x1c0] sm:$0xff]
      %v4351 = vld [vmem:[#allocation2 + $0x1c8] sm:$0xff]
      %v4352 = vld [vmem:[#allocation2 + $0x1d0] sm:$0xff]
      %v4353 = vld [vmem:[#allocation2 + $0x1d8] sm:$0xff]
      %v4354 = vrot.slane %v4294, 7
      %v4355 = vrot.slane %v4297, 7
      %v4356 = vrot.slane %v4300, 7
      %v4357 = vrot.slane %v4303, 7
      %v4358 = vrot.slane %v4306, 7
      %v4359 = vrot.slane %v4309, 7
      %v4360 = vrot.slane %v4312, 7
      %v4361 = vrot.slane %v4315, 7
      %v4362 = vrot.slane %v4318, 7
      %v4363 = vrot.slane %v4321, 7
      %v4364 = vrot.slane %v4324, 7
      %v4365 = vrot.slane %v4327, 7
      %v4366 = vrot.slane %v4330, 7
      %v4367 = vrot.slane %v4333, 7
      %v4368 = vrot.slane %v4336, 7
      %v4369 = vrot.slane %v4339, 7
      %v4370 = vrot.slane %v4342, 7
      %v4371 = vrot.slane %v4345, 7
      %v4372 = vrot.slane %v4348, 7
      %v4373 = vrot.slane %v4351, 7
      %v4374 = vrot.slane %v4295, 7
      %v4375 = vrot.slane %v4298, 7
      %v4376 = vrot.slane %v4301, 7
      %v4377 = vrot.slane %v4304, 7
      %v4378 = vrot.slane %v4307, 7
      %v4379 = vrot.slane %v4310, 7
      %v4380 = vrot.slane %v4313, 7
      %v4381 = vrot.slane %v4316, 7
      %v4382 = vrot.slane %v4319, 7
      %v4383 = vrot.slane %v4322, 7
      %v4384 = vrot.slane %v4325, 7
      %v4385 = vrot.slane %v4328, 7
      %v4386 = vrot.slane %v4331, 7
      %v4387 = vrot.slane %v4334, 7
      %v4388 = vrot.slane %v4337, 7
      %v4389 = vrot.slane %v4340, 7
      %v4390 = vrot.slane %v4343, 7
      %v4391 = vrot.slane %v4346, 7
      %v4392 = vrot.slane %v4349, 7
      %v4393 = vrot.slane %v4352, 7
      %v4394 = vrot.slane %v4296, 7
      %v4395 = vrot.slane %v4299, 7
      %v4396 = vrot.slane %v4302, 7
      %v4397 = vrot.slane %v4305, 7
      %v4398 = vrot.slane %v4308, 7
      %v4399 = vrot.slane %v4311, 7
      %v4400 = vrot.slane %v4314, 7
      %v4401 = vrot.slane %v4317, 7
      %v4402 = vrot.slane %v4320, 7
      %v4403 = vrot.slane %v4323, 7
      %v4404 = vrot.slane %v4326, 7
      %v4405 = vrot.slane %v4329, 7
      %v4406 = vrot.slane %v4332, 7
      %v4407 = vrot.slane %v4335, 7
      %v4408 = vrot.slane %v4338, 7
      %v4409 = vrot.slane %v4341, 7
      %v4410 = vrot.slane %v4344, 7
      %v4411 = vrot.slane %v4347, 7
      %v4412 = vrot.slane %v4350, 7
      %v4413 = vrot.slane %v4353, 7
      %v4414 = vsel %vm1355, %v4374, %v4394
      %v4415 = vsel %vm1355, %v4375, %v4395
      %v4416 = vsel %vm1355, %v4376, %v4396
      %v4417 = vsel %vm1355, %v4377, %v4397
      %v4418 = vsel %vm1355, %v4378, %v4398
      %v4419 = vsel %vm1355, %v4379, %v4399
      %v4420 = vsel %vm1355, %v4380, %v4400
      %v4421 = vsel %vm1355, %v4381, %v4401
      %v4422 = vsel %vm1355, %v4382, %v4402
      %v4423 = vsel %vm1355, %v4383, %v4403
      %v4424 = vsel %vm1355, %v4384, %v4404
      %v4425 = vsel %vm1355, %v4385, %v4405
      %v4426 = vsel %vm1355, %v4386, %v4406
      %v4427 = vsel %vm1355, %v4387, %v4407
      %v4428 = vsel %vm1355, %v4388, %v4408
      %v4429 = vsel %vm1355, %v4389, %v4409
      %v4430 = vsel %vm1355, %v4390, %v4410
      %v4431 = vsel %vm1355, %v4391, %v4411
      %v4432 = vsel %vm1355, %v4392, %v4412
      %v4433 = vsel %vm1355, %v4393, %v4413
      %v4434 = vsel %vm1355, %v4354, %v4374
      %v4435 = vsel %vm1355, %v4355, %v4375
      %v4436 = vsel %vm1355, %v4356, %v4376
      %v4437 = vsel %vm1355, %v4357, %v4377
      %v4438 = vsel %vm1355, %v4358, %v4378
      %v4439 = vsel %vm1355, %v4359, %v4379
      %v4440 = vsel %vm1355, %v4360, %v4380
      %v4441 = vsel %vm1355, %v4361, %v4381
      %v4442 = vsel %vm1355, %v4362, %v4382
      %v4443 = vsel %vm1355, %v4363, %v4383
      %v4444 = vsel %vm1355, %v4364, %v4384
      %v4445 = vsel %vm1355, %v4365, %v4385
      %v4446 = vsel %vm1355, %v4366, %v4386
      %v4447 = vsel %vm1355, %v4367, %v4387
      %v4448 = vsel %vm1355, %v4368, %v4388
      %v4449 = vsel %vm1355, %v4369, %v4389
      %v4450 = vsel %vm1355, %v4370, %v4390
      %v4451 = vsel %vm1355, %v4371, %v4391
      %v4452 = vsel %vm1355, %v4372, %v4392
      %v4453 = vsel %vm1355, %v4373, %v4393
      %v4454 = vsel %vm1355, %v4394, %v4354
      %v4455 = vsel %vm1355, %v4395, %v4355
      %v4456 = vsel %vm1355, %v4396, %v4356
      %v4457 = vsel %vm1355, %v4397, %v4357
      %v4458 = vsel %vm1355, %v4398, %v4358
      %v4459 = vsel %vm1355, %v4399, %v4359
      %v4460 = vsel %vm1355, %v4400, %v4360
      %v4461 = vsel %vm1355, %v4401, %v4361
      %v4462 = vsel %vm1355, %v4402, %v4362
      %v4463 = vsel %vm1355, %v4403, %v4363
      %v4464 = vsel %vm1355, %v4404, %v4364
      %v4465 = vsel %vm1355, %v4405, %v4365
      %v4466 = vsel %vm1355, %v4406, %v4366
      %v4467 = vsel %vm1355, %v4407, %v4367
      %v4468 = vsel %vm1355, %v4408, %v4368
      %v4469 = vsel %vm1355, %v4409, %v4369
      %v4470 = vsel %vm1355, %v4410, %v4370
      %v4471 = vsel %vm1355, %v4411, %v4371
      %v4472 = vsel %vm1355, %v4412, %v4372
      %v4473 = vsel %vm1355, %v4413, %v4373
      %v4474 = vmax.f32 %v4294, %v4454
      %v4475 = vmax.f32 %v4295, %v4434
      %v4476 = vmax.f32 %v4296, %v4414
      %v4477 = vmax.f32 %v4297, %v4455
      %v4478 = vmax.f32 %v4298, %v4435
      %v4479 = vmax.f32 %v4299, %v4415
      %v4480 = vmax.f32 %v4300, %v4456
      %v4481 = vmax.f32 %v4301, %v4436
      %v4482 = vmax.f32 %v4302, %v4416
      %v4483 = vmax.f32 %v4303, %v4457
      %v4484 = vmax.f32 %v4304, %v4437
      %v4485 = vmax.f32 %v4305, %v4417
      %v4486 = vmax.f32 %v4306, %v4458
      %v4487 = vmax.f32 %v4307, %v4438
      %v4488 = vmax.f32 %v4308, %v4418
      %v4489 = vmax.f32 %v4309, %v4459
      %v4490 = vmax.f32 %v4310, %v4439
      %v4491 = vmax.f32 %v4311, %v4419
      %v4492 = vmax.f32 %v4312, %v4460
      %v4493 = vmax.f32 %v4313, %v4440
      %v4494 = vmax.f32 %v4314, %v4420
      %v4495 = vmax.f32 %v4315, %v4461
      %v4496 = vmax.f32 %v4316, %v4441
      %v4497 = vmax.f32 %v4317, %v4421
      %v4498 = vmax.f32 %v4318, %v4462
      %v4499 = vmax.f32 %v4319, %v4442
      %v4500 = vmax.f32 %v4320, %v4422
      %v4501 = vmax.f32 %v4321, %v4463
      %v4502 = vmax.f32 %v4322, %v4443
      %v4503 = vmax.f32 %v4323, %v4423
      %v4504 = vmax.f32 %v4324, %v4464
      %v4505 = vmax.f32 %v4325, %v4444
      %v4506 = vmax.f32 %v4326, %v4424
      %v4507 = vmax.f32 %v4327, %v4465
      %v4508 = vmax.f32 %v4328, %v4445
      %v4509 = vmax.f32 %v4329, %v4425
      %v4510 = vmax.f32 %v4330, %v4466
      %v4511 = vmax.f32 %v4331, %v4446
      %v4512 = vmax.f32 %v4332, %v4426
      %v4513 = vmax.f32 %v4333, %v4467
      %v4514 = vmax.f32 %v4334, %v4447
      %v4515 = vmax.f32 %v4335, %v4427
      %v4516 = vmax.f32 %v4336, %v4468
      %v4517 = vmax.f32 %v4337, %v4448
      %v4518 = vmax.f32 %v4338, %v4428
      %v4519 = vmax.f32 %v4339, %v4469
      %v4520 = vmax.f32 %v4340, %v4449
      %v4521 = vmax.f32 %v4341, %v4429
      %v4522 = vmax.f32 %v4342, %v4470
      %v4523 = vmax.f32 %v4343, %v4450
      %v4524 = vmax.f32 %v4344, %v4430
      %v4525 = vmax.f32 %v4345, %v4471
      %v4526 = vmax.f32 %v4346, %v4451
      %v4527 = vmax.f32 %v4347, %v4431
      %v4528 = vmax.f32 %v4348, %v4472
      %v4529 = vmax.f32 %v4349, %v4452
      %v4530 = vmax.f32 %v4350, %v4432
      %v4531 = vmax.f32 %v4351, %v4473
      %v4532 = vmax.f32 %v4352, %v4453
      %v4533 = vmax.f32 %v4353, %v4433
      %v4534 = vrot.slane %v4294, 6
      %v4535 = vrot.slane %v4297, 6
      %v4536 = vrot.slane %v4300, 6
      %v4537 = vrot.slane %v4303, 6
      %v4538 = vrot.slane %v4306, 6
      %v4539 = vrot.slane %v4309, 6
      %v4540 = vrot.slane %v4312, 6
      %v4541 = vrot.slane %v4315, 6
      %v4542 = vrot.slane %v4318, 6
      %v4543 = vrot.slane %v4321, 6
      %v4544 = vrot.slane %v4324, 6
      %v4545 = vrot.slane %v4327, 6
      %v4546 = vrot.slane %v4330, 6
      %v4547 = vrot.slane %v4333, 6
      %v4548 = vrot.slane %v4336, 6
      %v4549 = vrot.slane %v4339, 6
      %v4550 = vrot.slane %v4342, 6
      %v4551 = vrot.slane %v4345, 6
      %v4552 = vrot.slane %v4348, 6
      %v4553 = vrot.slane %v4351, 6
      %v4554 = vrot.slane %v4295, 6
      %v4555 = vrot.slane %v4298, 6
      %v4556 = vrot.slane %v4301, 6
      %v4557 = vrot.slane %v4304, 6
      %v4558 = vrot.slane %v4307, 6
      %v4559 = vrot.slane %v4310, 6
      %v4560 = vrot.slane %v4313, 6
      %v4561 = vrot.slane %v4316, 6
      %v4562 = vrot.slane %v4319, 6
      %v4563 = vrot.slane %v4322, 6
      %v4564 = vrot.slane %v4325, 6
      %v4565 = vrot.slane %v4328, 6
      %v4566 = vrot.slane %v4331, 6
      %v4567 = vrot.slane %v4334, 6
      %v4568 = vrot.slane %v4337, 6
      %v4569 = vrot.slane %v4340, 6
      %v4570 = vrot.slane %v4343, 6
      %v4571 = vrot.slane %v4346, 6
      %v4572 = vrot.slane %v4349, 6
      %v4573 = vrot.slane %v4352, 6
      %v4574 = vrot.slane %v4296, 6
      %v4575 = vrot.slane %v4299, 6
      %v4576 = vrot.slane %v4302, 6
      %v4577 = vrot.slane %v4305, 6
      %v4578 = vrot.slane %v4308, 6
      %v4579 = vrot.slane %v4311, 6
      %v4580 = vrot.slane %v4314, 6
      %v4581 = vrot.slane %v4317, 6
      %v4582 = vrot.slane %v4320, 6
      %v4583 = vrot.slane %v4323, 6
      %v4584 = vrot.slane %v4326, 6
      %v4585 = vrot.slane %v4329, 6
      %v4586 = vrot.slane %v4332, 6
      %v4587 = vrot.slane %v4335, 6
      %v4588 = vrot.slane %v4338, 6
      %v4589 = vrot.slane %v4341, 6
      %v4590 = vrot.slane %v4344, 6
      %v4591 = vrot.slane %v4347, 6
      %v4592 = vrot.slane %v4350, 6
      %v4593 = vrot.slane %v4353, 6
      %v4594 = vsel %vm1536, %v4554, %v4574
      %v4595 = vsel %vm1536, %v4555, %v4575
      %v4596 = vsel %vm1536, %v4556, %v4576
      %v4597 = vsel %vm1536, %v4557, %v4577
      %v4598 = vsel %vm1536, %v4558, %v4578
      %v4599 = vsel %vm1536, %v4559, %v4579
      %v4600 = vsel %vm1536, %v4560, %v4580
      %v4601 = vsel %vm1536, %v4561, %v4581
      %v4602 = vsel %vm1536, %v4562, %v4582
      %v4603 = vsel %vm1536, %v4563, %v4583
      %v4604 = vsel %vm1536, %v4564, %v4584
      %v4605 = vsel %vm1536, %v4565, %v4585
      %v4606 = vsel %vm1536, %v4566, %v4586
      %v4607 = vsel %vm1536, %v4567, %v4587
      %v4608 = vsel %vm1536, %v4568, %v4588
      %v4609 = vsel %vm1536, %v4569, %v4589
      %v4610 = vsel %vm1536, %v4570, %v4590
      %v4611 = vsel %vm1536, %v4571, %v4591
      %v4612 = vsel %vm1536, %v4572, %v4592
      %v4613 = vsel %vm1536, %v4573, %v4593
      %v4614 = vsel %vm1536, %v4534, %v4554
      %v4615 = vsel %vm1536, %v4535, %v4555
      %v4616 = vsel %vm1536, %v4536, %v4556
      %v4617 = vsel %vm1536, %v4537, %v4557
      %v4618 = vsel %vm1536, %v4538, %v4558
      %v4619 = vsel %vm1536, %v4539, %v4559
      %v4620 = vsel %vm1536, %v4540, %v4560
      %v4621 = vsel %vm1536, %v4541, %v4561
      %v4622 = vsel %vm1536, %v4542, %v4562
      %v4623 = vsel %vm1536, %v4543, %v4563
      %v4624 = vsel %vm1536, %v4544, %v4564
      %v4625 = vsel %vm1536, %v4545, %v4565
      %v4626 = vsel %vm1536, %v4546, %v4566
      %v4627 = vsel %vm1536, %v4547, %v4567
      %v4628 = vsel %vm1536, %v4548, %v4568
      %v4629 = vsel %vm1536, %v4549, %v4569
      %v4630 = vsel %vm1536, %v4550, %v4570
      %v4631 = vsel %vm1536, %v4551, %v4571
      %v4632 = vsel %vm1536, %v4552, %v4572
      %v4633 = vsel %vm1536, %v4553, %v4573
      %v4634 = vsel %vm1536, %v4574, %v4534
      %v4635 = vsel %vm1536, %v4575, %v4535
      %v4636 = vsel %vm1536, %v4576, %v4536
      %v4637 = vsel %vm1536, %v4577, %v4537
      %v4638 = vsel %vm1536, %v4578, %v4538
      %v4639 = vsel %vm1536, %v4579, %v4539
      %v4640 = vsel %vm1536, %v4580, %v4540
      %v4641 = vsel %vm1536, %v4581, %v4541
      %v4642 = vsel %vm1536, %v4582, %v4542
      %v4643 = vsel %vm1536, %v4583, %v4543
      %v4644 = vsel %vm1536, %v4584, %v4544
      %v4645 = vsel %vm1536, %v4585, %v4545
      %v4646 = vsel %vm1536, %v4586, %v4546
      %v4647 = vsel %vm1536, %v4587, %v4547
      %v4648 = vsel %vm1536, %v4588, %v4548
      %v4649 = vsel %vm1536, %v4589, %v4549
      %v4650 = vsel %vm1536, %v4590, %v4550
      %v4651 = vsel %vm1536, %v4591, %v4551
      %v4652 = vsel %vm1536, %v4592, %v4552
      %v4653 = vsel %vm1536, %v4593, %v4553
      %v4654 = vmax.f32 %v4474, %v4634
      %v4655 = vmax.f32 %v4475, %v4614
      %v4656 = vmax.f32 %v4476, %v4594
      %v4657 = vmax.f32 %v4477, %v4635
      %v4658 = vmax.f32 %v4478, %v4615
      %v4659 = vmax.f32 %v4479, %v4595
      %v4660 = vmax.f32 %v4480, %v4636
      %v4661 = vmax.f32 %v4481, %v4616
      %v4662 = vmax.f32 %v4482, %v4596
      %v4663 = vmax.f32 %v4483, %v4637
      %v4664 = vmax.f32 %v4484, %v4617
      %v4665 = vmax.f32 %v4485, %v4597
      %v4666 = vmax.f32 %v4486, %v4638
      %v4667 = vmax.f32 %v4487, %v4618
      %v4668 = vmax.f32 %v4488, %v4598
      %v4669 = vmax.f32 %v4489, %v4639
      %v4670 = vmax.f32 %v4490, %v4619
      %v4671 = vmax.f32 %v4491, %v4599
      %v4672 = vmax.f32 %v4492, %v4640
      %v4673 = vmax.f32 %v4493, %v4620
      %v4674 = vmax.f32 %v4494, %v4600
      %v4675 = vmax.f32 %v4495, %v4641
      %v4676 = vmax.f32 %v4496, %v4621
      %v4677 = vmax.f32 %v4497, %v4601
      %v4678 = vmax.f32 %v4498, %v4642
      %v4679 = vmax.f32 %v4499, %v4622
      %v4680 = vmax.f32 %v4500, %v4602
      %v4681 = vmax.f32 %v4501, %v4643
      %v4682 = vmax.f32 %v4502, %v4623
      %v4683 = vmax.f32 %v4503, %v4603
      %v4684 = vmax.f32 %v4504, %v4644
      %v4685 = vmax.f32 %v4505, %v4624
      %v4686 = vmax.f32 %v4506, %v4604
      %v4687 = vmax.f32 %v4507, %v4645
      %v4688 = vmax.f32 %v4508, %v4625
      %v4689 = vmax.f32 %v4509, %v4605
      %v4690 = vmax.f32 %v4510, %v4646
      %v4691 = vmax.f32 %v4511, %v4626
      %v4692 = vmax.f32 %v4512, %v4606
      %v4693 = vmax.f32 %v4513, %v4647
      %v4694 = vmax.f32 %v4514, %v4627
      %v4695 = vmax.f32 %v4515, %v4607
      %v4696 = vmax.f32 %v4516, %v4648
      %v4697 = vmax.f32 %v4517, %v4628
      %v4698 = vmax.f32 %v4518, %v4608
      %v4699 = vmax.f32 %v4519, %v4649
      %v4700 = vmax.f32 %v4520, %v4629
      %v4701 = vmax.f32 %v4521, %v4609
      %v4702 = vmax.f32 %v4522, %v4650
      %v4703 = vmax.f32 %v4523, %v4630
      %v4704 = vmax.f32 %v4524, %v4610
      %v4705 = vmax.f32 %v4525, %v4651
      %v4706 = vmax.f32 %v4526, %v4631
      %v4707 = vmax.f32 %v4527, %v4611
      %v4708 = vmax.f32 %v4528, %v4652
      %v4709 = vmax.f32 %v4529, %v4632
      %v4710 = vmax.f32 %v4530, %v4612
      %v4711 = vmax.f32 %v4531, %v4653
      %v4712 = vmax.f32 %v4532, %v4633
      %v4713 = vmax.f32 %v4533, %v4613
      %v4714 = vrot.slane %v4294, 1
      %v4715 = vrot.slane %v4297, 1
      %v4716 = vrot.slane %v4300, 1
      %v4717 = vrot.slane %v4303, 1
      %v4718 = vrot.slane %v4306, 1
      %v4719 = vrot.slane %v4309, 1
      %v4720 = vrot.slane %v4312, 1
      %v4721 = vrot.slane %v4315, 1
      %v4722 = vrot.slane %v4318, 1
      %v4723 = vrot.slane %v4321, 1
      %v4724 = vrot.slane %v4324, 1
      %v4725 = vrot.slane %v4327, 1
      %v4726 = vrot.slane %v4330, 1
      %v4727 = vrot.slane %v4333, 1
      %v4728 = vrot.slane %v4336, 1
      %v4729 = vrot.slane %v4339, 1
      %v4730 = vrot.slane %v4342, 1
      %v4731 = vrot.slane %v4345, 1
      %v4732 = vrot.slane %v4348, 1
      %v4733 = vrot.slane %v4351, 1
      %v4734 = vrot.slane %v4295, 1
      %v4735 = vrot.slane %v4298, 1
      %v4736 = vrot.slane %v4301, 1
      %v4737 = vrot.slane %v4304, 1
      %v4738 = vrot.slane %v4307, 1
      %v4739 = vrot.slane %v4310, 1
      %v4740 = vrot.slane %v4313, 1
      %v4741 = vrot.slane %v4316, 1
      %v4742 = vrot.slane %v4319, 1
      %v4743 = vrot.slane %v4322, 1
      %v4744 = vrot.slane %v4325, 1
      %v4745 = vrot.slane %v4328, 1
      %v4746 = vrot.slane %v4331, 1
      %v4747 = vrot.slane %v4334, 1
      %v4748 = vrot.slane %v4337, 1
      %v4749 = vrot.slane %v4340, 1
      %v4750 = vrot.slane %v4343, 1
      %v4751 = vrot.slane %v4346, 1
      %v4752 = vrot.slane %v4349, 1
      %v4753 = vrot.slane %v4352, 1
      %v4754 = vrot.slane %v4296, 1
      %v4755 = vrot.slane %v4299, 1
      %v4756 = vrot.slane %v4302, 1
      %v4757 = vrot.slane %v4305, 1
      %v4758 = vrot.slane %v4308, 1
      %v4759 = vrot.slane %v4311, 1
      %v4760 = vrot.slane %v4314, 1
      %v4761 = vrot.slane %v4317, 1
      %v4762 = vrot.slane %v4320, 1
      %v4763 = vrot.slane %v4323, 1
      %v4764 = vrot.slane %v4326, 1
      %v4765 = vrot.slane %v4329, 1
      %v4766 = vrot.slane %v4332, 1
      %v4767 = vrot.slane %v4335, 1
      %v4768 = vrot.slane %v4338, 1
      %v4769 = vrot.slane %v4341, 1
      %v4770 = vrot.slane %v4344, 1
      %v4771 = vrot.slane %v4347, 1
      %v4772 = vrot.slane %v4350, 1
      %v4773 = vrot.slane %v4353, 1
      %v4774 = vsel %vm1717, %v4734, %v4754
      %v4775 = vsel %vm1717, %v4735, %v4755
      %v4776 = vsel %vm1717, %v4736, %v4756
      %v4777 = vsel %vm1717, %v4737, %v4757
      %v4778 = vsel %vm1717, %v4738, %v4758
      %v4779 = vsel %vm1717, %v4739, %v4759
      %v4780 = vsel %vm1717, %v4740, %v4760
      %v4781 = vsel %vm1717, %v4741, %v4761
      %v4782 = vsel %vm1717, %v4742, %v4762
      %v4783 = vsel %vm1717, %v4743, %v4763
      %v4784 = vsel %vm1717, %v4744, %v4764
      %v4785 = vsel %vm1717, %v4745, %v4765
      %v4786 = vsel %vm1717, %v4746, %v4766
      %v4787 = vsel %vm1717, %v4747, %v4767
      %v4788 = vsel %vm1717, %v4748, %v4768
      %v4789 = vsel %vm1717, %v4749, %v4769
      %v4790 = vsel %vm1717, %v4750, %v4770
      %v4791 = vsel %vm1717, %v4751, %v4771
      %v4792 = vsel %vm1717, %v4752, %v4772
      %v4793 = vsel %vm1717, %v4753, %v4773
      %v4794 = vsel %vm1717, %v4714, %v4734
      %v4795 = vsel %vm1717, %v4715, %v4735
      %v4796 = vsel %vm1717, %v4716, %v4736
      %v4797 = vsel %vm1717, %v4717, %v4737
      %v4798 = vsel %vm1717, %v4718, %v4738
      %v4799 = vsel %vm1717, %v4719, %v4739
      %v4800 = vsel %vm1717, %v4720, %v4740
      %v4801 = vsel %vm1717, %v4721, %v4741
      %v4802 = vsel %vm1717, %v4722, %v4742
      %v4803 = vsel %vm1717, %v4723, %v4743
      %v4804 = vsel %vm1717, %v4724, %v4744
      %v4805 = vsel %vm1717, %v4725, %v4745
      %v4806 = vsel %vm1717, %v4726, %v4746
      %v4807 = vsel %vm1717, %v4727, %v4747
      %v4808 = vsel %vm1717, %v4728, %v4748
      %v4809 = vsel %vm1717, %v4729, %v4749
      %v4810 = vsel %vm1717, %v4730, %v4750
      %v4811 = vsel %vm1717, %v4731, %v4751
      %v4812 = vsel %vm1717, %v4732, %v4752
      %v4813 = vsel %vm1717, %v4733, %v4753
      %v4814 = vsel %vm1717, %v4754, %v4714
      %v4815 = vsel %vm1717, %v4755, %v4715
      %v4816 = vsel %vm1717, %v4756, %v4716
      %v4817 = vsel %vm1717, %v4757, %v4717
      %v4818 = vsel %vm1717, %v4758, %v4718
      %v4819 = vsel %vm1717, %v4759, %v4719
      %v4820 = vsel %vm1717, %v4760, %v4720
      %v4821 = vsel %vm1717, %v4761, %v4721
      %v4822 = vsel %vm1717, %v4762, %v4722
      %v4823 = vsel %vm1717, %v4763, %v4723
      %v4824 = vsel %vm1717, %v4764, %v4724
      %v4825 = vsel %vm1717, %v4765, %v4725
      %v4826 = vsel %vm1717, %v4766, %v4726
      %v4827 = vsel %vm1717, %v4767, %v4727
      %v4828 = vsel %vm1717, %v4768, %v4728
      %v4829 = vsel %vm1717, %v4769, %v4729
      %v4830 = vsel %vm1717, %v4770, %v4730
      %v4831 = vsel %vm1717, %v4771, %v4731
      %v4832 = vsel %vm1717, %v4772, %v4732
      %v4833 = vsel %vm1717, %v4773, %v4733
      %v4834 = vmax.f32 %v4654, %v4794
      %v4835 = vmax.f32 %v4655, %v4774
      %v4836 = vmax.f32 %v4656, %v4814
      %v4837 = vmax.f32 %v4657, %v4795
      %v4838 = vmax.f32 %v4658, %v4775
      %v4839 = vmax.f32 %v4659, %v4815
      %v4840 = vmax.f32 %v4660, %v4796
      %v4841 = vmax.f32 %v4661, %v4776
      %v4842 = vmax.f32 %v4662, %v4816
      %v4843 = vmax.f32 %v4663, %v4797
      %v4844 = vmax.f32 %v4664, %v4777
      %v4845 = vmax.f32 %v4665, %v4817
      %v4846 = vmax.f32 %v4666, %v4798
      %v4847 = vmax.f32 %v4667, %v4778
      %v4848 = vmax.f32 %v4668, %v4818
      %v4849 = vmax.f32 %v4669, %v4799
      %v4850 = vmax.f32 %v4670, %v4779
      %v4851 = vmax.f32 %v4671, %v4819
      %v4852 = vmax.f32 %v4672, %v4800
      %v4853 = vmax.f32 %v4673, %v4780
      %v4854 = vmax.f32 %v4674, %v4820
      %v4855 = vmax.f32 %v4675, %v4801
      %v4856 = vmax.f32 %v4676, %v4781
      %v4857 = vmax.f32 %v4677, %v4821
      %v4858 = vmax.f32 %v4678, %v4802
      %v4859 = vmax.f32 %v4679, %v4782
      %v4860 = vmax.f32 %v4680, %v4822
      %v4861 = vmax.f32 %v4681, %v4803
      %v4862 = vmax.f32 %v4682, %v4783
      %v4863 = vmax.f32 %v4683, %v4823
      %v4864 = vmax.f32 %v4684, %v4804
      %v4865 = vmax.f32 %v4685, %v4784
      %v4866 = vmax.f32 %v4686, %v4824
      %v4867 = vmax.f32 %v4687, %v4805
      %v4868 = vmax.f32 %v4688, %v4785
      %v4869 = vmax.f32 %v4689, %v4825
      %v4870 = vmax.f32 %v4690, %v4806
      %v4871 = vmax.f32 %v4691, %v4786
      %v4872 = vmax.f32 %v4692, %v4826
      %v4873 = vmax.f32 %v4693, %v4807
      %v4874 = vmax.f32 %v4694, %v4787
      %v4875 = vmax.f32 %v4695, %v4827
      %v4876 = vmax.f32 %v4696, %v4808
      %v4877 = vmax.f32 %v4697, %v4788
      %v4878 = vmax.f32 %v4698, %v4828
      %v4879 = vmax.f32 %v4699, %v4809
      %v4880 = vmax.f32 %v4700, %v4789
      %v4881 = vmax.f32 %v4701, %v4829
      %v4882 = vmax.f32 %v4702, %v4810
      %v4883 = vmax.f32 %v4703, %v4790
      %v4884 = vmax.f32 %v4704, %v4830
      %v4885 = vmax.f32 %v4705, %v4811
      %v4886 = vmax.f32 %v4706, %v4791
      %v4887 = vmax.f32 %v4707, %v4831
      %v4888 = vmax.f32 %v4708, %v4812
      %v4889 = vmax.f32 %v4709, %v4792
      %v4890 = vmax.f32 %v4710, %v4832
      %v4891 = vmax.f32 %v4711, %v4813
      %v4892 = vmax.f32 %v4712, %v4793
      %v4893 = vmax.f32 %v4713, %v4833
      %v4894 = vrot.slane %v4294, 2
      %v4895 = vrot.slane %v4297, 2
      %v4896 = vrot.slane %v4300, 2
      %v4897 = vrot.slane %v4303, 2
      %v4898 = vrot.slane %v4306, 2
      %v4899 = vrot.slane %v4309, 2
      %v4900 = vrot.slane %v4312, 2
      %v4901 = vrot.slane %v4315, 2
      %v4902 = vrot.slane %v4318, 2
      %v4903 = vrot.slane %v4321, 2
      %v4904 = vrot.slane %v4324, 2
      %v4905 = vrot.slane %v4327, 2
      %v4906 = vrot.slane %v4330, 2
      %v4907 = vrot.slane %v4333, 2
      %v4908 = vrot.slane %v4336, 2
      %v4909 = vrot.slane %v4339, 2
      %v4910 = vrot.slane %v4342, 2
      %v4911 = vrot.slane %v4345, 2
      %v4912 = vrot.slane %v4348, 2
      %v4913 = vrot.slane %v4351, 2
      %v4914 = vrot.slane %v4295, 2
      %v4915 = vrot.slane %v4298, 2
      %v4916 = vrot.slane %v4301, 2
      %v4917 = vrot.slane %v4304, 2
      %v4918 = vrot.slane %v4307, 2
      %v4919 = vrot.slane %v4310, 2
      %v4920 = vrot.slane %v4313, 2
      %v4921 = vrot.slane %v4316, 2
      %v4922 = vrot.slane %v4319, 2
      %v4923 = vrot.slane %v4322, 2
      %v4924 = vrot.slane %v4325, 2
      %v4925 = vrot.slane %v4328, 2
      %v4926 = vrot.slane %v4331, 2
      %v4927 = vrot.slane %v4334, 2
      %v4928 = vrot.slane %v4337, 2
      %v4929 = vrot.slane %v4340, 2
      %v4930 = vrot.slane %v4343, 2
      %v4931 = vrot.slane %v4346, 2
      %v4932 = vrot.slane %v4349, 2
      %v4933 = vrot.slane %v4352, 2
      %v4934 = vrot.slane %v4296, 2
      %v4935 = vrot.slane %v4299, 2
      %v4936 = vrot.slane %v4302, 2
      %v4937 = vrot.slane %v4305, 2
      %v4938 = vrot.slane %v4308, 2
      %v4939 = vrot.slane %v4311, 2
      %v4940 = vrot.slane %v4314, 2
      %v4941 = vrot.slane %v4317, 2
      %v4942 = vrot.slane %v4320, 2
      %v4943 = vrot.slane %v4323, 2
      %v4944 = vrot.slane %v4326, 2
      %v4945 = vrot.slane %v4329, 2
      %v4946 = vrot.slane %v4332, 2
      %v4947 = vrot.slane %v4335, 2
      %v4948 = vrot.slane %v4338, 2
      %v4949 = vrot.slane %v4341, 2
      %v4950 = vrot.slane %v4344, 2
      %v4951 = vrot.slane %v4347, 2
      %v4952 = vrot.slane %v4350, 2
      %v4953 = vrot.slane %v4353, 2
      %v4954 = vsel %vm1898, %v4914, %v4934
      %v4955 = vsel %vm1898, %v4915, %v4935
      %v4956 = vsel %vm1898, %v4916, %v4936
      %v4957 = vsel %vm1898, %v4917, %v4937
      %v4958 = vsel %vm1898, %v4918, %v4938
      %v4959 = vsel %vm1898, %v4919, %v4939
      %v4960 = vsel %vm1898, %v4920, %v4940
      %v4961 = vsel %vm1898, %v4921, %v4941
      %v4962 = vsel %vm1898, %v4922, %v4942
      %v4963 = vsel %vm1898, %v4923, %v4943
      %v4964 = vsel %vm1898, %v4924, %v4944
      %v4965 = vsel %vm1898, %v4925, %v4945
      %v4966 = vsel %vm1898, %v4926, %v4946
      %v4967 = vsel %vm1898, %v4927, %v4947
      %v4968 = vsel %vm1898, %v4928, %v4948
      %v4969 = vsel %vm1898, %v4929, %v4949
      %v4970 = vsel %vm1898, %v4930, %v4950
      %v4971 = vsel %vm1898, %v4931, %v4951
      %v4972 = vsel %vm1898, %v4932, %v4952
      %v4973 = vsel %vm1898, %v4933, %v4953
      %v4974 = vsel %vm1898, %v4894, %v4914
      %v4975 = vsel %vm1898, %v4895, %v4915
      %v4976 = vsel %vm1898, %v4896, %v4916
      %v4977 = vsel %vm1898, %v4897, %v4917
      %v4978 = vsel %vm1898, %v4898, %v4918
      %v4979 = vsel %vm1898, %v4899, %v4919
      %v4980 = vsel %vm1898, %v4900, %v4920
      %v4981 = vsel %vm1898, %v4901, %v4921
      %v4982 = vsel %vm1898, %v4902, %v4922
      %v4983 = vsel %vm1898, %v4903, %v4923
      %v4984 = vsel %vm1898, %v4904, %v4924
      %v4985 = vsel %vm1898, %v4905, %v4925
      %v4986 = vsel %vm1898, %v4906, %v4926
      %v4987 = vsel %vm1898, %v4907, %v4927
      %v4988 = vsel %vm1898, %v4908, %v4928
      %v4989 = vsel %vm1898, %v4909, %v4929
      %v4990 = vsel %vm1898, %v4910, %v4930
      %v4991 = vsel %vm1898, %v4911, %v4931
      %v4992 = vsel %vm1898, %v4912, %v4932
      %v4993 = vsel %vm1898, %v4913, %v4933
      %v4994 = vsel %vm1898, %v4934, %v4894
      %v4995 = vsel %vm1898, %v4935, %v4895
      %v4996 = vsel %vm1898, %v4936, %v4896
      %v4997 = vsel %vm1898, %v4937, %v4897
      %v4998 = vsel %vm1898, %v4938, %v4898
      %v4999 = vsel %vm1898, %v4939, %v4899
      %v5000 = vsel %vm1898, %v4940, %v4900
      %v5001 = vsel %vm1898, %v4941, %v4901
      %v5002 = vsel %vm1898, %v4942, %v4902
      %v5003 = vsel %vm1898, %v4943, %v4903
      %v5004 = vsel %vm1898, %v4944, %v4904
      %v5005 = vsel %vm1898, %v4945, %v4905
      %v5006 = vsel %vm1898, %v4946, %v4906
      %v5007 = vsel %vm1898, %v4947, %v4907
      %v5008 = vsel %vm1898, %v4948, %v4908
      %v5009 = vsel %vm1898, %v4949, %v4909
      %v5010 = vsel %vm1898, %v4950, %v4910
      %v5011 = vsel %vm1898, %v4951, %v4911
      %v5012 = vsel %vm1898, %v4952, %v4912
      %v5013 = vsel %vm1898, %v4953, %v4913
      %v5014 = vmax.f32 %v4834, %v4974
      %v5015 = vmax.f32 %v4835, %v4954
      %v5016 = vmax.f32 %v4836, %v4994
      %v5017 = vmax.f32 %v4837, %v4975
      %v5018 = vmax.f32 %v4838, %v4955
      %v5019 = vmax.f32 %v4839, %v4995
      %v5020 = vmax.f32 %v4840, %v4976
      %v5021 = vmax.f32 %v4841, %v4956
      %v5022 = vmax.f32 %v4842, %v4996
      %v5023 = vmax.f32 %v4843, %v4977
      %v5024 = vmax.f32 %v4844, %v4957
      %v5025 = vmax.f32 %v4845, %v4997
      %v5026 = vmax.f32 %v4846, %v4978
      %v5027 = vmax.f32 %v4847, %v4958
      %v5028 = vmax.f32 %v4848, %v4998
      %v5029 = vmax.f32 %v4849, %v4979
      %v5030 = vmax.f32 %v4850, %v4959
      %v5031 = vmax.f32 %v4851, %v4999
      %v5032 = vmax.f32 %v4852, %v4980
      %v5033 = vmax.f32 %v4853, %v4960
      %v5034 = vmax.f32 %v4854, %v5000
      %v5035 = vmax.f32 %v4855, %v4981
      %v5036 = vmax.f32 %v4856, %v4961
      %v5037 = vmax.f32 %v4857, %v5001
      %v5038 = vmax.f32 %v4858, %v4982
      %v5039 = vmax.f32 %v4859, %v4962
      %v5040 = vmax.f32 %v4860, %v5002
      %v5041 = vmax.f32 %v4861, %v4983
      %v5042 = vmax.f32 %v4862, %v4963
      %v5043 = vmax.f32 %v4863, %v5003
      %v5044 = vmax.f32 %v4864, %v4984
      %v5045 = vmax.f32 %v4865, %v4964
      %v5046 = vmax.f32 %v4866, %v5004
      %v5047 = vmax.f32 %v4867, %v4985
      %v5048 = vmax.f32 %v4868, %v4965
      %v5049 = vmax.f32 %v4869, %v5005
      %v5050 = vmax.f32 %v4870, %v4986
      %v5051 = vmax.f32 %v4871, %v4966
      %v5052 = vmax.f32 %v4872, %v5006
      %v5053 = vmax.f32 %v4873, %v4987
      %v5054 = vmax.f32 %v4874, %v4967
      %v5055 = vmax.f32 %v4875, %v5007
      %v5056 = vmax.f32 %v4876, %v4988
      %v5057 = vmax.f32 %v4877, %v4968
      %v5058 = vmax.f32 %v4878, %v5008
      %v5059 = vmax.f32 %v4879, %v4989
      %v5060 = vmax.f32 %v4880, %v4969
      %v5061 = vmax.f32 %v4881, %v5009
      %v5062 = vmax.f32 %v4882, %v4990
      %v5063 = vmax.f32 %v4883, %v4970
      %v5064 = vmax.f32 %v4884, %v5010
      %v5065 = vmax.f32 %v4885, %v4991
      %v5066 = vmax.f32 %v4886, %v4971
      %v5067 = vmax.f32 %v4887, %v5011
      %v5068 = vmax.f32 %v4888, %v4992
      %v5069 = vmax.f32 %v4889, %v4972
      %v5070 = vmax.f32 %v4890, %v5012
      %v5071 = vmax.f32 %v4891, %v4993
      %v5072 = vmax.f32 %v4892, %v4973
      %v5073 = vmax.f32 %v4893, %v5013
      %v5074 = vmax.f32 %v5014, %v5017
      %v5075 = vmax.f32 %v5015, %v5018
      %v5076 = vmax.f32 %v5016, %v5019
      %v5077 = vmax.f32 %v5017, %v5020
      %v5078 = vmax.f32 %v5018, %v5021
      %v5079 = vmax.f32 %v5019, %v5022
      %v5080 = vmax.f32 %v5020, %v5023
      %v5081 = vmax.f32 %v5021, %v5024
      %v5082 = vmax.f32 %v5022, %v5025
      %v5083 = vmax.f32 %v5023, %v5026
      %v5084 = vmax.f32 %v5024, %v5027
      %v5085 = vmax.f32 %v5025, %v5028
      %v5086 = vmax.f32 %v5026, %v5029
      %v5087 = vmax.f32 %v5027, %v5030
      %v5088 = vmax.f32 %v5028, %v5031
      %v5089 = vmax.f32 %v5029, %v5032
      %v5090 = vmax.f32 %v5030, %v5033
      %v5091 = vmax.f32 %v5031, %v5034
      %v5092 = vmax.f32 %v5032, %v5035
      %v5093 = vmax.f32 %v5033, %v5036
      %v5094 = vmax.f32 %v5034, %v5037
      %v5095 = vmax.f32 %v5035, %v5038
      %v5096 = vmax.f32 %v5036, %v5039
      %v5097 = vmax.f32 %v5037, %v5040
      %v5098 = vmax.f32 %v5038, %v5041
      %v5099 = vmax.f32 %v5039, %v5042
      %v5100 = vmax.f32 %v5040, %v5043
      %v5101 = vmax.f32 %v5041, %v5044
      %v5102 = vmax.f32 %v5042, %v5045
      %v5103 = vmax.f32 %v5043, %v5046
      %v5104 = vmax.f32 %v5044, %v5047
      %v5105 = vmax.f32 %v5045, %v5048
      %v5106 = vmax.f32 %v5046, %v5049
      %v5107 = vmax.f32 %v5047, %v5050
      %v5108 = vmax.f32 %v5048, %v5051
      %v5109 = vmax.f32 %v5049, %v5052
      %v5110 = vmax.f32 %v5050, %v5053
      %v5111 = vmax.f32 %v5051, %v5054
      %v5112 = vmax.f32 %v5052, %v5055
      %v5113 = vmax.f32 %v5053, %v5056
      %v5114 = vmax.f32 %v5054, %v5057
      %v5115 = vmax.f32 %v5055, %v5058
      %v5116 = vmax.f32 %v5056, %v5059
      %v5117 = vmax.f32 %v5057, %v5060
      %v5118 = vmax.f32 %v5058, %v5061
      %v5119 = vmax.f32 %v5059, %v5062
      %v5120 = vmax.f32 %v5060, %v5063
      %v5121 = vmax.f32 %v5061, %v5064
      %v5122 = vmax.f32 %v5074, %v5020
      %v5123 = vmax.f32 %v5075, %v5021
      %v5124 = vmax.f32 %v5076, %v5022
      %v5125 = vmax.f32 %v5077, %v5023
      %v5126 = vmax.f32 %v5078, %v5024
      %v5127 = vmax.f32 %v5079, %v5025
      %v5128 = vmax.f32 %v5080, %v5026
      %v5129 = vmax.f32 %v5081, %v5027
      %v5130 = vmax.f32 %v5082, %v5028
      %v5131 = vmax.f32 %v5083, %v5029
      %v5132 = vmax.f32 %v5084, %v5030
      %v5133 = vmax.f32 %v5085, %v5031
      %v5134 = vmax.f32 %v5086, %v5032
      %v5135 = vmax.f32 %v5087, %v5033
      %v5136 = vmax.f32 %v5088, %v5034
      %v5137 = vmax.f32 %v5089, %v5035
      %v5138 = vmax.f32 %v5090, %v5036
      %v5139 = vmax.f32 %v5091, %v5037
      %v5140 = vmax.f32 %v5092, %v5038
      %v5141 = vmax.f32 %v5093, %v5039
      %v5142 = vmax.f32 %v5094, %v5040
      %v5143 = vmax.f32 %v5095, %v5041
      %v5144 = vmax.f32 %v5096, %v5042
      %v5145 = vmax.f32 %v5097, %v5043
      %v5146 = vmax.f32 %v5098, %v5044
      %v5147 = vmax.f32 %v5099, %v5045
      %v5148 = vmax.f32 %v5100, %v5046
      %v5149 = vmax.f32 %v5101, %v5047
      %v5150 = vmax.f32 %v5102, %v5048
      %v5151 = vmax.f32 %v5103, %v5049
      %v5152 = vmax.f32 %v5104, %v5050
      %v5153 = vmax.f32 %v5105, %v5051
      %v5154 = vmax.f32 %v5106, %v5052
      %v5155 = vmax.f32 %v5107, %v5053
      %v5156 = vmax.f32 %v5108, %v5054
      %v5157 = vmax.f32 %v5109, %v5055
      %v5158 = vmax.f32 %v5110, %v5056
      %v5159 = vmax.f32 %v5111, %v5057
      %v5160 = vmax.f32 %v5112, %v5058
      %v5161 = vmax.f32 %v5113, %v5059
      %v5162 = vmax.f32 %v5114, %v5060
      %v5163 = vmax.f32 %v5115, %v5061
      %v5164 = vmax.f32 %v5116, %v5062
      %v5165 = vmax.f32 %v5117, %v5063
      %v5166 = vmax.f32 %v5118, %v5064
      %v5167 = vmax.f32 %v5119, %v5065
      %v5168 = vmax.f32 %v5120, %v5066
      %v5169 = vmax.f32 %v5121, %v5067
      %v5170 = vmax.f32 %v5122, %v5023
      %v5171 = vmax.f32 %v5123, %v5024
      %v5172 = vmax.f32 %v5124, %v5025
      %v5173 = vmax.f32 %v5125, %v5026
      %v5174 = vmax.f32 %v5126, %v5027
      %v5175 = vmax.f32 %v5127, %v5028
      %v5176 = vmax.f32 %v5128, %v5029
      %v5177 = vmax.f32 %v5129, %v5030
      %v5178 = vmax.f32 %v5130, %v5031
      %v5179 = vmax.f32 %v5131, %v5032
      %v5180 = vmax.f32 %v5132, %v5033
      %v5181 = vmax.f32 %v5133, %v5034
      %v5182 = vmax.f32 %v5134, %v5035
      %v5183 = vmax.f32 %v5135, %v5036
      %v5184 = vmax.f32 %v5136, %v5037
      %v5185 = vmax.f32 %v5137, %v5038
      %v5186 = vmax.f32 %v5138, %v5039
      %v5187 = vmax.f32 %v5139, %v5040
      %v5188 = vmax.f32 %v5140, %v5041
      %v5189 = vmax.f32 %v5141, %v5042
      %v5190 = vmax.f32 %v5142, %v5043
      %v5191 = vmax.f32 %v5143, %v5044
      %v5192 = vmax.f32 %v5144, %v5045
      %v5193 = vmax.f32 %v5145, %v5046
      %v5194 = vmax.f32 %v5146, %v5047
      %v5195 = vmax.f32 %v5147, %v5048
      %v5196 = vmax.f32 %v5148, %v5049
      %v5197 = vmax.f32 %v5149, %v5050
      %v5198 = vmax.f32 %v5150, %v5051
      %v5199 = vmax.f32 %v5151, %v5052
      %v5200 = vmax.f32 %v5152, %v5053
      %v5201 = vmax.f32 %v5153, %v5054
      %v5202 = vmax.f32 %v5154, %v5055
      %v5203 = vmax.f32 %v5155, %v5056
      %v5204 = vmax.f32 %v5156, %v5057
      %v5205 = vmax.f32 %v5157, %v5058
      %v5206 = vmax.f32 %v5158, %v5059
      %v5207 = vmax.f32 %v5159, %v5060
      %v5208 = vmax.f32 %v5160, %v5061
      %v5209 = vmax.f32 %v5161, %v5062
      %v5210 = vmax.f32 %v5162, %v5063
      %v5211 = vmax.f32 %v5163, %v5064
      %v5212 = vmax.f32 %v5164, %v5065
      %v5213 = vmax.f32 %v5165, %v5066
      %v5214 = vmax.f32 %v5166, %v5067
      %v5215 = vmax.f32 %v5167, %v5068
      %v5216 = vmax.f32 %v5168, %v5069
      %v5217 = vmax.f32 %v5169, %v5070
      %v5218 = vmax.f32 %v5170, %v5026
      %v5219 = vmax.f32 %v5171, %v5027
      %v5220 = vmax.f32 %v5172, %v5028
      %v5221 = vmax.f32 %v5173, %v5029
      %v5222 = vmax.f32 %v5174, %v5030
      %v5223 = vmax.f32 %v5175, %v5031
      %v5224 = vmax.f32 %v5176, %v5032
      %v5225 = vmax.f32 %v5177, %v5033
      %v5226 = vmax.f32 %v5178, %v5034
      %v5227 = vmax.f32 %v5179, %v5035
      %v5228 = vmax.f32 %v5180, %v5036
      %v5229 = vmax.f32 %v5181, %v5037
      %v5230 = vmax.f32 %v5182, %v5038
      %v5231 = vmax.f32 %v5183, %v5039
      %v5232 = vmax.f32 %v5184, %v5040
      %v5233 = vmax.f32 %v5185, %v5041
      %v5234 = vmax.f32 %v5186, %v5042
      %v5235 = vmax.f32 %v5187, %v5043
      %v5236 = vmax.f32 %v5188, %v5044
      %v5237 = vmax.f32 %v5189, %v5045
      %v5238 = vmax.f32 %v5190, %v5046
      %v5239 = vmax.f32 %v5191, %v5047
      %v5240 = vmax.f32 %v5192, %v5048
      %v5241 = vmax.f32 %v5193, %v5049
      %v5242 = vmax.f32 %v5194, %v5050
      %v5243 = vmax.f32 %v5195, %v5051
      %v5244 = vmax.f32 %v5196, %v5052
      %v5245 = vmax.f32 %v5197, %v5053
      %v5246 = vmax.f32 %v5198, %v5054
      %v5247 = vmax.f32 %v5199, %v5055
      %v5248 = vmax.f32 %v5200, %v5056
      %v5249 = vmax.f32 %v5201, %v5057
      %v5250 = vmax.f32 %v5202, %v5058
      %v5251 = vmax.f32 %v5203, %v5059
      %v5252 = vmax.f32 %v5204, %v5060
      %v5253 = vmax.f32 %v5205, %v5061
      %v5254 = vmax.f32 %v5206, %v5062
      %v5255 = vmax.f32 %v5207, %v5063
      %v5256 = vmax.f32 %v5208, %v5064
      %v5257 = vmax.f32 %v5209, %v5065
      %v5258 = vmax.f32 %v5210, %v5066
      %v5259 = vmax.f32 %v5211, %v5067
      %v5260 = vmax.f32 %v5212, %v5068
      %v5261 = vmax.f32 %v5213, %v5069
      %v5262 = vmax.f32 %v5214, %v5070
      %v5263 = vmax.f32 %v5215, %v5071
      %v5264 = vmax.f32 %v5216, %v5072
      %v5265 = vmax.f32 %v5217, %v5073
      %v5266 = vsel %vm2214, %v5218, -inf
      %v5267 = vsel %vm2215, %v5219, -inf
      %v5268 = vsel %vm2216, %v5220, -inf
      %v5269 = vsel %vm2214, %v5221, -inf
      %v5270 = vsel %vm2215, %v5222, -inf
      %v5271 = vsel %vm2216, %v5223, -inf
      %v5272 = vsel %vm2214, %v5224, -inf
      %v5273 = vsel %vm2215, %v5225, -inf
      %v5274 = vsel %vm2216, %v5226, -inf
      %v5275 = vsel %vm2214, %v5227, -inf
      %v5276 = vsel %vm2215, %v5228, -inf
      %v5277 = vsel %vm2216, %v5229, -inf
      %v5278 = vsel %vm2214, %v5230, -inf
      %v5279 = vsel %vm2215, %v5231, -inf
      %v5280 = vsel %vm2216, %v5232, -inf
      %v5281 = vsel %vm2214, %v5233, -inf
      %v5282 = vsel %vm2215, %v5234, -inf
      %v5283 = vsel %vm2216, %v5235, -inf
      %v5284 = vsel %vm2214, %v5236, -inf
      %v5285 = vsel %vm2215, %v5237, -inf
      %v5286 = vsel %vm2216, %v5238, -inf
      %v5287 = vsel %vm2214, %v5239, -inf
      %v5288 = vsel %vm2215, %v5240, -inf
      %v5289 = vsel %vm2216, %v5241, -inf
      %v5290 = vsel %vm2214, %v5242, -inf
      %v5291 = vsel %vm2215, %v5243, -inf
      %v5292 = vsel %vm2216, %v5244, -inf
      %v5293 = vsel %vm2214, %v5245, -inf
      %v5294 = vsel %vm2215, %v5246, -inf
      %v5295 = vsel %vm2216, %v5247, -inf
      %v5296 = vsel %vm2214, %v5248, -inf
      %v5297 = vsel %vm2215, %v5249, -inf
      %v5298 = vsel %vm2216, %v5250, -inf
      %v5299 = vsel %vm2214, %v5251, -inf
      %v5300 = vsel %vm2215, %v5252, -inf
      %v5301 = vsel %vm2216, %v5253, -inf
      %v5302 = vsel %vm2214, %v5254, -inf
      %v5303 = vsel %vm2215, %v5255, -inf
      %v5304 = vsel %vm2216, %v5256, -inf
      %v5305 = vsel %vm2214, %v5257, -inf
      %v5306 = vsel %vm2215, %v5258, -inf
      %v5307 = vsel %vm2216, %v5259, -inf
      %v5308 = vsel %vm2214, %v5260, -inf
      %v5309 = vsel %vm2215, %v5261, -inf
      %v5310 = vsel %vm2216, %v5262, -inf
      %v5311 = vsel %vm2214, %v5263, -inf
      %v5312 = vsel %vm2215, %v5264, -inf
      %v5313 = vsel %vm2216, %v5265, -inf
      %s5314 = scalar_lea.vmem %s3, 6
      %v5315 = vld [vmem:[%s5314] sm:$0x3]
      %v5317 = vsel %vm225, %v5266, 0
      %v5320 = vsel %vm225, %v5267, 0
      %v5323 = vsel %vm225, %v5268, 0
      %v5326 = vsel %vm225, %v5269, 0
      %v5329 = vsel %vm225, %v5270, 0
      %v5332 = vsel %vm225, %v5271, 0
      %v5335 = vsel %vm225, %v5272, 0
      %v5338 = vsel %vm225, %v5273, 0
      %v5341 = vsel %vm225, %v5274, 0
      %v5344 = vsel %vm225, %v5275, 0
      %v5347 = vsel %vm225, %v5276, 0
      %v5350 = vsel %vm225, %v5277, 0
      %v5353 = vsel %vm225, %v5278, 0
      %v5356 = vsel %vm225, %v5279, 0
      %v5359 = vsel %vm225, %v5280, 0
      %v5362 = vsel %vm225, %v5281, 0
      %v5365 = vsel %vm225, %v5282, 0
      %v5368 = vsel %vm225, %v5283, 0
      %v5371 = vsel %vm225, %v5284, 0
      %v5374 = vsel %vm225, %v5285, 0
      %v5377 = vsel %vm225, %v5286, 0
      %v5380 = vsel %vm225, %v5287, 0
      %v5383 = vsel %vm225, %v5288, 0
      %v5386 = vsel %vm225, %v5289, 0
      %v5389 = vsel %vm225, %v5290, 0
      %v5392 = vsel %vm225, %v5291, 0
      %v5395 = vsel %vm225, %v5292, 0
      %v5398 = vsel %vm225, %v5293, 0
      %v5401 = vsel %vm225, %v5294, 0
      %v5404 = vsel %vm225, %v5295, 0
      %v5407 = vsel %vm225, %v5296, 0
      %v5410 = vsel %vm225, %v5297, 0
      %v5413 = vsel %vm225, %v5298, 0
      %v5416 = vsel %vm225, %v5299, 0
      %v5419 = vsel %vm225, %v5300, 0
      %v5422 = vsel %vm225, %v5301, 0
      %v5425 = vsel %vm225, %v5302, 0
      %v5428 = vsel %vm225, %v5303, 0
      %v5431 = vsel %vm225, %v5304, 0
      %v5434 = vsel %vm225, %v5305, 0
      %v5437 = vsel %vm225, %v5306, 0
      %v5440 = vsel %vm225, %v5307, 0
      %v5443 = vsel %vm225, %v5308, 0
      %v5446 = vsel %vm225, %v5309, 0
      %v5449 = vsel %vm225, %v5310, 0
      %v5452 = vsel %vm225, %v5311, 0
      %v5455 = vsel %vm225, %v5312, 0
      %v5458 = vsel %vm225, %v5313, 0
      %v5461 = vsel %vm2411, %v5315, 0
      %5463 = vmatpush.msra.mxu0 0.0
      %5464 = vmatpush.msra.mxu0 0.0
      %5465 = vmatpush.msra.mxu0 0.0
      %5466 = vmatpush.msra.mxu0 0.0
      %5467 = vmatpush.msra.mxu0 0.0
      %5468 = vmatpush.msra.mxu0 0.0
      %5469 = vmatpush.msra.mxu0 0.0
      %5470 = vmatpush.msra.mxu0 0.0
      %5471 = vmatpush.msra.mxu0 0.0
      %5472 = vmatpush.msra.mxu0 0.0
      %5473 = vmatpush.msra.mxu0 0.0
      %5474 = vmatpush.msra.mxu0 0.0
      %5475 = vmatpush.msra.mxu0 0.0
      %5476 = vmatpush.msra.mxu0 0.0
      %5477 = vmatpush.msra.mxu0 0.0
      %5478 = vmatpush.msra.mxu0 %v5461
      %5479 = vmatmul.f32.gmra.mxu0 %v5317
      %v5480 = vpop.f32.mrf.mxu0
      %v5481 = vadd.f32 0.0, %v5480
      %5482 = vmatmul.f32.gmra.mxu0 %v5320
      %v5483 = vpop.f32.mrf.mxu0
      %v5484 = vadd.f32 0.0, %v5483
      %5485 = vmatmul.f32.gmra.mxu0 %v5323
      %v5486 = vpop.f32.mrf.mxu0
      %5487 = vmatmul.f32.gmra.mxu0 %v5326
      %v5488 = vpop.f32.mrf.mxu0
      %v5489 = vadd.f32 0.0, %v5488
      %5490 = vmatmul.f32.gmra.mxu0 %v5329
      %v5491 = vpop.f32.mrf.mxu0
      %v5492 = vadd.f32 0.0, %v5491
      %5493 = vmatmul.f32.gmra.mxu0 %v5332
      %v5494 = vpop.f32.mrf.mxu0
      %5495 = vmatmul.f32.gmra.mxu0 %v5335
      %v5496 = vpop.f32.mrf.mxu0
      %v5497 = vadd.f32 0.0, %v5496
      %5498 = vmatmul.f32.gmra.mxu0 %v5338
      %v5499 = vpop.f32.mrf.mxu0
      %v5500 = vadd.f32 0.0, %v5499
      %5501 = vmatmul.f32.gmra.mxu0 %v5341
      %v5502 = vpop.f32.mrf.mxu0
      %5503 = vmatmul.f32.gmra.mxu0 %v5344
      %v5504 = vpop.f32.mrf.mxu0
      %v5505 = vadd.f32 0.0, %v5504
      %5506 = vmatmul.f32.gmra.mxu0 %v5347
      %v5507 = vpop.f32.mrf.mxu0
      %v5508 = vadd.f32 0.0, %v5507
      %5509 = vmatmul.f32.gmra.mxu0 %v5350
      %v5510 = vpop.f32.mrf.mxu0
      %5511 = vmatmul.f32.gmra.mxu0 %v5353
      %v5512 = vpop.f32.mrf.mxu0
      %v5513 = vadd.f32 0.0, %v5512
      %5514 = vmatmul.f32.gmra.mxu0 %v5356
      %v5515 = vpop.f32.mrf.mxu0
      %v5516 = vadd.f32 0.0, %v5515
      %5517 = vmatmul.f32.gmra.mxu0 %v5359
      %v5518 = vpop.f32.mrf.mxu0
      %5519 = vmatmul.f32.gmra.mxu0 %v5362
      %v5520 = vpop.f32.mrf.mxu0
      %v5521 = vadd.f32 0.0, %v5520
      %5522 = vmatmul.f32.gmra.mxu0 %v5365
      %v5523 = vpop.f32.mrf.mxu0
      %v5524 = vadd.f32 0.0, %v5523
      %5525 = vmatmul.f32.gmra.mxu0 %v5368
      %v5526 = vpop.f32.mrf.mxu0
      %5527 = vmatmul.f32.gmra.mxu0 %v5371
      %v5528 = vpop.f32.mrf.mxu0
      %v5529 = vadd.f32 0.0, %v5528
      %5530 = vmatmul.f32.gmra.mxu0 %v5374
      %v5531 = vpop.f32.mrf.mxu0
      %v5532 = vadd.f32 0.0, %v5531
      %5533 = vmatmul.f32.gmra.mxu0 %v5377
      %v5534 = vpop.f32.mrf.mxu0
      %5535 = vmatmul.f32.gmra.mxu0 %v5380
      %v5536 = vpop.f32.mrf.mxu0
      %v5537 = vadd.f32 0.0, %v5536
      %5538 = vmatmul.f32.gmra.mxu0 %v5383
      %v5539 = vpop.f32.mrf.mxu0
      %v5540 = vadd.f32 0.0, %v5539
      %5541 = vmatmul.f32.gmra.mxu0 %v5386
      %v5542 = vpop.f32.mrf.mxu0
      %5543 = vmatmul.f32.gmra.mxu0 %v5389
      %v5544 = vpop.f32.mrf.mxu0
      %v5545 = vadd.f32 0.0, %v5544
      %5546 = vmatmul.f32.gmra.mxu0 %v5392
      %v5547 = vpop.f32.mrf.mxu0
      %v5548 = vadd.f32 0.0, %v5547
      %5549 = vmatmul.f32.gmra.mxu0 %v5395
      %v5550 = vpop.f32.mrf.mxu0
      %5551 = vmatmul.f32.gmra.mxu0 %v5398
      %v5552 = vpop.f32.mrf.mxu0
      %v5553 = vadd.f32 0.0, %v5552
      %5554 = vmatmul.f32.gmra.mxu0 %v5401
      %v5555 = vpop.f32.mrf.mxu0
      %v5556 = vadd.f32 0.0, %v5555
      %5557 = vmatmul.f32.gmra.mxu0 %v5404
      %v5558 = vpop.f32.mrf.mxu0
      %5559 = vmatmul.f32.gmra.mxu0 %v5407
      %v5560 = vpop.f32.mrf.mxu0
      %v5561 = vadd.f32 0.0, %v5560
      %5562 = vmatmul.f32.gmra.mxu0 %v5410
      %v5563 = vpop.f32.mrf.mxu0
      %v5564 = vadd.f32 0.0, %v5563
      %5565 = vmatmul.f32.gmra.mxu0 %v5413
      %v5566 = vpop.f32.mrf.mxu0
      %5567 = vmatmul.f32.gmra.mxu0 %v5416
      %v5568 = vpop.f32.mrf.mxu0
      %v5569 = vadd.f32 0.0, %v5568
      %5570 = vmatmul.f32.gmra.mxu0 %v5419
      %v5571 = vpop.f32.mrf.mxu0
      %v5572 = vadd.f32 0.0, %v5571
      %5573 = vmatmul.f32.gmra.mxu0 %v5422
      %v5574 = vpop.f32.mrf.mxu0
      %5575 = vmatmul.f32.gmra.mxu0 %v5425
      %v5576 = vpop.f32.mrf.mxu0
      %v5577 = vadd.f32 0.0, %v5576
      %5578 = vmatmul.f32.gmra.mxu0 %v5428
      %v5579 = vpop.f32.mrf.mxu0
      %v5580 = vadd.f32 0.0, %v5579
      %5581 = vmatmul.f32.gmra.mxu0 %v5431
      %v5582 = vpop.f32.mrf.mxu0
      %5583 = vmatmul.f32.gmra.mxu0 %v5434
      %v5584 = vpop.f32.mrf.mxu0
      %v5585 = vadd.f32 0.0, %v5584
      %5586 = vmatmul.f32.gmra.mxu0 %v5437
      %v5587 = vpop.f32.mrf.mxu0
      %v5588 = vadd.f32 0.0, %v5587
      %5589 = vmatmul.f32.gmra.mxu0 %v5440
      %v5590 = vpop.f32.mrf.mxu0
      %5591 = vmatmul.f32.gmra.mxu0 %v5443
      %v5592 = vpop.f32.mrf.mxu0
      %v5593 = vadd.f32 0.0, %v5592
      %5594 = vmatmul.f32.gmra.mxu0 %v5446
      %v5595 = vpop.f32.mrf.mxu0
      %v5596 = vadd.f32 0.0, %v5595
      %5597 = vmatmul.f32.gmra.mxu0 %v5449
      %v5598 = vpop.f32.mrf.mxu0
      %5599 = vmatmul.f32.gmra.mxu0 %v5452
      %v5600 = vpop.f32.mrf.mxu0
      %v5601 = vadd.f32 0.0, %v5600
      %5602 = vmatmul.f32.gmra.mxu0 %v5455
      %v5603 = vpop.f32.mrf.mxu0
      %v5604 = vadd.f32 0.0, %v5603
      %5605 = vmatmul.f32.gmra.mxu0 %v5458
      %v5606 = vpop.f32.mrf.mxu0
      %5607 = vdwg.mxu0
      %v5608 = vadd.f32 %v4214, %v5481
      %v5609 = vadd.f32 %v4215, %v5484
      %v5610 = vadd.f32 %v4216, %v5489
      %v5611 = vadd.f32 %v4217, %v5492
      %v5612 = vadd.f32 %v4218, %v5497
      %v5613 = vadd.f32 %v4219, %v5500
      %v5614 = vadd.f32 %v4220, %v5505
      %v5615 = vadd.f32 %v4221, %v5508
      %v5616 = vadd.f32 %v4222, %v5513
      %v5617 = vadd.f32 %v4223, %v5516
      %v5618 = vadd.f32 %v4224, %v5521
      %v5619 = vadd.f32 %v4225, %v5524
      %v5620 = vadd.f32 %v4226, %v5529
      %v5621 = vadd.f32 %v4227, %v5532
      %v5622 = vadd.f32 %v4228, %v5537
      %v5623 = vadd.f32 %v4229, %v5540
      %v5624 = vadd.f32 %v4230, %v5545
      %v5625 = vadd.f32 %v4231, %v5548
      %v5626 = vadd.f32 %v4232, %v5553
      %v5627 = vadd.f32 %v4233, %v5556
      %v5628 = vadd.f32 %v4234, %v5561
      %v5629 = vadd.f32 %v4235, %v5564
      %v5630 = vadd.f32 %v4236, %v5569
      %v5631 = vadd.f32 %v4237, %v5572
      %v5632 = vadd.f32 %v4238, %v5577
      %v5633 = vadd.f32 %v4239, %v5580
      %v5634 = vadd.f32 %v4240, %v5585
      %v5635 = vadd.f32 %v4241, %v5588
      %v5636 = vadd.f32 %v4242, %v5593
      %v5637 = vadd.f32 %v4243, %v5596
      %v5638 = vadd.f32 %v4244, %v5601
      %v5639 = vadd.f32 %v4245, %v5604
      %v5640 = vld [vmem:[%s4] sm:$0x1]
      %v5642 = vperm.slane %v5640, 0
      %v5644 = vadd.f32 %v5608, %v5642
      %v5645 = vadd.f32 %v5609, %v5642
      %v5646 = vadd.f32 %v5610, %v5642
      %v5647 = vadd.f32 %v5611, %v5642
      %v5648 = vadd.f32 %v5612, %v5642
      %v5649 = vadd.f32 %v5613, %v5642
      %v5650 = vadd.f32 %v5614, %v5642
      %v5651 = vadd.f32 %v5615, %v5642
      %v5652 = vadd.f32 %v5616, %v5642
      %v5653 = vadd.f32 %v5617, %v5642
      %v5654 = vadd.f32 %v5618, %v5642
      %v5655 = vadd.f32 %v5619, %v5642
      %v5656 = vadd.f32 %v5620, %v5642
      %v5657 = vadd.f32 %v5621, %v5642
      %v5658 = vadd.f32 %v5622, %v5642
      %v5659 = vadd.f32 %v5623, %v5642
      %v5660 = vadd.f32 %v5624, %v5642
      %v5661 = vadd.f32 %v5625, %v5642
      %v5662 = vadd.f32 %v5626, %v5642
      %v5663 = vadd.f32 %v5627, %v5642
      %v5664 = vadd.f32 %v5628, %v5642
      %v5665 = vadd.f32 %v5629, %v5642
      %v5666 = vadd.f32 %v5630, %v5642
      %v5667 = vadd.f32 %v5631, %v5642
      %v5668 = vadd.f32 %v5632, %v5642
      %v5669 = vadd.f32 %v5633, %v5642
      %v5670 = vadd.f32 %v5634, %v5642
      %v5671 = vadd.f32 %v5635, %v5642
      %v5672 = vadd.f32 %v5636, %v5642
      %v5673 = vadd.f32 %v5637, %v5642
      %v5674 = vadd.f32 %v5638, %v5642
      %v5675 = vadd.f32 %v5639, %v5642
      %v5676 = vxor.u32 %v5644, 2147483648
      %v5677 = vxor.u32 %v5645, 2147483648
      %v5678 = vxor.u32 %v5646, 2147483648
      %v5679 = vxor.u32 %v5647, 2147483648
      %v5680 = vxor.u32 %v5648, 2147483648
      %v5681 = vxor.u32 %v5649, 2147483648
      %v5682 = vxor.u32 %v5650, 2147483648
      %v5683 = vxor.u32 %v5651, 2147483648
      %v5684 = vxor.u32 %v5652, 2147483648
      %v5685 = vxor.u32 %v5653, 2147483648
      %v5686 = vxor.u32 %v5654, 2147483648
      %v5687 = vxor.u32 %v5655, 2147483648
      %v5688 = vxor.u32 %v5656, 2147483648
      %v5689 = vxor.u32 %v5657, 2147483648
      %v5690 = vxor.u32 %v5658, 2147483648
      %v5691 = vxor.u32 %v5659, 2147483648
      %v5692 = vxor.u32 %v5660, 2147483648
      %v5693 = vxor.u32 %v5661, 2147483648
      %v5694 = vxor.u32 %v5662, 2147483648
      %v5695 = vxor.u32 %v5663, 2147483648
      %v5696 = vxor.u32 %v5664, 2147483648
      %v5697 = vxor.u32 %v5665, 2147483648
      %v5698 = vxor.u32 %v5666, 2147483648
      %v5699 = vxor.u32 %v5667, 2147483648
      %v5700 = vxor.u32 %v5668, 2147483648
      %v5701 = vxor.u32 %v5669, 2147483648
      %v5702 = vxor.u32 %v5670, 2147483648
      %v5703 = vxor.u32 %v5671, 2147483648
      %v5704 = vxor.u32 %v5672, 2147483648
      %v5705 = vxor.u32 %v5673, 2147483648
      %v5706 = vxor.u32 %v5674, 2147483648
      %v5707 = vxor.u32 %v5675, 2147483648
      %v5708 = vmul.f32 %v5676, 1.442695
      %v5709 = vpow.pop %v5708
      %v5710 = vmul.f32 %v5677, 1.442695
      %v5711 = vpow.pop %v5710
      %v5712 = vmul.f32 %v5678, 1.442695
      %v5713 = vpow.pop %v5712
      %v5714 = vmul.f32 %v5679, 1.442695
      %v5715 = vpow.pop %v5714
      %v5716 = vmul.f32 %v5680, 1.442695
      %v5717 = vpow.pop %v5716
      %v5718 = vmul.f32 %v5681, 1.442695
      %v5719 = vpow.pop %v5718
      %v5720 = vmul.f32 %v5682, 1.442695
      %v5721 = vpow.pop %v5720
      %v5722 = vmul.f32 %v5683, 1.442695
      %v5723 = vpow.pop %v5722
      %v5724 = vmul.f32 %v5684, 1.442695
      %v5725 = vpow.pop %v5724
      %v5726 = vmul.f32 %v5685, 1.442695
      %v5727 = vpow.pop %v5726
      %v5728 = vmul.f32 %v5686, 1.442695
      %v5729 = vpow.pop %v5728
      %v5730 = vmul.f32 %v5687, 1.442695
      %v5731 = vpow.pop %v5730
      %v5732 = vmul.f32 %v5688, 1.442695
      %v5733 = vpow.pop %v5732
      %v5734 = vmul.f32 %v5689, 1.442695
      %v5735 = vpow.pop %v5734
      %v5736 = vmul.f32 %v5690, 1.442695
      %v5737 = vpow.pop %v5736
      %v5738 = vmul.f32 %v5691, 1.442695
      %v5739 = vpow.pop %v5738
      %v5740 = vmul.f32 %v5692, 1.442695
      %v5741 = vpow.pop %v5740
      %v5742 = vmul.f32 %v5693, 1.442695
      %v5743 = vpow.pop %v5742
      %v5744 = vmul.f32 %v5694, 1.442695
      %v5745 = vpow.pop %v5744
      %v5746 = vmul.f32 %v5695, 1.442695
      %v5747 = vpow.pop %v5746
      %v5748 = vmul.f32 %v5696, 1.442695
      %v5749 = vpow.pop %v5748
      %v5750 = vmul.f32 %v5697, 1.442695
      %v5751 = vpow.pop %v5750
      %v5752 = vmul.f32 %v5698, 1.442695
      %v5753 = vpow.pop %v5752
      %v5754 = vmul.f32 %v5699, 1.442695
      %v5755 = vpow.pop %v5754
      %v5756 = vmul.f32 %v5700, 1.442695
      %v5757 = vpow.pop %v5756
      %v5758 = vmul.f32 %v5701, 1.442695
      %v5759 = vpow.pop %v5758
      %v5760 = vmul.f32 %v5702, 1.442695
      %v5761 = vpow.pop %v5760
      %v5762 = vmul.f32 %v5703, 1.442695
      %v5763 = vpow.pop %v5762
      %v5764 = vmul.f32 %v5704, 1.442695
      %v5765 = vpow.pop %v5764
      %v5766 = vmul.f32 %v5705, 1.442695
      %v5767 = vpow.pop %v5766
      %v5768 = vmul.f32 %v5706, 1.442695
      %v5769 = vpow.pop %v5768
      %v5770 = vmul.f32 %v5707, 1.442695
      %v5771 = vpow.pop %v5770
      %v5772 = vadd.f32 %v5709, 1.0
      %v5773 = vadd.f32 %v5711, 1.0
      %v5774 = vadd.f32 %v5713, 1.0
      %v5775 = vadd.f32 %v5715, 1.0
      %v5776 = vadd.f32 %v5717, 1.0
      %v5777 = vadd.f32 %v5719, 1.0
      %v5778 = vadd.f32 %v5721, 1.0
      %v5779 = vadd.f32 %v5723, 1.0
      %v5780 = vadd.f32 %v5725, 1.0
      %v5781 = vadd.f32 %v5727, 1.0
      %v5782 = vadd.f32 %v5729, 1.0
      %v5783 = vadd.f32 %v5731, 1.0
      %v5784 = vadd.f32 %v5733, 1.0
      %v5785 = vadd.f32 %v5735, 1.0
      %v5786 = vadd.f32 %v5737, 1.0
      %v5787 = vadd.f32 %v5739, 1.0
      %v5788 = vadd.f32 %v5741, 1.0
      %v5789 = vadd.f32 %v5743, 1.0
      %v5790 = vadd.f32 %v5745, 1.0
      %v5791 = vadd.f32 %v5747, 1.0
      %v5792 = vadd.f32 %v5749, 1.0
      %v5793 = vadd.f32 %v5751, 1.0
      %v5794 = vadd.f32 %v5753, 1.0
      %v5795 = vadd.f32 %v5755, 1.0
      %v5796 = vadd.f32 %v5757, 1.0
      %v5797 = vadd.f32 %v5759, 1.0
      %v5798 = vadd.f32 %v5761, 1.0
      %v5799 = vadd.f32 %v5763, 1.0
      %v5800 = vadd.f32 %v5765, 1.0
      %v5801 = vadd.f32 %v5767, 1.0
      %v5802 = vadd.f32 %v5769, 1.0
      %v5803 = vadd.f32 %v5771, 1.0
      %v5804 = vrcp.pop %v5772
      %v5805 = vmul.f32 %v5772, %v5804
      %v5806 = vsub.f32 1.0, %v5805
      %v5807 = vmul.f32 %v5804, %v5806
      %v5808 = vadd.f32 %v5804, %v5807
      %vm5809 = vweird.f32 %v5772
      %vm5810 = vweird.f32 %v5804
      %vm5811 = vmor %vm5809, %vm5810
      %v5812 = vsel %vm5811, %v5804, %v5808
      %v5813 = vand.u32 2147483647, %v5772
      %vm5814 = vcmp.eq.f32.partialorder %v5813, 8.507059e+37
      %v5815 = vand.u32 %v5772, 2147483648
      %v5816 = vor.u32 1.1754944e-38, %v5815
      %v5817 = vsel %vm5814, %v5816, %v5812
      %v5818 = vmul.f32 1.0, %v5817
      %v5819 = vrcp.pop %v5773
      %v5820 = vmul.f32 %v5773, %v5819
      %v5821 = vsub.f32 1.0, %v5820
      %v5822 = vmul.f32 %v5819, %v5821
      %v5823 = vadd.f32 %v5819, %v5822
      %vm5824 = vweird.f32 %v5773
      %vm5825 = vweird.f32 %v5819
      %vm5826 = vmor %vm5824, %vm5825
      %v5827 = vsel %vm5826, %v5819, %v5823
      %v5828 = vand.u32 2147483647, %v5773
      %vm5829 = vcmp.eq.f32.partialorder %v5828, 8.507059e+37
      %v5830 = vand.u32 %v5773, 2147483648
      %v5831 = vor.u32 1.1754944e-38, %v5830
      %v5832 = vsel %vm5829, %v5831, %v5827
      %v5833 = vmul.f32 1.0, %v5832
      %v5834 = vrcp.pop %v5774
      %v5835 = vmul.f32 %v5774, %v5834
      %v5836 = vsub.f32 1.0, %v5835
      %v5837 = vmul.f32 %v5834, %v5836
      %v5838 = vadd.f32 %v5834, %v5837
      %vm5839 = vweird.f32 %v5774
      %vm5840 = vweird.f32 %v5834
      %vm5841 = vmor %vm5839, %vm5840
      %v5842 = vsel %vm5841, %v5834, %v5838
      %v5843 = vand.u32 2147483647, %v5774
      %vm5844 = vcmp.eq.f32.partialorder %v5843, 8.507059e+37
      %v5845 = vand.u32 %v5774, 2147483648
      %v5846 = vor.u32 1.1754944e-38, %v5845
      %v5847 = vsel %vm5844, %v5846, %v5842
      %v5848 = vmul.f32 1.0, %v5847
      %v5849 = vrcp.pop %v5775
      %v5850 = vmul.f32 %v5775, %v5849
      %v5851 = vsub.f32 1.0, %v5850
      %v5852 = vmul.f32 %v5849, %v5851
      %v5853 = vadd.f32 %v5849, %v5852
      %vm5854 = vweird.f32 %v5775
      %vm5855 = vweird.f32 %v5849
      %vm5856 = vmor %vm5854, %vm5855
      %v5857 = vsel %vm5856, %v5849, %v5853
      %v5858 = vand.u32 2147483647, %v5775
      %vm5859 = vcmp.eq.f32.partialorder %v5858, 8.507059e+37
      %v5860 = vand.u32 %v5775, 2147483648
      %v5861 = vor.u32 1.1754944e-38, %v5860
      %v5862 = vsel %vm5859, %v5861, %v5857
      %v5863 = vmul.f32 1.0, %v5862
      %v5864 = vrcp.pop %v5776
      %v5865 = vmul.f32 %v5776, %v5864
      %v5866 = vsub.f32 1.0, %v5865
      %v5867 = vmul.f32 %v5864, %v5866
      %v5868 = vadd.f32 %v5864, %v5867
      %vm5869 = vweird.f32 %v5776
      %vm5870 = vweird.f32 %v5864
      %vm5871 = vmor %vm5869, %vm5870
      %v5872 = vsel %vm5871, %v5864, %v5868
      %v5873 = vand.u32 2147483647, %v5776
      %vm5874 = vcmp.eq.f32.partialorder %v5873, 8.507059e+37
      %v5875 = vand.u32 %v5776, 2147483648
      %v5876 = vor.u32 1.1754944e-38, %v5875
      %v5877 = vsel %vm5874, %v5876, %v5872
      %v5878 = vmul.f32 1.0, %v5877
      %v5879 = vrcp.pop %v5777
      %v5880 = vmul.f32 %v5777, %v5879
      %v5881 = vsub.f32 1.0, %v5880
      %v5882 = vmul.f32 %v5879, %v5881
      %v5883 = vadd.f32 %v5879, %v5882
      %vm5884 = vweird.f32 %v5777
      %vm5885 = vweird.f32 %v5879
      %vm5886 = vmor %vm5884, %vm5885
      %v5887 = vsel %vm5886, %v5879, %v5883
      %v5888 = vand.u32 2147483647, %v5777
      %vm5889 = vcmp.eq.f32.partialorder %v5888, 8.507059e+37
      %v5890 = vand.u32 %v5777, 2147483648
      %v5891 = vor.u32 1.1754944e-38, %v5890
      %v5892 = vsel %vm5889, %v5891, %v5887
      %v5893 = vmul.f32 1.0, %v5892
      %v5894 = vrcp.pop %v5778
      %v5895 = vmul.f32 %v5778, %v5894
      %v5896 = vsub.f32 1.0, %v5895
      %v5897 = vmul.f32 %v5894, %v5896
      %v5898 = vadd.f32 %v5894, %v5897
      %vm5899 = vweird.f32 %v5778
      %vm5900 = vweird.f32 %v5894
      %vm5901 = vmor %vm5899, %vm5900
      %v5902 = vsel %vm5901, %v5894, %v5898
      %v5903 = vand.u32 2147483647, %v5778
      %vm5904 = vcmp.eq.f32.partialorder %v5903, 8.507059e+37
      %v5905 = vand.u32 %v5778, 2147483648
      %v5906 = vor.u32 1.1754944e-38, %v5905
      %v5907 = vsel %vm5904, %v5906, %v5902
      %v5908 = vmul.f32 1.0, %v5907
      %v5909 = vrcp.pop %v5779
      %v5910 = vmul.f32 %v5779, %v5909
      %v5911 = vsub.f32 1.0, %v5910
      %v5912 = vmul.f32 %v5909, %v5911
      %v5913 = vadd.f32 %v5909, %v5912
      %vm5914 = vweird.f32 %v5779
      %vm5915 = vweird.f32 %v5909
      %vm5916 = vmor %vm5914, %vm5915
      %v5917 = vsel %vm5916, %v5909, %v5913
      %v5918 = vand.u32 2147483647, %v5779
      %vm5919 = vcmp.eq.f32.partialorder %v5918, 8.507059e+37
      %v5920 = vand.u32 %v5779, 2147483648
      %v5921 = vor.u32 1.1754944e-38, %v5920
      %v5922 = vsel %vm5919, %v5921, %v5917
      %v5923 = vmul.f32 1.0, %v5922
      %v5924 = vrcp.pop %v5780
      %v5925 = vmul.f32 %v5780, %v5924
      %v5926 = vsub.f32 1.0, %v5925
      %v5927 = vmul.f32 %v5924, %v5926
      %v5928 = vadd.f32 %v5924, %v5927
      %vm5929 = vweird.f32 %v5780
      %vm5930 = vweird.f32 %v5924
      %vm5931 = vmor %vm5929, %vm5930
      %v5932 = vsel %vm5931, %v5924, %v5928
      %v5933 = vand.u32 2147483647, %v5780
      %vm5934 = vcmp.eq.f32.partialorder %v5933, 8.507059e+37
      %v5935 = vand.u32 %v5780, 2147483648
      %v5936 = vor.u32 1.1754944e-38, %v5935
      %v5937 = vsel %vm5934, %v5936, %v5932
      %v5938 = vmul.f32 1.0, %v5937
      %v5939 = vrcp.pop %v5781
      %v5940 = vmul.f32 %v5781, %v5939
      %v5941 = vsub.f32 1.0, %v5940
      %v5942 = vmul.f32 %v5939, %v5941
      %v5943 = vadd.f32 %v5939, %v5942
      %vm5944 = vweird.f32 %v5781
      %vm5945 = vweird.f32 %v5939
      %vm5946 = vmor %vm5944, %vm5945
      %v5947 = vsel %vm5946, %v5939, %v5943
      %v5948 = vand.u32 2147483647, %v5781
      %vm5949 = vcmp.eq.f32.partialorder %v5948, 8.507059e+37
      %v5950 = vand.u32 %v5781, 2147483648
      %v5951 = vor.u32 1.1754944e-38, %v5950
      %v5952 = vsel %vm5949, %v5951, %v5947
      %v5953 = vmul.f32 1.0, %v5952
      %v5954 = vrcp.pop %v5782
      %v5955 = vmul.f32 %v5782, %v5954
      %v5956 = vsub.f32 1.0, %v5955
      %v5957 = vmul.f32 %v5954, %v5956
      %v5958 = vadd.f32 %v5954, %v5957
      %vm5959 = vweird.f32 %v5782
      %vm5960 = vweird.f32 %v5954
      %vm5961 = vmor %vm5959, %vm5960
      %v5962 = vsel %vm5961, %v5954, %v5958
      %v5963 = vand.u32 2147483647, %v5782
      %vm5964 = vcmp.eq.f32.partialorder %v5963, 8.507059e+37
      %v5965 = vand.u32 %v5782, 2147483648
      %v5966 = vor.u32 1.1754944e-38, %v5965
      %v5967 = vsel %vm5964, %v5966, %v5962
      %v5968 = vmul.f32 1.0, %v5967
      %v5969 = vrcp.pop %v5783
      %v5970 = vmul.f32 %v5783, %v5969
      %v5971 = vsub.f32 1.0, %v5970
      %v5972 = vmul.f32 %v5969, %v5971
      %v5973 = vadd.f32 %v5969, %v5972
      %vm5974 = vweird.f32 %v5783
      %vm5975 = vweird.f32 %v5969
      %vm5976 = vmor %vm5974, %vm5975
      %v5977 = vsel %vm5976, %v5969, %v5973
      %v5978 = vand.u32 2147483647, %v5783
      %vm5979 = vcmp.eq.f32.partialorder %v5978, 8.507059e+37
      %v5980 = vand.u32 %v5783, 2147483648
      %v5981 = vor.u32 1.1754944e-38, %v5980
      %v5982 = vsel %vm5979, %v5981, %v5977
      %v5983 = vmul.f32 1.0, %v5982
      %v5984 = vrcp.pop %v5784
      %v5985 = vmul.f32 %v5784, %v5984
      %v5986 = vsub.f32 1.0, %v5985
      %v5987 = vmul.f32 %v5984, %v5986
      %v5988 = vadd.f32 %v5984, %v5987
      %vm5989 = vweird.f32 %v5784
      %vm5990 = vweird.f32 %v5984
      %vm5991 = vmor %vm5989, %vm5990
      %v5992 = vsel %vm5991, %v5984, %v5988
      %v5993 = vand.u32 2147483647, %v5784
      %vm5994 = vcmp.eq.f32.partialorder %v5993, 8.507059e+37
      %v5995 = vand.u32 %v5784, 2147483648
      %v5996 = vor.u32 1.1754944e-38, %v5995
      %v5997 = vsel %vm5994, %v5996, %v5992
      %v5998 = vmul.f32 1.0, %v5997
      %v5999 = vrcp.pop %v5785
      %v6000 = vmul.f32 %v5785, %v5999
      %v6001 = vsub.f32 1.0, %v6000
      %v6002 = vmul.f32 %v5999, %v6001
      %v6003 = vadd.f32 %v5999, %v6002
      %vm6004 = vweird.f32 %v5785
      %vm6005 = vweird.f32 %v5999
      %vm6006 = vmor %vm6004, %vm6005
      %v6007 = vsel %vm6006, %v5999, %v6003
      %v6008 = vand.u32 2147483647, %v5785
      %vm6009 = vcmp.eq.f32.partialorder %v6008, 8.507059e+37
      %v6010 = vand.u32 %v5785, 2147483648
      %v6011 = vor.u32 1.1754944e-38, %v6010
      %v6012 = vsel %vm6009, %v6011, %v6007
      %v6013 = vmul.f32 1.0, %v6012
      %v6014 = vrcp.pop %v5786
      %v6015 = vmul.f32 %v5786, %v6014
      %v6016 = vsub.f32 1.0, %v6015
      %v6017 = vmul.f32 %v6014, %v6016
      %v6018 = vadd.f32 %v6014, %v6017
      %vm6019 = vweird.f32 %v5786
      %vm6020 = vweird.f32 %v6014
      %vm6021 = vmor %vm6019, %vm6020
      %v6022 = vsel %vm6021, %v6014, %v6018
      %v6023 = vand.u32 2147483647, %v5786
      %vm6024 = vcmp.eq.f32.partialorder %v6023, 8.507059e+37
      %v6025 = vand.u32 %v5786, 2147483648
      %v6026 = vor.u32 1.1754944e-38, %v6025
      %v6027 = vsel %vm6024, %v6026, %v6022
      %v6028 = vmul.f32 1.0, %v6027
      %v6029 = vrcp.pop %v5787
      %v6030 = vmul.f32 %v5787, %v6029
      %v6031 = vsub.f32 1.0, %v6030
      %v6032 = vmul.f32 %v6029, %v6031
      %v6033 = vadd.f32 %v6029, %v6032
      %vm6034 = vweird.f32 %v5787
      %vm6035 = vweird.f32 %v6029
      %vm6036 = vmor %vm6034, %vm6035
      %v6037 = vsel %vm6036, %v6029, %v6033
      %v6038 = vand.u32 2147483647, %v5787
      %vm6039 = vcmp.eq.f32.partialorder %v6038, 8.507059e+37
      %v6040 = vand.u32 %v5787, 2147483648
      %v6041 = vor.u32 1.1754944e-38, %v6040
      %v6042 = vsel %vm6039, %v6041, %v6037
      %v6043 = vmul.f32 1.0, %v6042
      %v6044 = vrcp.pop %v5788
      %v6045 = vmul.f32 %v5788, %v6044
      %v6046 = vsub.f32 1.0, %v6045
      %v6047 = vmul.f32 %v6044, %v6046
      %v6048 = vadd.f32 %v6044, %v6047
      %vm6049 = vweird.f32 %v5788
      %vm6050 = vweird.f32 %v6044
      %vm6051 = vmor %vm6049, %vm6050
      %v6052 = vsel %vm6051, %v6044, %v6048
      %v6053 = vand.u32 2147483647, %v5788
      %vm6054 = vcmp.eq.f32.partialorder %v6053, 8.507059e+37
      %v6055 = vand.u32 %v5788, 2147483648
      %v6056 = vor.u32 1.1754944e-38, %v6055
      %v6057 = vsel %vm6054, %v6056, %v6052
      %v6058 = vmul.f32 1.0, %v6057
      %v6059 = vrcp.pop %v5789
      %v6060 = vmul.f32 %v5789, %v6059
      %v6061 = vsub.f32 1.0, %v6060
      %v6062 = vmul.f32 %v6059, %v6061
      %v6063 = vadd.f32 %v6059, %v6062
      %vm6064 = vweird.f32 %v5789
      %vm6065 = vweird.f32 %v6059
      %vm6066 = vmor %vm6064, %vm6065
      %v6067 = vsel %vm6066, %v6059, %v6063
      %v6068 = vand.u32 2147483647, %v5789
      %vm6069 = vcmp.eq.f32.partialorder %v6068, 8.507059e+37
      %v6070 = vand.u32 %v5789, 2147483648
      %v6071 = vor.u32 1.1754944e-38, %v6070
      %v6072 = vsel %vm6069, %v6071, %v6067
      %v6073 = vmul.f32 1.0, %v6072
      %v6074 = vrcp.pop %v5790
      %v6075 = vmul.f32 %v5790, %v6074
      %v6076 = vsub.f32 1.0, %v6075
      %v6077 = vmul.f32 %v6074, %v6076
      %v6078 = vadd.f32 %v6074, %v6077
      %vm6079 = vweird.f32 %v5790
      %vm6080 = vweird.f32 %v6074
      %vm6081 = vmor %vm6079, %vm6080
      %v6082 = vsel %vm6081, %v6074, %v6078
      %v6083 = vand.u32 2147483647, %v5790
      %vm6084 = vcmp.eq.f32.partialorder %v6083, 8.507059e+37
      %v6085 = vand.u32 %v5790, 2147483648
      %v6086 = vor.u32 1.1754944e-38, %v6085
      %v6087 = vsel %vm6084, %v6086, %v6082
      %v6088 = vmul.f32 1.0, %v6087
      %v6089 = vrcp.pop %v5791
      %v6090 = vmul.f32 %v5791, %v6089
      %v6091 = vsub.f32 1.0, %v6090
      %v6092 = vmul.f32 %v6089, %v6091
      %v6093 = vadd.f32 %v6089, %v6092
      %vm6094 = vweird.f32 %v5791
      %vm6095 = vweird.f32 %v6089
      %vm6096 = vmor %vm6094, %vm6095
      %v6097 = vsel %vm6096, %v6089, %v6093
      %v6098 = vand.u32 2147483647, %v5791
      %vm6099 = vcmp.eq.f32.partialorder %v6098, 8.507059e+37
      %v6100 = vand.u32 %v5791, 2147483648
      %v6101 = vor.u32 1.1754944e-38, %v6100
      %v6102 = vsel %vm6099, %v6101, %v6097
      %v6103 = vmul.f32 1.0, %v6102
      %v6104 = vrcp.pop %v5792
      %v6105 = vmul.f32 %v5792, %v6104
      %v6106 = vsub.f32 1.0, %v6105
      %v6107 = vmul.f32 %v6104, %v6106
      %v6108 = vadd.f32 %v6104, %v6107
      %vm6109 = vweird.f32 %v5792
      %vm6110 = vweird.f32 %v6104
      %vm6111 = vmor %vm6109, %vm6110
      %v6112 = vsel %vm6111, %v6104, %v6108
      %v6113 = vand.u32 2147483647, %v5792
      %vm6114 = vcmp.eq.f32.partialorder %v6113, 8.507059e+37
      %v6115 = vand.u32 %v5792, 2147483648
      %v6116 = vor.u32 1.1754944e-38, %v6115
      %v6117 = vsel %vm6114, %v6116, %v6112
      %v6118 = vmul.f32 1.0, %v6117
      %v6119 = vrcp.pop %v5793
      %v6120 = vmul.f32 %v5793, %v6119
      %v6121 = vsub.f32 1.0, %v6120
      %v6122 = vmul.f32 %v6119, %v6121
      %v6123 = vadd.f32 %v6119, %v6122
      %vm6124 = vweird.f32 %v5793
      %vm6125 = vweird.f32 %v6119
      %vm6126 = vmor %vm6124, %vm6125
      %v6127 = vsel %vm6126, %v6119, %v6123
      %v6128 = vand.u32 2147483647, %v5793
      %vm6129 = vcmp.eq.f32.partialorder %v6128, 8.507059e+37
      %v6130 = vand.u32 %v5793, 2147483648
      %v6131 = vor.u32 1.1754944e-38, %v6130
      %v6132 = vsel %vm6129, %v6131, %v6127
      %v6133 = vmul.f32 1.0, %v6132
      %v6134 = vrcp.pop %v5794
      %v6135 = vmul.f32 %v5794, %v6134
      %v6136 = vsub.f32 1.0, %v6135
      %v6137 = vmul.f32 %v6134, %v6136
      %v6138 = vadd.f32 %v6134, %v6137
      %vm6139 = vweird.f32 %v5794
      %vm6140 = vweird.f32 %v6134
      %vm6141 = vmor %vm6139, %vm6140
      %v6142 = vsel %vm6141, %v6134, %v6138
      %v6143 = vand.u32 2147483647, %v5794
      %vm6144 = vcmp.eq.f32.partialorder %v6143, 8.507059e+37
      %v6145 = vand.u32 %v5794, 2147483648
      %v6146 = vor.u32 1.1754944e-38, %v6145
      %v6147 = vsel %vm6144, %v6146, %v6142
      %v6148 = vmul.f32 1.0, %v6147
      %v6149 = vrcp.pop %v5795
      %v6150 = vmul.f32 %v5795, %v6149
      %v6151 = vsub.f32 1.0, %v6150
      %v6152 = vmul.f32 %v6149, %v6151
      %v6153 = vadd.f32 %v6149, %v6152
      %vm6154 = vweird.f32 %v5795
      %vm6155 = vweird.f32 %v6149
      %vm6156 = vmor %vm6154, %vm6155
      %v6157 = vsel %vm6156, %v6149, %v6153
      %v6158 = vand.u32 2147483647, %v5795
      %vm6159 = vcmp.eq.f32.partialorder %v6158, 8.507059e+37
      %v6160 = vand.u32 %v5795, 2147483648
      %v6161 = vor.u32 1.1754944e-38, %v6160
      %v6162 = vsel %vm6159, %v6161, %v6157
      %v6163 = vmul.f32 1.0, %v6162
      %v6164 = vrcp.pop %v5796
      %v6165 = vmul.f32 %v5796, %v6164
      %v6166 = vsub.f32 1.0, %v6165
      %v6167 = vmul.f32 %v6164, %v6166
      %v6168 = vadd.f32 %v6164, %v6167
      %vm6169 = vweird.f32 %v5796
      %vm6170 = vweird.f32 %v6164
      %vm6171 = vmor %vm6169, %vm6170
      %v6172 = vsel %vm6171, %v6164, %v6168
      %v6173 = vand.u32 2147483647, %v5796
      %vm6174 = vcmp.eq.f32.partialorder %v6173, 8.507059e+37
      %v6175 = vand.u32 %v5796, 2147483648
      %v6176 = vor.u32 1.1754944e-38, %v6175
      %v6177 = vsel %vm6174, %v6176, %v6172
      %v6178 = vmul.f32 1.0, %v6177
      %v6179 = vrcp.pop %v5797
      %v6180 = vmul.f32 %v5797, %v6179
      %v6181 = vsub.f32 1.0, %v6180
      %v6182 = vmul.f32 %v6179, %v6181
      %v6183 = vadd.f32 %v6179, %v6182
      %vm6184 = vweird.f32 %v5797
      %vm6185 = vweird.f32 %v6179
      %vm6186 = vmor %vm6184, %vm6185
      %v6187 = vsel %vm6186, %v6179, %v6183
      %v6188 = vand.u32 2147483647, %v5797
      %vm6189 = vcmp.eq.f32.partialorder %v6188, 8.507059e+37
      %v6190 = vand.u32 %v5797, 2147483648
      %v6191 = vor.u32 1.1754944e-38, %v6190
      %v6192 = vsel %vm6189, %v6191, %v6187
      %v6193 = vmul.f32 1.0, %v6192
      %v6194 = vrcp.pop %v5798
      %v6195 = vmul.f32 %v5798, %v6194
      %v6196 = vsub.f32 1.0, %v6195
      %v6197 = vmul.f32 %v6194, %v6196
      %v6198 = vadd.f32 %v6194, %v6197
      %vm6199 = vweird.f32 %v5798
      %vm6200 = vweird.f32 %v6194
      %vm6201 = vmor %vm6199, %vm6200
      %v6202 = vsel %vm6201, %v6194, %v6198
      %v6203 = vand.u32 2147483647, %v5798
      %vm6204 = vcmp.eq.f32.partialorder %v6203, 8.507059e+37
      %v6205 = vand.u32 %v5798, 2147483648
      %v6206 = vor.u32 1.1754944e-38, %v6205
      %v6207 = vsel %vm6204, %v6206, %v6202
      %v6208 = vmul.f32 1.0, %v6207
      %v6209 = vrcp.pop %v5799
      %v6210 = vmul.f32 %v5799, %v6209
      %v6211 = vsub.f32 1.0, %v6210
      %v6212 = vmul.f32 %v6209, %v6211
      %v6213 = vadd.f32 %v6209, %v6212
      %vm6214 = vweird.f32 %v5799
      %vm6215 = vweird.f32 %v6209
      %vm6216 = vmor %vm6214, %vm6215
      %v6217 = vsel %vm6216, %v6209, %v6213
      %v6218 = vand.u32 2147483647, %v5799
      %vm6219 = vcmp.eq.f32.partialorder %v6218, 8.507059e+37
      %v6220 = vand.u32 %v5799, 2147483648
      %v6221 = vor.u32 1.1754944e-38, %v6220
      %v6222 = vsel %vm6219, %v6221, %v6217
      %v6223 = vmul.f32 1.0, %v6222
      %v6224 = vrcp.pop %v5800
      %v6225 = vmul.f32 %v5800, %v6224
      %v6226 = vsub.f32 1.0, %v6225
      %v6227 = vmul.f32 %v6224, %v6226
      %v6228 = vadd.f32 %v6224, %v6227
      %vm6229 = vweird.f32 %v5800
      %vm6230 = vweird.f32 %v6224
      %vm6231 = vmor %vm6229, %vm6230
      %v6232 = vsel %vm6231, %v6224, %v6228
      %v6233 = vand.u32 2147483647, %v5800
      %vm6234 = vcmp.eq.f32.partialorder %v6233, 8.507059e+37
      %v6235 = vand.u32 %v5800, 2147483648
      %v6236 = vor.u32 1.1754944e-38, %v6235
      %v6237 = vsel %vm6234, %v6236, %v6232
      %v6238 = vmul.f32 1.0, %v6237
      %v6239 = vrcp.pop %v5801
      %v6240 = vmul.f32 %v5801, %v6239
      %v6241 = vsub.f32 1.0, %v6240
      %v6242 = vmul.f32 %v6239, %v6241
      %v6243 = vadd.f32 %v6239, %v6242
      %vm6244 = vweird.f32 %v5801
      %vm6245 = vweird.f32 %v6239
      %vm6246 = vmor %vm6244, %vm6245
      %v6247 = vsel %vm6246, %v6239, %v6243
      %v6248 = vand.u32 2147483647, %v5801
      %vm6249 = vcmp.eq.f32.partialorder %v6248, 8.507059e+37
      %v6250 = vand.u32 %v5801, 2147483648
      %v6251 = vor.u32 1.1754944e-38, %v6250
      %v6252 = vsel %vm6249, %v6251, %v6247
      %v6253 = vmul.f32 1.0, %v6252
      %v6254 = vrcp.pop %v5802
      %v6255 = vmul.f32 %v5802, %v6254
      %v6256 = vsub.f32 1.0, %v6255
      %v6257 = vmul.f32 %v6254, %v6256
      %v6258 = vadd.f32 %v6254, %v6257
      %vm6259 = vweird.f32 %v5802
      %vm6260 = vweird.f32 %v6254
      %vm6261 = vmor %vm6259, %vm6260
      %v6262 = vsel %vm6261, %v6254, %v6258
      %v6263 = vand.u32 2147483647, %v5802
      %vm6264 = vcmp.eq.f32.partialorder %v6263, 8.507059e+37
      %v6265 = vand.u32 %v5802, 2147483648
      %v6266 = vor.u32 1.1754944e-38, %v6265
      %v6267 = vsel %vm6264, %v6266, %v6262
      %v6268 = vmul.f32 1.0, %v6267
      %v6269 = vrcp.pop %v5803
      %v6270 = vmul.f32 %v5803, %v6269
      %v6271 = vsub.f32 1.0, %v6270
      %v6272 = vmul.f32 %v6269, %v6271
      %v6273 = vadd.f32 %v6269, %v6272
      %vm6274 = vweird.f32 %v5803
      %vm6275 = vweird.f32 %v6269
      %vm6276 = vmor %vm6274, %vm6275
      %v6277 = vsel %vm6276, %v6269, %v6273
      %v6278 = vand.u32 2147483647, %v5803
      %vm6279 = vcmp.eq.f32.partialorder %v6278, 8.507059e+37
      %v6280 = vand.u32 %v5803, 2147483648
      %v6281 = vor.u32 1.1754944e-38, %v6280
      %v6282 = vsel %vm6279, %v6281, %v6277
      %v6283 = vmul.f32 1.0, %v6282
      %v6284 = vmul.f32 %v5644, %v5818
      %v6285 = vmul.f32 %v5645, %v5833
      %v6286 = vmul.f32 %v5646, %v5848
      %v6287 = vmul.f32 %v5647, %v5863
      %v6288 = vmul.f32 %v5648, %v5878
      %v6289 = vmul.f32 %v5649, %v5893
      %v6290 = vmul.f32 %v5650, %v5908
      %v6291 = vmul.f32 %v5651, %v5923
      %v6292 = vmul.f32 %v5652, %v5938
      %v6293 = vmul.f32 %v5653, %v5953
      %v6294 = vmul.f32 %v5654, %v5968
      %v6295 = vmul.f32 %v5655, %v5983
      %v6296 = vmul.f32 %v5656, %v5998
      %v6297 = vmul.f32 %v5657, %v6013
      %v6298 = vmul.f32 %v5658, %v6028
      %v6299 = vmul.f32 %v5659, %v6043
      %v6300 = vmul.f32 %v5660, %v6058
      %v6301 = vmul.f32 %v5661, %v6073
      %v6302 = vmul.f32 %v5662, %v6088
      %v6303 = vmul.f32 %v5663, %v6103
      %v6304 = vmul.f32 %v5664, %v6118
      %v6305 = vmul.f32 %v5665, %v6133
      %v6306 = vmul.f32 %v5666, %v6148
      %v6307 = vmul.f32 %v5667, %v6163
      %v6308 = vmul.f32 %v5668, %v6178
      %v6309 = vmul.f32 %v5669, %v6193
      %v6310 = vmul.f32 %v5670, %v6208
      %v6311 = vmul.f32 %v5671, %v6223
      %v6312 = vmul.f32 %v5672, %v6238
      %v6313 = vmul.f32 %v5673, %v6253
      %v6314 = vmul.f32 %v5674, %v6268
      %v6315 = vmul.f32 %v5675, %v6283
      %vm6316 = vcmask 64512
      %6317 = vst.msk [vmem:[%s224] sm:$0xff] %vm6316, %v6284
      %6318 = vst.msk [vmem:[%s224 + $0x8] sm:$0xff] %vm6316, %v6285
      %6319 = vst.msk [vmem:[%s224 + $0x10] sm:$0xff] %vm6316, %v6286
      %6320 = vst.msk [vmem:[%s224 + $0x18] sm:$0xff] %vm6316, %v6287
      %6321 = vst.msk [vmem:[%s224 + $0x20] sm:$0xff] %vm6316, %v6288
      %6322 = vst.msk [vmem:[%s224 + $0x28] sm:$0xff] %vm6316, %v6289
      %6323 = vst.msk [vmem:[%s224 + $0x30] sm:$0xff] %vm6316, %v6290
      %6324 = vst.msk [vmem:[%s224 + $0x38] sm:$0xff] %vm6316, %v6291
      %6325 = vst.msk [vmem:[%s224 + $0x40] sm:$0xff] %vm6316, %v6292
      %6326 = vst.msk [vmem:[%s224 + $0x48] sm:$0xff] %vm6316, %v6293
      %6327 = vst.msk [vmem:[%s224 + $0x50] sm:$0xff] %vm6316, %v6294
      %6328 = vst.msk [vmem:[%s224 + $0x58] sm:$0xff] %vm6316, %v6295
      %6329 = vst.msk [vmem:[%s224 + $0x60] sm:$0xff] %vm6316, %v6296
      %6330 = vst.msk [vmem:[%s224 + $0x68] sm:$0xff] %vm6316, %v6297
      %6331 = vst.msk [vmem:[%s224 + $0x70] sm:$0xff] %vm6316, %v6298
      %6332 = vst.msk [vmem:[%s224 + $0x78] sm:$0xff] %vm6316, %v6299
      %6333 = vst.msk [vmem:[%s224 + $0x80] sm:$0xff] %vm6316, %v6300
      %6334 = vst.msk [vmem:[%s224 + $0x88] sm:$0xff] %vm6316, %v6301
      %6335 = vst.msk [vmem:[%s224 + $0x90] sm:$0xff] %vm6316, %v6302
      %6336 = vst.msk [vmem:[%s224 + $0x98] sm:$0xff] %vm6316, %v6303
      %6337 = vst.msk [vmem:[%s224 + $0xa0] sm:$0xff] %vm6316, %v6304
      %6338 = vst.msk [vmem:[%s224 + $0xa8] sm:$0xff] %vm6316, %v6305
      %6339 = vst.msk [vmem:[%s224 + $0xb0] sm:$0xff] %vm6316, %v6306
      %6340 = vst.msk [vmem:[%s224 + $0xb8] sm:$0xff] %vm6316, %v6307
      %6341 = vst.msk [vmem:[%s224 + $0xc0] sm:$0xff] %vm6316, %v6308
      %6342 = vst.msk [vmem:[%s224 + $0xc8] sm:$0xff] %vm6316, %v6309
      %6343 = vst.msk [vmem:[%s224 + $0xd0] sm:$0xff] %vm6316, %v6310
      %6344 = vst.msk [vmem:[%s224 + $0xd8] sm:$0xff] %vm6316, %v6311
      %6345 = vst.msk [vmem:[%s224 + $0xe0] sm:$0xff] %vm6316, %v6312
      %6346 = vst.msk [vmem:[%s224 + $0xe8] sm:$0xff] %vm6316, %v6313
      %6347 = vst.msk [vmem:[%s224 + $0xf0] sm:$0xff] %vm6316, %v6314
      %6348 = vst.msk [vmem:[%s224 + $0xf8] sm:$0xff] %vm6316, %v6315
      %p6349 = scmp.lt.s32.totalorder %s16, 1
      %s6350 = scalar_select %p6349, %s16, 1
      %s6351 = smul.addr %s6350, 32
      %s6352 = smul.addr %s6351, 8
      %s6353 = scalar_lea.vmem %s5, %s6352
      // Predicated region
      $region41: #{tpu_custom_call.1} parent=39 // pred_check
        %p6354 = pneg %p144
      $region42: #{tpu_custom_call.1} parent=39 // pred_check_branch
        %6356 = sbr.rel (%p6354) target = $region44
      $region43: #{tpu_custom_call.1} parent=39 // pred_region
        _
      $region44: #{tpu_custom_call.1} parent=39 // pred_fallthru
        _
    $region40: #{tpu_custom_call.1} parent=5 // pred_fallthru
      _
    %p6357 = scmp.le.s32.totalorder 2, %s11
    // Predicated region
    $region45: #{tpu_custom_call.1} parent=5 // pred_check
      %p6358 = pneg %p6357
    $region46: #{tpu_custom_call.1} parent=5 // pred_check_branch
      %6360 = sbr.rel (%p6358) target = $region48
    $region47: #{tpu_custom_call.1} parent=5 // pred_region
      %s6361 = ssub.s32 %s11, 2
      // Predicated region
      $region49: #{tpu_custom_call.1} parent=47 // pred_check
        %p6362 = pneg %p150
      $region50: #{tpu_custom_call.1} parent=47 // pred_check_branch
        %6364 = sbr.rel (%p6362) target = $region52
      $region51: #{tpu_custom_call.1} parent=47 // pred_region
        %p6365 = scmp.lt.s32.totalorder %s17, 1
        %s6366 = scalar_select %p6365, %s17, 1
        %s6367 = smul.addr %s6366, 32
        %s6368 = smul.addr %s6367, 8
        %s6369 = scalar_lea.vmem %s5, %s6368
      $region52: #{tpu_custom_call.1} parent=47 // pred_fallthru
        _
    $region48: #{tpu_custom_call.1} parent=5 // pred_fallthru
      _
  $region6: #{tpu_custom_call.1} parent=0 // loop_footer
    %s15 = sadd.s32 1, %s11
  $region7: #{tpu_custom_call.1} parent=0 // loop_footer_branch
    %10 = sbr.rel target = $region3
  $region8: #{tpu_custom_call.1} parent=0 // loop_exit
    _

</llo_original>
